<compile_context>
chip_gen: v7x
topology: tpu7x:2x2x1
jax: 0.10.0
libtpu: 0.0.40
codegen_flags: <defaults>
</compile_context>

<pallas_src>
import math
from functools import partial

import jax
import jax.numpy as jnp
from jax import lax
from jax.experimental import pallas as pl
from jax.experimental.pallas import tpu as pltpu


def mha_block_kernel(x_ref,
                     wq_ref, bq_ref, wk_ref, bk_ref, wv_ref, bv_ref,
                     wfc_ref, bfc_ref,
                     ln1w_ref, ln1b_ref,
                     w1_ref, b1_ref, w2_ref, b2_ref,
                     ln2w_ref, ln2b_ref,
                     o_ref,
                     attn_ref,
                     *, bt, seq, num_heads, d_model, d_ff, ff_tile, scale, eps):
    f32 = jnp.float32
    bf16 = jnp.bfloat16
    R = bt * seq                      # stacked rows (batch tile folded into matmul M)
    dk = d_model // num_heads

    # (Bt, S, D) -> (Bt*S, D)
    x = x_ref[...].reshape(R, d_model)
    xb = x.astype(bf16)

    # Q/K/V projections for all heads at once: bf16 operands on the MXU, f32 accumulation.
    q = jnp.dot(xb, wq_ref[...], preferred_element_type=f32) + bq_ref[...]
    k = jnp.dot(xb, wk_ref[...], preferred_element_type=f32) + bk_ref[...]
    v = jnp.dot(xb, wv_ref[...], preferred_element_type=f32) + bv_ref[...]

    # Fold the 1/sqrt(d_model) scale into q once (uniform pre-softmax scale is
    # mathematically identical; saves H*Bt*S^2 VALU multiplies on the score path).
    q_b = (q * scale).astype(bf16)
    k_b = k.astype(bf16)
    v_b = v.astype(bf16)

    # Per-head attention.  Each head's output lands in its column slice of the (R, D)
    # scratch, so the output projection below runs once with a full K=D contraction.
    for h in range(num_heads):        # static unroll; head temporaries die at the ref store
        lo = h * dk
        qh = q_b[:, lo:lo + dk].reshape(bt, seq, dk)
        kh = k_b[:, lo:lo + dk].reshape(bt, seq, dk)
        vh = v_b[:, lo:lo + dk].reshape(bt, seq, dk)

        # Scores (Bt, S_q, S_k): K-transpose absorbed into dot_general
        # (contract last dims of both operands, batched over the batch tile).
        s = lax.dot_general(qh, kh, (((2,), (2,)), ((0,), (0,))),
                            preferred_element_type=f32)

        # nn.Softmax(dim=1): normalize over the QUERY axis.  Softmax math in f32.
        m = jnp.max(s, axis=1, keepdims=True)
        e = jnp.exp(s - m)
        denom = jnp.sum(e, axis=1, keepdims=True)
        p = e * pl.reciprocal(denom, approx=True)

        # (Bt, S_q, dk) = (Bt, S_q, S_k) @ (Bt, S_k, dk)
        oh = lax.dot_general(p.astype(bf16), vh, (((2,), (1,)), ((0,), (0,))),
                             preferred_element_type=f32)
        attn_ref[:, lo:lo + dk] = oh.reshape(R, dk).astype(bf16)

    # Output projection: one full-width (R, D) @ (D, D) matmul.
    proj = jnp.dot(attn_ref[...], wfc_ref[...], preferred_element_type=f32) + bfc_ref[...]

    # Residual + LayerNorm 1 (fused single-pass statistics).
    y = proj + x
    mu = jnp.mean(y, axis=-1, keepdims=True)
    var = jnp.mean(y * y, axis=-1, keepdims=True) - mu * mu
    y = (y - mu) * lax.rsqrt(var + eps) * ln1w_ref[...] + ln1b_ref[...]

    # Position-wise FFN, tiled over the hidden dim so the (R, d_ff) intermediate is
    # never fully resident.  ReLU is per hidden unit, so tiling commutes with it.
    yb = y.astype(bf16)
    ff = jnp.broadcast_to(b2_ref[...], (R, d_model)).astype(f32)   # hoisted bias broadcast
    for j in range(0, d_ff, ff_tile):
        t = min(ff_tile, d_ff - j)
        h1 = jnp.dot(yb, w1_ref[:, j:j + t], preferred_element_type=f32) + b1_ref[:, j:j + t]
        h1 = jnp.maximum(h1, 0.0)
        ff = ff + jnp.dot(h1.astype(bf16), w2_ref[j:j + t, :], preferred_element_type=f32)

    # Residual + LayerNorm 2 (fused statistics).
    z = y + ff
    mu2 = jnp.mean(z, axis=-1, keepdims=True)
    var2 = jnp.mean(z * z, axis=-1, keepdims=True) - mu2 * mu2
    z = (z - mu2) * lax.rsqrt(var2 + eps) * ln2w_ref[...] + ln2b_ref[...]

    o_ref[...] = z.reshape(bt, seq, d_model).astype(o_ref.dtype)


def _estimate_vmem_bytes(bt, S, D, d_ff, ff_tile):
    """Rough per-grid-step VMEM footprint (bytes) used to bound the batch tile."""
    R = bt * S
    f32b, bf16b = 4, 2
    io = 2 * 2 * (R * D * f32b)                   # x + out blocks, double-buffered
    weights = (4 * D * D + 2 * D * d_ff) * bf16b  # single-buffered bf16 weights
    smalls = (7 * D + d_ff) * f32b                # biases / LN params
    acts = 3 * R * D * (f32b + bf16b)             # q/k/v f32 + bf16 copies
    acts += 2 * bt * S * S * f32b                 # per-head scores + exp
    acts += R * D * bf16b                         # attention scratch slab
    acts += R * min(ff_tile, d_ff) * f32b         # h1 tile
    acts += 3 * R * D * f32b                      # proj / y / ff working set
    return io + weights + smalls + acts


def _pick_bt(B, S, D, d_ff, ff_tile, vmem_budget):
    # Keep at least 2 grid steps when possible so both v7x TensorCores get work
    # ("parallel" grid axes are sharded across cores); on 1-TC chips the extra
    # grid step only costs ~0.35 us.
    max_bt = max(1, B // 2)
    bt = 1
    for cand in range(1, max_bt + 1):
        if B % cand:
            continue
        if _estimate_vmem_bytes(cand, S, D, d_ff, ff_tile) > vmem_budget:
            break
        bt = cand
        if cand * S >= 512:          # enough stacked rows to feed the MXU / amortize per-step overhead
            break
    return bt


def multi_head_attention_block(x, params, *, num_heads, eps=1e-5, bt=None, ff_tile=None):
    B, S, D = x.shape
    assert D % num_heads == 0, "d_model must be divisible by num_heads"
    Hff = params["w1"].shape[1]
    scale = 1.0 / math.sqrt(D)       # reference scales by 1/sqrt(d_model), not 1/sqrt(d_k)

    # Chip-aware VMEM budget (v5e/v6e: 128 MiB, v7x: 64 MiB).
    try:
        vmem_cap = int(pltpu.get_tpu_info().vmem_capacity_bytes)
    except Exception:
        vmem_cap = 64 * 1024 * 1024  # conservative (v7x-sized) fallback

    if ff_tile is None:
        ff_tile = min(Hff, 2048)
    if bt is None:
        bt = _pick_bt(B, S, D, Hff, ff_tile, vmem_budget=int(vmem_cap * 0.55))
    assert B % bt == 0, "batch tile must divide batch"
    R = bt * S
    grid = (B // bt,)

    # Matmul weights live in bf16 (halved DMA traffic + resident VMEM); biases,
    # LayerNorm params and all accumulation/softmax/LN math stay f32.
    bf16, f32 = jnp.bfloat16, jnp.float32
    wq = params["wq"].astype(bf16)
    wk = params["wk"].astype(bf16)
    wv = params["wv"].astype(bf16)
    wfc = params["wfc"].astype(bf16)
    w1 = params["w1"].astype(bf16)
    w2 = params["w2"].astype(bf16)

    kernel = partial(mha_block_kernel, bt=bt, seq=S, num_heads=num_heads,
                     d_model=D, d_ff=Hff, ff_tile=ff_tile, scale=scale, eps=eps)

    args = (x,
            wq, params["bq"].astype(f32), wk, params["bk"].astype(f32),
            wv, params["bv"].astype(f32),
            wfc, params["bfc"].astype(f32),
            params["ln1_w"].astype(f32), params["ln1_b"].astype(f32),
            w1, params["b1"].astype(f32), w2, params["b2"].astype(f32),
            params["ln2_w"].astype(f32), params["ln2_b"].astype(f32))

    def build(single_buffer_weights):
        def const_spec(shape):
            nd = len(shape)
            if single_buffer_weights:
                # Constant index map -> fetched once across the grid; Buffered(1)
                # drops the pointless second buffer so weights are resident only once.
                return pl.BlockSpec(shape, lambda i: (0,) * nd,
                                    pipeline_mode=pl.Buffered(1))
            return pl.BlockSpec(shape, lambda i: (0,) * nd)

        in_specs = [
            pl.BlockSpec((bt, S, D), lambda i: (i, 0, 0)),   # x (batch tile)
            const_spec((D, D)), const_spec((1, D)),          # Wq, bq
            const_spec((D, D)), const_spec((1, D)),          # Wk, bk
            const_spec((D, D)), const_spec((1, D)),          # Wv, bv
            const_spec((D, D)), const_spec((1, D)),          # Wfc, bfc
            const_spec((1, D)), const_spec((1, D)),          # ln1 w, b
            const_spec((D, Hff)), const_spec((1, Hff)),      # W1, b1
            const_spec((Hff, D)), const_spec((1, D)),        # W2, b2
            const_spec((1, D)), const_spec((1, D)),          # ln2 w, b
        ]
        return pl.pallas_call(
            kernel,
            out_shape=jax.ShapeDtypeStruct((B, S, D), x.dtype),
            grid_spec=pltpu.PrefetchScalarGridSpec(
                num_scalar_prefetch=0,
                grid=grid,
                in_specs=in_specs,
                out_specs=pl.BlockSpec((bt, S, D), lambda i: (i, 0, 0)),
                scratch_shapes=[pltpu.VMEM((R, D), jnp.bfloat16)],   # per-head attn slab
            ),
            compiler_params=pltpu.CompilerParams(
                dimension_semantics=("parallel",),
                vmem_limit_bytes=int(vmem_cap * 3 // 4)),
        )

    try:
        return build(True)(*args)
    except Exception:
        # Fallback for jax/Mosaic versions where single-buffered constant specs
        # (pl.Buffered(1)) are not accepted.
        return build(False)(*args)


def reference_forward(x, params, *, num_heads, eps=1e-5):
    """Pure-JAX f32 reference mirroring the PyTorch module semantics."""
    B, S, D = x.shape
    dk = D // num_heads
    scale = 1.0 / math.sqrt(D)
    q = x @ params["wq"] + params["bq"]
    k = x @ params["wk"] + params["bk"]
    v = x @ params["wv"] + params["bv"]
    outs = []
    for h in range(num_heads):
        qh = q[..., h * dk:(h + 1) * dk]
        kh = k[..., h * dk:(h + 1) * dk]
        vh = v[..., h * dk:(h + 1) * dk]
        s = jnp.einsum("bqd,bkd->bqk", qh, kh) * scale
        p = jax.nn.softmax(s, axis=1)            # softmax over dim=1 (query axis)
        outs.append(jnp.einsum("bqk,bkd->bqd", p, vh))
    attn = jnp.concatenate(outs, axis=-1)
    y = attn @ params["wfc"] + params["bfc"] + x

    def ln(t, w, b):
        mu = jnp.mean(t, axis=-1, keepdims=True)
        var = jnp.mean((t - mu) ** 2, axis=-1, keepdims=True)
        return (t - mu) * jax.lax.rsqrt(var + eps) * w + b

    y = ln(y, params["ln1_w"], params["ln1_b"])
    ff = jnp.maximum(y @ params["w1"] + params["b1"], 0.0) @ params["w2"] + params["b2"]
    return ln(y + ff, params["ln2_w"], params["ln2_b"])


if __name__ == "__main__":
    # Small smoke-test shapes.  Real workloads should use D / HIDDEN that are multiples
    # of 128 (lane density) -- these tiny dims exercise correctness, not performance.
    B, S, D, NUM_HEADS, HIDDEN = 2, 8, 32, 4, 64

    key = jax.random.PRNGKey(0)
    keys = jax.random.split(key, 13)

    def init(k, shape, sc=0.1):
        return (sc * jax.random.normal(k, shape)).astype(jnp.float32)

    # Per-head Q/K/V weights are concatenated along the output dim: (D, num_heads*dk) = (D, D).
    params = {
        "wq": init(keys[0], (D, D)),   "bq": init(keys[1], (1, D)),
        "wk": init(keys[2], (D, D)),   "bk": init(keys[3], (1, D)),
        "wv": init(keys[4], (D, D)),   "bv": init(keys[5], (1, D)),
        "wfc": init(keys[6], (D, D)),  "bfc": init(keys[7], (1, D)),
        "ln1_w": jnp.ones((1, D), jnp.float32), "ln1_b": jnp.zeros((1, D), jnp.float32),
        "w1": init(keys[8], (D, HIDDEN)), "b1": init(keys[9], (1, HIDDEN)),
        "w2": init(keys[10], (HIDDEN, D)), "b2": init(keys[11], (1, D)),
        "ln2_w": jnp.ones((1, D), jnp.float32), "ln2_b": jnp.zeros((1, D), jnp.float32),
    }

    x = jax.random.normal(keys[12], (B, S, D), dtype=jnp.float32)

    out = multi_head_attention_block(x, params, num_heads=NUM_HEADS)
    out = jax.block_until_ready(out)

    ref = reference_forward(x, params, num_heads=NUM_HEADS)
    assert out.shape == (B, S, D)
    # Tolerance accounts for bf16 MXU operands (f32 accumulation) and the approx
    # (EUP) reciprocal in the softmax denominator.
    assert jnp.allclose(out, ref, atol=2e-2, rtol=2e-2), "Pallas output mismatch vs JAX reference"

    print("KERNEL_OK")
</pallas_src>

<mosaic_0001>
module attributes {stable_mosaic.version = 11 : i64} {
  func.func @mha_block_kernel(%arg0: i32, %arg1: memref<1x8x32xf32, #tpu.memory_space<vmem>>, %arg2: memref<32x32xbf16, #tpu.memory_space<vmem>>, %arg3: memref<1x32xf32, #tpu.memory_space<vmem>>, %arg4: memref<32x32xbf16, #tpu.memory_space<vmem>>, %arg5: memref<1x32xf32, #tpu.memory_space<vmem>>, %arg6: memref<32x32xbf16, #tpu.memory_space<vmem>>, %arg7: memref<1x32xf32, #tpu.memory_space<vmem>>, %arg8: memref<32x32xbf16, #tpu.memory_space<vmem>>, %arg9: memref<1x32xf32, #tpu.memory_space<vmem>>, %arg10: memref<1x32xf32, #tpu.memory_space<vmem>>, %arg11: memref<1x32xf32, #tpu.memory_space<vmem>>, %arg12: memref<32x64xbf16, #tpu.memory_space<vmem>>, %arg13: memref<1x64xf32, #tpu.memory_space<vmem>>, %arg14: memref<64x32xbf16, #tpu.memory_space<vmem>>, %arg15: memref<1x32xf32, #tpu.memory_space<vmem>>, %arg16: memref<1x32xf32, #tpu.memory_space<vmem>>, %arg17: memref<1x32xf32, #tpu.memory_space<vmem>>, %arg18: memref<1x8x32xf32, #tpu.memory_space<vmem>>, %arg19: memref<8x32xbf16, #tpu.memory_space<vmem>>) attributes {dimension_semantics = [#tpu.dimension_semantics<parallel>], iteration_bounds = array<i64: 2>, scalar_prefetch = 0 : i64, scratch_operands = 1 : i64, tpu.core_type = #tpu.core_type<tc>, window_params = [{transform_indices = @transform_0, window_bounds = array<i64: 1, 8, 32>}, {pipeline_mode = #tpu.pipeline_mode<synchronous>, transform_indices = @transform_1, window_bounds = array<i64: 32, 32>}, {pipeline_mode = #tpu.pipeline_mode<synchronous>, transform_indices = @transform_2, window_bounds = array<i64: 1, 32>}, {pipeline_mode = #tpu.pipeline_mode<synchronous>, transform_indices = @transform_3, window_bounds = array<i64: 32, 32>}, {pipeline_mode = #tpu.pipeline_mode<synchronous>, transform_indices = @transform_4, window_bounds = array<i64: 1, 32>}, {pipeline_mode = #tpu.pipeline_mode<synchronous>, transform_indices = @transform_5, window_bounds = array<i64: 32, 32>}, {pipeline_mode = #tpu.pipeline_mode<synchronous>, transform_indices = @transform_6, window_bounds = array<i64: 1, 32>}, {pipeline_mode = #tpu.pipeline_mode<synchronous>, transform_indices = @transform_7, window_bounds = array<i64: 32, 32>}, {pipeline_mode = #tpu.pipeline_mode<synchronous>, transform_indices = @transform_8, window_bounds = array<i64: 1, 32>}, {pipeline_mode = #tpu.pipeline_mode<synchronous>, transform_indices = @transform_9, window_bounds = array<i64: 1, 32>}, {pipeline_mode = #tpu.pipeline_mode<synchronous>, transform_indices = @transform_10, window_bounds = array<i64: 1, 32>}, {pipeline_mode = #tpu.pipeline_mode<synchronous>, transform_indices = @transform_11, window_bounds = array<i64: 32, 64>}, {pipeline_mode = #tpu.pipeline_mode<synchronous>, transform_indices = @transform_12, window_bounds = array<i64: 1, 64>}, {pipeline_mode = #tpu.pipeline_mode<synchronous>, transform_indices = @transform_13, window_bounds = array<i64: 64, 32>}, {pipeline_mode = #tpu.pipeline_mode<synchronous>, transform_indices = @transform_14, window_bounds = array<i64: 1, 32>}, {pipeline_mode = #tpu.pipeline_mode<synchronous>, transform_indices = @transform_15, window_bounds = array<i64: 1, 32>}, {pipeline_mode = #tpu.pipeline_mode<synchronous>, transform_indices = @transform_16, window_bounds = array<i64: 1, 32>}, {transform_indices = @transform_17, window_bounds = array<i64: 1, 8, 32>}]} {
    %c0 = arith.constant 0 : index
    %c0_0 = arith.constant 0 : index
    %c0_1 = arith.constant 0 : index
    %0 = vector.load %arg1[%c0, %c0_0, %c0_1] : memref<1x8x32xf32, #tpu.memory_space<vmem>>, vector<1x8x32xf32>
    %1 = vector.shape_cast %0 : vector<1x8x32xf32> to vector<8x32xf32>
    %2 = arith.truncf %1 : vector<8x32xf32> to vector<8x32xbf16>
    %c0_2 = arith.constant 0 : index
    %c0_3 = arith.constant 0 : index
    %3 = vector.load %arg2[%c0_2, %c0_3] : memref<32x32xbf16, #tpu.memory_space<vmem>>, vector<32x32xbf16>
    %cst = arith.constant dense<0.000000e+00> : vector<8x32xf32>
    %4 = tpu.matmul %2, %3, %cst {dimension_numbers = #tpu.dot_dimension_numbers<[1], [0], [0], [1], [0, 0, 1, 1], [], []>} : vector<8x32xbf16>, vector<32x32xbf16>, vector<8x32xf32> -> vector<8x32xf32>
    %c0_4 = arith.constant 0 : index
    %c0_5 = arith.constant 0 : index
    %5 = vector.load %arg3[%c0_4, %c0_5] : memref<1x32xf32, #tpu.memory_space<vmem>>, vector<1x32xf32>
    %6 = vector.broadcast %5 : vector<1x32xf32> to vector<8x32xf32>
    %7 = arith.addf %4, %6 : vector<8x32xf32>
    %c0_6 = arith.constant 0 : index
    %c0_7 = arith.constant 0 : index
    %8 = vector.load %arg4[%c0_6, %c0_7] : memref<32x32xbf16, #tpu.memory_space<vmem>>, vector<32x32xbf16>
    %cst_8 = arith.constant dense<0.000000e+00> : vector<8x32xf32>
    %9 = tpu.matmul %2, %8, %cst_8 {dimension_numbers = #tpu.dot_dimension_numbers<[1], [0], [0], [1], [0, 0, 1, 1], [], []>} : vector<8x32xbf16>, vector<32x32xbf16>, vector<8x32xf32> -> vector<8x32xf32>
    %c0_9 = arith.constant 0 : index
    %c0_10 = arith.constant 0 : index
    %10 = vector.load %arg5[%c0_9, %c0_10] : memref<1x32xf32, #tpu.memory_space<vmem>>, vector<1x32xf32>
    %11 = vector.broadcast %10 : vector<1x32xf32> to vector<8x32xf32>
    %12 = arith.addf %9, %11 : vector<8x32xf32>
    %c0_11 = arith.constant 0 : index
    %c0_12 = arith.constant 0 : index
    %13 = vector.load %arg6[%c0_11, %c0_12] : memref<32x32xbf16, #tpu.memory_space<vmem>>, vector<32x32xbf16>
    %cst_13 = arith.constant dense<0.000000e+00> : vector<8x32xf32>
    %14 = tpu.matmul %2, %13, %cst_13 {dimension_numbers = #tpu.dot_dimension_numbers<[1], [0], [0], [1], [0, 0, 1, 1], [], []>} : vector<8x32xbf16>, vector<32x32xbf16>, vector<8x32xf32> -> vector<8x32xf32>
    %c0_14 = arith.constant 0 : index
    %c0_15 = arith.constant 0 : index
    %15 = vector.load %arg7[%c0_14, %c0_15] : memref<1x32xf32, #tpu.memory_space<vmem>>, vector<1x32xf32>
    %16 = vector.broadcast %15 : vector<1x32xf32> to vector<8x32xf32>
    %17 = arith.addf %14, %16 : vector<8x32xf32>
    %cst_16 = arith.constant 0.176776692 : f32
    %18 = vector.broadcast %cst_16 : f32 to vector<8x32xf32>
    %19 = arith.mulf %7, %18 : vector<8x32xf32>
    %20 = arith.truncf %19 : vector<8x32xf32> to vector<8x32xbf16>
    %21 = arith.truncf %12 : vector<8x32xf32> to vector<8x32xbf16>
    %22 = arith.truncf %17 : vector<8x32xf32> to vector<8x32xbf16>
    %23 = vector.extract_strided_slice %20 {offsets = [0, 0], sizes = [8, 8], strides = [1, 1]} : vector<8x32xbf16> to vector<8x8xbf16>
    %24 = vector.shape_cast %23 : vector<8x8xbf16> to vector<1x8x8xbf16>
    %25 = vector.extract_strided_slice %21 {offsets = [0, 0], sizes = [8, 8], strides = [1, 1]} : vector<8x32xbf16> to vector<8x8xbf16>
    %26 = vector.shape_cast %25 : vector<8x8xbf16> to vector<1x8x8xbf16>
    %27 = vector.extract_strided_slice %22 {offsets = [0, 0], sizes = [8, 8], strides = [1, 1]} : vector<8x32xbf16> to vector<8x8xbf16>
    %28 = vector.shape_cast %27 : vector<8x8xbf16> to vector<1x8x8xbf16>
    %cst_17 = arith.constant dense<0.000000e+00> : vector<1x8x8xf32>
    %29 = tpu.matmul %24, %26, %cst_17 {dimension_numbers = #tpu.dot_dimension_numbers<[2], [2], [1], [1], [0, 0, 0, 1, 1, 1], [0], [0]>} : vector<1x8x8xbf16>, vector<1x8x8xbf16>, vector<1x8x8xf32> -> vector<1x8x8xf32>
    %cst_18 = arith.constant dense<0xFF800000> : vector<1x8xf32>
    %30 = vector.multi_reduction <maximumf>, %29, %cst_18 [1] : vector<1x8x8xf32> to vector<1x8xf32>
    %31 = vector.shape_cast %30 : vector<1x8xf32> to vector<1x1x8xf32>
    %32 = vector.broadcast %31 : vector<1x1x8xf32> to vector<1x8x8xf32>
    %33 = arith.subf %29, %32 : vector<1x8x8xf32>
    %34 = math.exp %33 : vector<1x8x8xf32>
    %cst_19 = arith.constant dense<0.000000e+00> : vector<1x8xf32>
    %35 = vector.multi_reduction <add>, %34, %cst_19 [1] : vector<1x8x8xf32> to vector<1x8xf32>
    %36 = vector.shape_cast %35 : vector<1x8xf32> to vector<1x1x8xf32>
    %37 = tpu.reciprocal %36 {approx = true} : vector<1x1x8xf32> -> vector<1x1x8xf32>
    %38 = vector.broadcast %37 : vector<1x1x8xf32> to vector<1x8x8xf32>
    %39 = arith.mulf %34, %38 : vector<1x8x8xf32>
    %40 = arith.truncf %39 : vector<1x8x8xf32> to vector<1x8x8xbf16>
    %cst_20 = arith.constant dense<0.000000e+00> : vector<1x8x8xf32>
    %41 = tpu.matmul %40, %28, %cst_20 {dimension_numbers = #tpu.dot_dimension_numbers<[2], [1], [1], [2], [0, 0, 0, 1, 1, 2], [0], [0]>} : vector<1x8x8xbf16>, vector<1x8x8xbf16>, vector<1x8x8xf32> -> vector<1x8x8xf32>
    %42 = vector.shape_cast %41 : vector<1x8x8xf32> to vector<8x8xf32>
    %43 = arith.truncf %42 : vector<8x8xf32> to vector<8x8xbf16>
    %c0_21 = arith.constant 0 : index
    %c0_22 = arith.constant 0 : index
    %44 = vector.load %arg19[%c0_21, %c0_22] : memref<8x32xbf16, #tpu.memory_space<vmem>>, vector<8x8xbf16>
    tpu.vector_store %arg19[%c0_21, %c0_22], %43 {strides = array<i32>} : memref<8x32xbf16, #tpu.memory_space<vmem>>, vector<8x8xbf16>,
    %45 = vector.extract_strided_slice %20 {offsets = [0, 8], sizes = [8, 8], strides = [1, 1]} : vector<8x32xbf16> to vector<8x8xbf16>
    %46 = vector.shape_cast %45 : vector<8x8xbf16> to vector<1x8x8xbf16>
    %47 = vector.extract_strided_slice %21 {offsets = [0, 8], sizes = [8, 8], strides = [1, 1]} : vector<8x32xbf16> to vector<8x8xbf16>
    %48 = vector.shape_cast %47 : vector<8x8xbf16> to vector<1x8x8xbf16>
    %49 = vector.extract_strided_slice %22 {offsets = [0, 8], sizes = [8, 8], strides = [1, 1]} : vector<8x32xbf16> to vector<8x8xbf16>
    %50 = vector.shape_cast %49 : vector<8x8xbf16> to vector<1x8x8xbf16>
    %cst_23 = arith.constant dense<0.000000e+00> : vector<1x8x8xf32>
    %51 = tpu.matmul %46, %48, %cst_23 {dimension_numbers = #tpu.dot_dimension_numbers<[2], [2], [1], [1], [0, 0, 0, 1, 1, 1], [0], [0]>} : vector<1x8x8xbf16>, vector<1x8x8xbf16>, vector<1x8x8xf32> -> vector<1x8x8xf32>
    %cst_24 = arith.constant dense<0xFF800000> : vector<1x8xf32>
    %52 = vector.multi_reduction <maximumf>, %51, %cst_24 [1] : vector<1x8x8xf32> to vector<1x8xf32>
    %53 = vector.shape_cast %52 : vector<1x8xf32> to vector<1x1x8xf32>
    %54 = vector.broadcast %53 : vector<1x1x8xf32> to vector<1x8x8xf32>
    %55 = arith.subf %51, %54 : vector<1x8x8xf32>
    %56 = math.exp %55 : vector<1x8x8xf32>
    %cst_25 = arith.constant dense<0.000000e+00> : vector<1x8xf32>
    %57 = vector.multi_reduction <add>, %56, %cst_25 [1] : vector<1x8x8xf32> to vector<1x8xf32>
    %58 = vector.shape_cast %57 : vector<1x8xf32> to vector<1x1x8xf32>
    %59 = tpu.reciprocal %58 {approx = true} : vector<1x1x8xf32> -> vector<1x1x8xf32>
    %60 = vector.broadcast %59 : vector<1x1x8xf32> to vector<1x8x8xf32>
    %61 = arith.mulf %56, %60 : vector<1x8x8xf32>
    %62 = arith.truncf %61 : vector<1x8x8xf32> to vector<1x8x8xbf16>
    %cst_26 = arith.constant dense<0.000000e+00> : vector<1x8x8xf32>
    %63 = tpu.matmul %62, %50, %cst_26 {dimension_numbers = #tpu.dot_dimension_numbers<[2], [1], [1], [2], [0, 0, 0, 1, 1, 2], [0], [0]>} : vector<1x8x8xbf16>, vector<1x8x8xbf16>, vector<1x8x8xf32> -> vector<1x8x8xf32>
    %64 = vector.shape_cast %63 : vector<1x8x8xf32> to vector<8x8xf32>
    %65 = arith.truncf %64 : vector<8x8xf32> to vector<8x8xbf16>
    %c0_27 = arith.constant 0 : index
    %c8 = arith.constant 8 : index
    %66 = vector.load %arg19[%c0_27, %c8] : memref<8x32xbf16, #tpu.memory_space<vmem>>, vector<8x8xbf16>
    tpu.vector_store %arg19[%c0_27, %c8], %65 {strides = array<i32>} : memref<8x32xbf16, #tpu.memory_space<vmem>>, vector<8x8xbf16>,
    %67 = vector.extract_strided_slice %20 {offsets = [0, 16], sizes = [8, 8], strides = [1, 1]} : vector<8x32xbf16> to vector<8x8xbf16>
    %68 = vector.shape_cast %67 : vector<8x8xbf16> to vector<1x8x8xbf16>
    %69 = vector.extract_strided_slice %21 {offsets = [0, 16], sizes = [8, 8], strides = [1, 1]} : vector<8x32xbf16> to vector<8x8xbf16>
    %70 = vector.shape_cast %69 : vector<8x8xbf16> to vector<1x8x8xbf16>
    %71 = vector.extract_strided_slice %22 {offsets = [0, 16], sizes = [8, 8], strides = [1, 1]} : vector<8x32xbf16> to vector<8x8xbf16>
    %72 = vector.shape_cast %71 : vector<8x8xbf16> to vector<1x8x8xbf16>
    %cst_28 = arith.constant dense<0.000000e+00> : vector<1x8x8xf32>
    %73 = tpu.matmul %68, %70, %cst_28 {dimension_numbers = #tpu.dot_dimension_numbers<[2], [2], [1], [1], [0, 0, 0, 1, 1, 1], [0], [0]>} : vector<1x8x8xbf16>, vector<1x8x8xbf16>, vector<1x8x8xf32> -> vector<1x8x8xf32>
    %cst_29 = arith.constant dense<0xFF800000> : vector<1x8xf32>
    %74 = vector.multi_reduction <maximumf>, %73, %cst_29 [1] : vector<1x8x8xf32> to vector<1x8xf32>
    %75 = vector.shape_cast %74 : vector<1x8xf32> to vector<1x1x8xf32>
    %76 = vector.broadcast %75 : vector<1x1x8xf32> to vector<1x8x8xf32>
    %77 = arith.subf %73, %76 : vector<1x8x8xf32>
    %78 = math.exp %77 : vector<1x8x8xf32>
    %cst_30 = arith.constant dense<0.000000e+00> : vector<1x8xf32>
    %79 = vector.multi_reduction <add>, %78, %cst_30 [1] : vector<1x8x8xf32> to vector<1x8xf32>
    %80 = vector.shape_cast %79 : vector<1x8xf32> to vector<1x1x8xf32>
    %81 = tpu.reciprocal %80 {approx = true} : vector<1x1x8xf32> -> vector<1x1x8xf32>
    %82 = vector.broadcast %81 : vector<1x1x8xf32> to vector<1x8x8xf32>
    %83 = arith.mulf %78, %82 : vector<1x8x8xf32>
    %84 = arith.truncf %83 : vector<1x8x8xf32> to vector<1x8x8xbf16>
    %cst_31 = arith.constant dense<0.000000e+00> : vector<1x8x8xf32>
    %85 = tpu.matmul %84, %72, %cst_31 {dimension_numbers = #tpu.dot_dimension_numbers<[2], [1], [1], [2], [0, 0, 0, 1, 1, 2], [0], [0]>} : vector<1x8x8xbf16>, vector<1x8x8xbf16>, vector<1x8x8xf32> -> vector<1x8x8xf32>
    %86 = vector.shape_cast %85 : vector<1x8x8xf32> to vector<8x8xf32>
    %87 = arith.truncf %86 : vector<8x8xf32> to vector<8x8xbf16>
    %c0_32 = arith.constant 0 : index
    %c16 = arith.constant 16 : index
    %88 = vector.load %arg19[%c0_32, %c16] : memref<8x32xbf16, #tpu.memory_space<vmem>>, vector<8x8xbf16>
    tpu.vector_store %arg19[%c0_32, %c16], %87 {strides = array<i32>} : memref<8x32xbf16, #tpu.memory_space<vmem>>, vector<8x8xbf16>,
    %89 = vector.extract_strided_slice %20 {offsets = [0, 24], sizes = [8, 8], strides = [1, 1]} : vector<8x32xbf16> to vector<8x8xbf16>
    %90 = vector.shape_cast %89 : vector<8x8xbf16> to vector<1x8x8xbf16>
    %91 = vector.extract_strided_slice %21 {offsets = [0, 24], sizes = [8, 8], strides = [1, 1]} : vector<8x32xbf16> to vector<8x8xbf16>
    %92 = vector.shape_cast %91 : vector<8x8xbf16> to vector<1x8x8xbf16>
    %93 = vector.extract_strided_slice %22 {offsets = [0, 24], sizes = [8, 8], strides = [1, 1]} : vector<8x32xbf16> to vector<8x8xbf16>
    %94 = vector.shape_cast %93 : vector<8x8xbf16> to vector<1x8x8xbf16>
    %cst_33 = arith.constant dense<0.000000e+00> : vector<1x8x8xf32>
    %95 = tpu.matmul %90, %92, %cst_33 {dimension_numbers = #tpu.dot_dimension_numbers<[2], [2], [1], [1], [0, 0, 0, 1, 1, 1], [0], [0]>} : vector<1x8x8xbf16>, vector<1x8x8xbf16>, vector<1x8x8xf32> -> vector<1x8x8xf32>
    %cst_34 = arith.constant dense<0xFF800000> : vector<1x8xf32>
    %96 = vector.multi_reduction <maximumf>, %95, %cst_34 [1] : vector<1x8x8xf32> to vector<1x8xf32>
    %97 = vector.shape_cast %96 : vector<1x8xf32> to vector<1x1x8xf32>
    %98 = vector.broadcast %97 : vector<1x1x8xf32> to vector<1x8x8xf32>
    %99 = arith.subf %95, %98 : vector<1x8x8xf32>
    %100 = math.exp %99 : vector<1x8x8xf32>
    %cst_35 = arith.constant dense<0.000000e+00> : vector<1x8xf32>
    %101 = vector.multi_reduction <add>, %100, %cst_35 [1] : vector<1x8x8xf32> to vector<1x8xf32>
    %102 = vector.shape_cast %101 : vector<1x8xf32> to vector<1x1x8xf32>
    %103 = tpu.reciprocal %102 {approx = true} : vector<1x1x8xf32> -> vector<1x1x8xf32>
    %104 = vector.broadcast %103 : vector<1x1x8xf32> to vector<1x8x8xf32>
    %105 = arith.mulf %100, %104 : vector<1x8x8xf32>
    %106 = arith.truncf %105 : vector<1x8x8xf32> to vector<1x8x8xbf16>
    %cst_36 = arith.constant dense<0.000000e+00> : vector<1x8x8xf32>
    %107 = tpu.matmul %106, %94, %cst_36 {dimension_numbers = #tpu.dot_dimension_numbers<[2], [1], [1], [2], [0, 0, 0, 1, 1, 2], [0], [0]>} : vector<1x8x8xbf16>, vector<1x8x8xbf16>, vector<1x8x8xf32> -> vector<1x8x8xf32>
    %108 = vector.shape_cast %107 : vector<1x8x8xf32> to vector<8x8xf32>
    %109 = arith.truncf %108 : vector<8x8xf32> to vector<8x8xbf16>
    %c0_37 = arith.constant 0 : index
    %c24 = arith.constant 24 : index
    %110 = vector.load %arg19[%c0_37, %c24] : memref<8x32xbf16, #tpu.memory_space<vmem>>, vector<8x8xbf16>
    tpu.vector_store %arg19[%c0_37, %c24], %109 {strides = array<i32>} : memref<8x32xbf16, #tpu.memory_space<vmem>>, vector<8x8xbf16>,
    %c0_38 = arith.constant 0 : index
    %c0_39 = arith.constant 0 : index
    %111 = vector.load %arg19[%c0_38, %c0_39] : memref<8x32xbf16, #tpu.memory_space<vmem>>, vector<8x32xbf16>
    %c0_40 = arith.constant 0 : index
    %c0_41 = arith.constant 0 : index
    %112 = vector.load %arg8[%c0_40, %c0_41] : memref<32x32xbf16, #tpu.memory_space<vmem>>, vector<32x32xbf16>
    %cst_42 = arith.constant dense<0.000000e+00> : vector<8x32xf32>
    %113 = tpu.matmul %111, %112, %cst_42 {dimension_numbers = #tpu.dot_dimension_numbers<[1], [0], [0], [1], [0, 0, 1, 1], [], []>} : vector<8x32xbf16>, vector<32x32xbf16>, vector<8x32xf32> -> vector<8x32xf32>
    %c0_43 = arith.constant 0 : index
    %c0_44 = arith.constant 0 : index
    %114 = vector.load %arg9[%c0_43, %c0_44] : memref<1x32xf32, #tpu.memory_space<vmem>>, vector<1x32xf32>
    %115 = vector.broadcast %114 : vector<1x32xf32> to vector<8x32xf32>
    %116 = arith.addf %113, %115 : vector<8x32xf32>
    %117 = arith.addf %116, %1 : vector<8x32xf32>
    %cst_45 = arith.constant dense<0.000000e+00> : vector<8xf32>
    %118 = vector.multi_reduction <add>, %117, %cst_45 [1] : vector<8x32xf32> to vector<8xf32>
    %119 = vector.shape_cast %118 : vector<8xf32> to vector<8x1xf32>
    %cst_46 = arith.constant 3.200000e+01 : f32
    %120 = vector.broadcast %cst_46 : f32 to vector<8x1xf32>
    %121 = arith.divf %119, %120 : vector<8x1xf32>
    %122 = arith.mulf %117, %117 : vector<8x32xf32>
    %cst_47 = arith.constant dense<0.000000e+00> : vector<8xf32>
    %123 = vector.multi_reduction <add>, %122, %cst_47 [1] : vector<8x32xf32> to vector<8xf32>
    %124 = vector.shape_cast %123 : vector<8xf32> to vector<8x1xf32>
    %cst_48 = arith.constant 3.200000e+01 : f32
    %125 = vector.broadcast %cst_48 : f32 to vector<8x1xf32>
    %126 = arith.divf %124, %125 : vector<8x1xf32>
    %127 = arith.mulf %121, %121 : vector<8x1xf32>
    %128 = arith.subf %126, %127 : vector<8x1xf32>
    %129 = vector.broadcast %121 : vector<8x1xf32> to vector<8x32xf32>
    %130 = arith.subf %117, %129 : vector<8x32xf32>
    %cst_49 = arith.constant 9.99999974E-6 : f32
    %131 = vector.broadcast %cst_49 : f32 to vector<8x1xf32>
    %132 = arith.addf %128, %131 : vector<8x1xf32>
    %133 = math.rsqrt %132 : vector<8x1xf32>
    %134 = vector.broadcast %133 : vector<8x1xf32> to vector<8x32xf32>
    %135 = arith.mulf %130, %134 : vector<8x32xf32>
    %c0_50 = arith.constant 0 : index
    %c0_51 = arith.constant 0 : index
    %136 = vector.load %arg10[%c0_50, %c0_51] : memref<1x32xf32, #tpu.memory_space<vmem>>, vector<1x32xf32>
    %137 = vector.broadcast %136 : vector<1x32xf32> to vector<8x32xf32>
    %138 = arith.mulf %135, %137 : vector<8x32xf32>
    %c0_52 = arith.constant 0 : index
    %c0_53 = arith.constant 0 : index
    %139 = vector.load %arg11[%c0_52, %c0_53] : memref<1x32xf32, #tpu.memory_space<vmem>>, vector<1x32xf32>
    %140 = vector.broadcast %139 : vector<1x32xf32> to vector<8x32xf32>
    %141 = arith.addf %138, %140 : vector<8x32xf32>
    %142 = arith.truncf %141 : vector<8x32xf32> to vector<8x32xbf16>
    %c0_54 = arith.constant 0 : index
    %c0_55 = arith.constant 0 : index
    %143 = vector.load %arg15[%c0_54, %c0_55] : memref<1x32xf32, #tpu.memory_space<vmem>>, vector<1x32xf32>
    %144 = vector.shape_cast %143 : vector<1x32xf32> to vector<1x32xf32>
    %145 = vector.broadcast %144 : vector<1x32xf32> to vector<8x32xf32>
    %c0_56 = arith.constant 0 : index
    %c0_57 = arith.constant 0 : index
    %146 = vector.load %arg12[%c0_56, %c0_57] : memref<32x64xbf16, #tpu.memory_space<vmem>>, vector<32x64xbf16>
    %cst_58 = arith.constant dense<0.000000e+00> : vector<8x64xf32>
    %147 = tpu.matmul %142, %146, %cst_58 {dimension_numbers = #tpu.dot_dimension_numbers<[1], [0], [0], [1], [0, 0, 1, 1], [], []>} : vector<8x32xbf16>, vector<32x64xbf16>, vector<8x64xf32> -> vector<8x64xf32>
    %c0_59 = arith.constant 0 : index
    %c0_60 = arith.constant 0 : index
    %148 = vector.load %arg13[%c0_59, %c0_60] : memref<1x64xf32, #tpu.memory_space<vmem>>, vector<1x64xf32>
    %149 = vector.broadcast %148 : vector<1x64xf32> to vector<8x64xf32>
    %150 = arith.addf %147, %149 : vector<8x64xf32>
    %cst_61 = arith.constant 0.000000e+00 : f32
    %151 = vector.broadcast %cst_61 : f32 to vector<8x64xf32>
    %152 = arith.maximumf %150, %151 : vector<8x64xf32>
    %153 = arith.truncf %152 : vector<8x64xf32> to vector<8x64xbf16>
    %c0_62 = arith.constant 0 : index
    %c0_63 = arith.constant 0 : index
    %154 = vector.load %arg14[%c0_62, %c0_63] : memref<64x32xbf16, #tpu.memory_space<vmem>>, vector<64x32xbf16>
    %cst_64 = arith.constant dense<0.000000e+00> : vector<8x32xf32>
    %155 = tpu.matmul %153, %154, %cst_64 {dimension_numbers = #tpu.dot_dimension_numbers<[1], [0], [0], [1], [0, 0, 1, 1], [], []>} : vector<8x64xbf16>, vector<64x32xbf16>, vector<8x32xf32> -> vector<8x32xf32>
    %156 = arith.addf %145, %155 : vector<8x32xf32>
    %157 = arith.addf %141, %156 : vector<8x32xf32>
    %cst_65 = arith.constant dense<0.000000e+00> : vector<8xf32>
    %158 = vector.multi_reduction <add>, %157, %cst_65 [1] : vector<8x32xf32> to vector<8xf32>
    %159 = vector.shape_cast %158 : vector<8xf32> to vector<8x1xf32>
    %cst_66 = arith.constant 3.200000e+01 : f32
    %160 = vector.broadcast %cst_66 : f32 to vector<8x1xf32>
    %161 = arith.divf %159, %160 : vector<8x1xf32>
    %162 = arith.mulf %157, %157 : vector<8x32xf32>
    %cst_67 = arith.constant dense<0.000000e+00> : vector<8xf32>
    %163 = vector.multi_reduction <add>, %162, %cst_67 [1] : vector<8x32xf32> to vector<8xf32>
    %164 = vector.shape_cast %163 : vector<8xf32> to vector<8x1xf32>
    %cst_68 = arith.constant 3.200000e+01 : f32
    %165 = vector.broadcast %cst_68 : f32 to vector<8x1xf32>
    %166 = arith.divf %164, %165 : vector<8x1xf32>
    %167 = arith.mulf %161, %161 : vector<8x1xf32>
    %168 = arith.subf %166, %167 : vector<8x1xf32>
    %169 = vector.broadcast %161 : vector<8x1xf32> to vector<8x32xf32>
    %170 = arith.subf %157, %169 : vector<8x32xf32>
    %cst_69 = arith.constant 9.99999974E-6 : f32
    %171 = vector.broadcast %cst_69 : f32 to vector<8x1xf32>
    %172 = arith.addf %168, %171 : vector<8x1xf32>
    %173 = math.rsqrt %172 : vector<8x1xf32>
    %174 = vector.broadcast %173 : vector<8x1xf32> to vector<8x32xf32>
    %175 = arith.mulf %170, %174 : vector<8x32xf32>
    %c0_70 = arith.constant 0 : index
    %c0_71 = arith.constant 0 : index
    %176 = vector.load %arg16[%c0_70, %c0_71] : memref<1x32xf32, #tpu.memory_space<vmem>>, vector<1x32xf32>
    %177 = vector.broadcast %176 : vector<1x32xf32> to vector<8x32xf32>
    %178 = arith.mulf %175, %177 : vector<8x32xf32>
    %c0_72 = arith.constant 0 : index
    %c0_73 = arith.constant 0 : index
    %179 = vector.load %arg17[%c0_72, %c0_73] : memref<1x32xf32, #tpu.memory_space<vmem>>, vector<1x32xf32>
    %180 = vector.broadcast %179 : vector<1x32xf32> to vector<8x32xf32>
    %181 = arith.addf %178, %180 : vector<8x32xf32>
    %182 = vector.shape_cast %181 : vector<8x32xf32> to vector<1x8x32xf32>
    %c0_74 = arith.constant 0 : index
    %c0_75 = arith.constant 0 : index
    %c0_76 = arith.constant 0 : index
    %183 = vector.load %arg18[%c0_74, %c0_75, %c0_76] : memref<1x8x32xf32, #tpu.memory_space<vmem>>, vector<1x8x32xf32>
    tpu.vector_store %arg18[%c0_74, %c0_75, %c0_76], %182 {strides = array<i32>} : memref<1x8x32xf32, #tpu.memory_space<vmem>>, vector<1x8x32xf32>,
    return
  }
  func.func @transform_0(%arg0: i32) -> (i32, i32, i32) {
    %c0_i32 = arith.constant 0 : i32
    %c0_i32_0 = arith.constant 0 : i32
    %c0_i32_1 = arith.constant 0 : i32
    return %arg0, %c0_i32, %c0_i32_0 : i32, i32, i32
  }
  func.func @transform_1(%arg0: i32) -> (i32, i32) {
    %c0_i32 = arith.constant 0 : i32
    %c0_i32_0 = arith.constant 0 : i32
    %c0_i32_1 = arith.constant 0 : i32
    return %c0_i32, %c0_i32_0 : i32, i32
  }
  func.func @transform_2(%arg0: i32) -> (i32, i32) {
    %c0_i32 = arith.constant 0 : i32
    %c0_i32_0 = arith.constant 0 : i32
    %c0_i32_1 = arith.constant 0 : i32
    return %c0_i32, %c0_i32_0 : i32, i32
  }
  func.func @transform_3(%arg0: i32) -> (i32, i32) {
    %c0_i32 = arith.constant 0 : i32
    %c0_i32_0 = arith.constant 0 : i32
    %c0_i32_1 = arith.constant 0 : i32
    return %c0_i32, %c0_i32_0 : i32, i32
  }
  func.func @transform_4(%arg0: i32) -> (i32, i32) {
    %c0_i32 = arith.constant 0 : i32
    %c0_i32_0 = arith.constant 0 : i32
    %c0_i32_1 = arith.constant 0 : i32
    return %c0_i32, %c0_i32_0 : i32, i32
  }
  func.func @transform_5(%arg0: i32) -> (i32, i32) {
    %c0_i32 = arith.constant 0 : i32
    %c0_i32_0 = arith.constant 0 : i32
    %c0_i32_1 = arith.constant 0 : i32
    return %c0_i32, %c0_i32_0 : i32, i32
  }
  func.func @transform_6(%arg0: i32) -> (i32, i32) {
    %c0_i32 = arith.constant 0 : i32
    %c0_i32_0 = arith.constant 0 : i32
    %c0_i32_1 = arith.constant 0 : i32
    return %c0_i32, %c0_i32_0 : i32, i32
  }
  func.func @transform_7(%arg0: i32) -> (i32, i32) {
    %c0_i32 = arith.constant 0 : i32
    %c0_i32_0 = arith.constant 0 : i32
    %c0_i32_1 = arith.constant 0 : i32
    return %c0_i32, %c0_i32_0 : i32, i32
  }
  func.func @transform_8(%arg0: i32) -> (i32, i32) {
    %c0_i32 = arith.constant 0 : i32
    %c0_i32_0 = arith.constant 0 : i32
    %c0_i32_1 = arith.constant 0 : i32
    return %c0_i32, %c0_i32_0 : i32, i32
  }
  func.func @transform_9(%arg0: i32) -> (i32, i32) {
    %c0_i32 = arith.constant 0 : i32
    %c0_i32_0 = arith.constant 0 : i32
    %c0_i32_1 = arith.constant 0 : i32
    return %c0_i32, %c0_i32_0 : i32, i32
  }
  func.func @transform_10(%arg0: i32) -> (i32, i32) {
    %c0_i32 = arith.constant 0 : i32
    %c0_i32_0 = arith.constant 0 : i32
    %c0_i32_1 = arith.constant 0 : i32
    return %c0_i32, %c0_i32_0 : i32, i32
  }
  func.func @transform_11(%arg0: i32) -> (i32, i32) {
    %c0_i32 = arith.constant 0 : i32
    %c0_i32_0 = arith.constant 0 : i32
    %c0_i32_1 = arith.constant 0 : i32
    return %c0_i32, %c0_i32_0 : i32, i32
  }
  func.func @transform_12(%arg0: i32) -> (i32, i32) {
    %c0_i32 = arith.constant 0 : i32
    %c0_i32_0 = arith.constant 0 : i32
    %c0_i32_1 = arith.constant 0 : i32
    return %c0_i32, %c0_i32_0 : i32, i32
  }
  func.func @transform_13(%arg0: i32) -> (i32, i32) {
    %c0_i32 = arith.constant 0 : i32
    %c0_i32_0 = arith.constant 0 : i32
    %c0_i32_1 = arith.constant 0 : i32
    return %c0_i32, %c0_i32_0 : i32, i32
  }
  func.func @transform_14(%arg0: i32) -> (i32, i32) {
    %c0_i32 = arith.constant 0 : i32
    %c0_i32_0 = arith.constant 0 : i32
    %c0_i32_1 = arith.constant 0 : i32
    return %c0_i32, %c0_i32_0 : i32, i32
  }
  func.func @transform_15(%arg0: i32) -> (i32, i32) {
    %c0_i32 = arith.constant 0 : i32
    %c0_i32_0 = arith.constant 0 : i32
    %c0_i32_1 = arith.constant 0 : i32
    return %c0_i32, %c0_i32_0 : i32, i32
  }
  func.func @transform_16(%arg0: i32) -> (i32, i32) {
    %c0_i32 = arith.constant 0 : i32
    %c0_i32_0 = arith.constant 0 : i32
    %c0_i32_1 = arith.constant 0 : i32
    return %c0_i32, %c0_i32_0 : i32, i32
  }
  func.func @transform_17(%arg0: i32) -> (i32, i32, i32) {
    %c0_i32 = arith.constant 0 : i32
    %c0_i32_0 = arith.constant 0 : i32
    %c0_i32_1 = arith.constant 0 : i32
    return %arg0, %c0_i32, %c0_i32_0 : i32, i32, i32
  }
}

module attributes {stable_mosaic.version = 11 : i64} {
  func.func @mha_block_kernel(%arg0: i32, %arg1: memref<1x8x32xf32, #tpu.memory_space<vmem>>, %arg2: memref<32x32xbf16, #tpu.memory_space<vmem>>, %arg3: memref<1x32xf32, #tpu.memory_space<vmem>>, %arg4: memref<32x32xbf16, #tpu.memory_space<vmem>>, %arg5: memref<1x32xf32, #tpu.memory_space<vmem>>, %arg6: memref<32x32xbf16, #tpu.memory_space<vmem>>, %arg7: memref<1x32xf32, #tpu.memory_space<vmem>>, %arg8: memref<32x32xbf16, #tpu.memory_space<vmem>>, %arg9: memref<1x32xf32, #tpu.memory_space<vmem>>, %arg10: memref<1x32xf32, #tpu.memory_space<vmem>>, %arg11: memref<1x32xf32, #tpu.memory_space<vmem>>, %arg12: memref<32x64xbf16, #tpu.memory_space<vmem>>, %arg13: memref<1x64xf32, #tpu.memory_space<vmem>>, %arg14: memref<64x32xbf16, #tpu.memory_space<vmem>>, %arg15: memref<1x32xf32, #tpu.memory_space<vmem>>, %arg16: memref<1x32xf32, #tpu.memory_space<vmem>>, %arg17: memref<1x32xf32, #tpu.memory_space<vmem>>, %arg18: memref<1x8x32xf32, #tpu.memory_space<vmem>>, %arg19: memref<8x32xbf16, #tpu.memory_space<vmem>>) attributes {dimension_semantics = [#tpu.dimension_semantics<parallel>], iteration_bounds = array<i64: 2>, scalar_prefetch = 0 : i64, scratch_operands = 1 : i64, tpu.core_type = #tpu.core_type<tc>, window_params = [{transform_indices = @transform_0, window_bounds = array<i64: 1, 8, 32>}, {pipeline_mode = #tpu.pipeline_mode<synchronous>, transform_indices = @transform_1, window_bounds = array<i64: 32, 32>}, {pipeline_mode = #tpu.pipeline_mode<synchronous>, transform_indices = @transform_2, window_bounds = array<i64: 1, 32>}, {pipeline_mode = #tpu.pipeline_mode<synchronous>, transform_indices = @transform_3, window_bounds = array<i64: 32, 32>}, {pipeline_mode = #tpu.pipeline_mode<synchronous>, transform_indices = @transform_4, window_bounds = array<i64: 1, 32>}, {pipeline_mode = #tpu.pipeline_mode<synchronous>, transform_indices = @transform_5, window_bounds = array<i64: 32, 32>}, {pipeline_mode = #tpu.pipeline_mode<synchronous>, transform_indices = @transform_6, window_bounds = array<i64: 1, 32>}, {pipeline_mode = #tpu.pipeline_mode<synchronous>, transform_indices = @transform_7, window_bounds = array<i64: 32, 32>}, {pipeline_mode = #tpu.pipeline_mode<synchronous>, transform_indices = @transform_8, window_bounds = array<i64: 1, 32>}, {pipeline_mode = #tpu.pipeline_mode<synchronous>, transform_indices = @transform_9, window_bounds = array<i64: 1, 32>}, {pipeline_mode = #tpu.pipeline_mode<synchronous>, transform_indices = @transform_10, window_bounds = array<i64: 1, 32>}, {pipeline_mode = #tpu.pipeline_mode<synchronous>, transform_indices = @transform_11, window_bounds = array<i64: 32, 64>}, {pipeline_mode = #tpu.pipeline_mode<synchronous>, transform_indices = @transform_12, window_bounds = array<i64: 1, 64>}, {pipeline_mode = #tpu.pipeline_mode<synchronous>, transform_indices = @transform_13, window_bounds = array<i64: 64, 32>}, {pipeline_mode = #tpu.pipeline_mode<synchronous>, transform_indices = @transform_14, window_bounds = array<i64: 1, 32>}, {pipeline_mode = #tpu.pipeline_mode<synchronous>, transform_indices = @transform_15, window_bounds = array<i64: 1, 32>}, {pipeline_mode = #tpu.pipeline_mode<synchronous>, transform_indices = @transform_16, window_bounds = array<i64: 1, 32>}, {transform_indices = @transform_17, window_bounds = array<i64: 1, 8, 32>}]} {
    %c0 = arith.constant 0 : index
    %c0_0 = arith.constant 0 : index
    %c0_1 = arith.constant 0 : index
    %0 = vector.load %arg1[%c0, %c0_0, %c0_1] : memref<1x8x32xf32, #tpu.memory_space<vmem>>, vector<1x8x32xf32>
    %1 = vector.shape_cast %0 : vector<1x8x32xf32> to vector<8x32xf32>
    %2 = arith.truncf %1 : vector<8x32xf32> to vector<8x32xbf16>
    %c0_2 = arith.constant 0 : index
    %c0_3 = arith.constant 0 : index
    %3 = vector.load %arg2[%c0_2, %c0_3] : memref<32x32xbf16, #tpu.memory_space<vmem>>, vector<32x32xbf16>
    %cst = arith.constant dense<0.000000e+00> : vector<8x32xf32>
    %4 = tpu.matmul %2, %3, %cst {dimension_numbers = #tpu.dot_dimension_numbers<[1], [0], [0], [1], [0, 0, 1, 1], [], []>} : vector<8x32xbf16>, vector<32x32xbf16>, vector<8x32xf32> -> vector<8x32xf32>
    %c0_4 = arith.constant 0 : index
    %c0_5 = arith.constant 0 : index
    %5 = vector.load %arg3[%c0_4, %c0_5] : memref<1x32xf32, #tpu.memory_space<vmem>>, vector<1x32xf32>
    %6 = vector.broadcast %5 : vector<1x32xf32> to vector<8x32xf32>
    %7 = arith.addf %4, %6 : vector<8x32xf32>
    %c0_6 = arith.constant 0 : index
    %c0_7 = arith.constant 0 : index
    %8 = vector.load %arg4[%c0_6, %c0_7] : memref<32x32xbf16, #tpu.memory_space<vmem>>, vector<32x32xbf16>
    %cst_8 = arith.constant dense<0.000000e+00> : vector<8x32xf32>
    %9 = tpu.matmul %2, %8, %cst_8 {dimension_numbers = #tpu.dot_dimension_numbers<[1], [0], [0], [1], [0, 0, 1, 1], [], []>} : vector<8x32xbf16>, vector<32x32xbf16>, vector<8x32xf32> -> vector<8x32xf32>
    %c0_9 = arith.constant 0 : index
    %c0_10 = arith.constant 0 : index
    %10 = vector.load %arg5[%c0_9, %c0_10] : memref<1x32xf32, #tpu.memory_space<vmem>>, vector<1x32xf32>
    %11 = vector.broadcast %10 : vector<1x32xf32> to vector<8x32xf32>
    %12 = arith.addf %9, %11 : vector<8x32xf32>
    %c0_11 = arith.constant 0 : index
    %c0_12 = arith.constant 0 : index
    %13 = vector.load %arg6[%c0_11, %c0_12] : memref<32x32xbf16, #tpu.memory_space<vmem>>, vector<32x32xbf16>
    %cst_13 = arith.constant dense<0.000000e+00> : vector<8x32xf32>
    %14 = tpu.matmul %2, %13, %cst_13 {dimension_numbers = #tpu.dot_dimension_numbers<[1], [0], [0], [1], [0, 0, 1, 1], [], []>} : vector<8x32xbf16>, vector<32x32xbf16>, vector<8x32xf32> -> vector<8x32xf32>
    %c0_14 = arith.constant 0 : index
    %c0_15 = arith.constant 0 : index
    %15 = vector.load %arg7[%c0_14, %c0_15] : memref<1x32xf32, #tpu.memory_space<vmem>>, vector<1x32xf32>
    %16 = vector.broadcast %15 : vector<1x32xf32> to vector<8x32xf32>
    %17 = arith.addf %14, %16 : vector<8x32xf32>
    %cst_16 = arith.constant 0.176776692 : f32
    %18 = vector.broadcast %cst_16 : f32 to vector<8x32xf32>
    %19 = arith.mulf %7, %18 : vector<8x32xf32>
    %20 = arith.truncf %19 : vector<8x32xf32> to vector<8x32xbf16>
    %21 = arith.truncf %12 : vector<8x32xf32> to vector<8x32xbf16>
    %22 = arith.truncf %17 : vector<8x32xf32> to vector<8x32xbf16>
    %23 = vector.extract_strided_slice %20 {offsets = [0, 0], sizes = [8, 8], strides = [1, 1]} : vector<8x32xbf16> to vector<8x8xbf16>
    %24 = vector.shape_cast %23 : vector<8x8xbf16> to vector<1x8x8xbf16>
    %25 = vector.extract_strided_slice %21 {offsets = [0, 0], sizes = [8, 8], strides = [1, 1]} : vector<8x32xbf16> to vector<8x8xbf16>
    %26 = vector.shape_cast %25 : vector<8x8xbf16> to vector<1x8x8xbf16>
    %27 = vector.extract_strided_slice %22 {offsets = [0, 0], sizes = [8, 8], strides = [1, 1]} : vector<8x32xbf16> to vector<8x8xbf16>
    %28 = vector.shape_cast %27 : vector<8x8xbf16> to vector<1x8x8xbf16>
    %cst_17 = arith.constant dense<0.000000e+00> : vector<1x8x8xf32>
    %29 = tpu.matmul %24, %26, %cst_17 {dimension_numbers = #tpu.dot_dimension_numbers<[2], [2], [1], [1], [0, 0, 0, 1, 1, 1], [0], [0]>} : vector<1x8x8xbf16>, vector<1x8x8xbf16>, vector<1x8x8xf32> -> vector<1x8x8xf32>
    %cst_18 = arith.constant dense<0xFF800000> : vector<1x8xf32>
    %30 = vector.multi_reduction <maximumf>, %29, %cst_18 [1] : vector<1x8x8xf32> to vector<1x8xf32>
    %31 = vector.shape_cast %30 : vector<1x8xf32> to vector<1x1x8xf32>
    %32 = vector.broadcast %31 : vector<1x1x8xf32> to vector<1x8x8xf32>
    %33 = arith.subf %29, %32 : vector<1x8x8xf32>
    %34 = math.exp %33 : vector<1x8x8xf32>
    %cst_19 = arith.constant dense<0.000000e+00> : vector<1x8xf32>
    %35 = vector.multi_reduction <add>, %34, %cst_19 [1] : vector<1x8x8xf32> to vector<1x8xf32>
    %36 = vector.shape_cast %35 : vector<1x8xf32> to vector<1x1x8xf32>
    %37 = tpu.reciprocal %36 {approx = true} : vector<1x1x8xf32> -> vector<1x1x8xf32>
    %38 = vector.broadcast %37 : vector<1x1x8xf32> to vector<1x8x8xf32>
    %39 = arith.mulf %34, %38 : vector<1x8x8xf32>
    %40 = arith.truncf %39 : vector<1x8x8xf32> to vector<1x8x8xbf16>
    %cst_20 = arith.constant dense<0.000000e+00> : vector<1x8x8xf32>
    %41 = tpu.matmul %40, %28, %cst_20 {dimension_numbers = #tpu.dot_dimension_numbers<[2], [1], [1], [2], [0, 0, 0, 1, 1, 2], [0], [0]>} : vector<1x8x8xbf16>, vector<1x8x8xbf16>, vector<1x8x8xf32> -> vector<1x8x8xf32>
    %42 = vector.shape_cast %41 : vector<1x8x8xf32> to vector<8x8xf32>
    %43 = arith.truncf %42 : vector<8x8xf32> to vector<8x8xbf16>
    %c0_21 = arith.constant 0 : index
    %c0_22 = arith.constant 0 : index
    %44 = vector.load %arg19[%c0_21, %c0_22] : memref<8x32xbf16, #tpu.memory_space<vmem>>, vector<8x8xbf16>
    tpu.vector_store %arg19[%c0_21, %c0_22], %43 {strides = array<i32>} : memref<8x32xbf16, #tpu.memory_space<vmem>>, vector<8x8xbf16>,
    %45 = vector.extract_strided_slice %20 {offsets = [0, 8], sizes = [8, 8], strides = [1, 1]} : vector<8x32xbf16> to vector<8x8xbf16>
    %46 = vector.shape_cast %45 : vector<8x8xbf16> to vector<1x8x8xbf16>
    %47 = vector.extract_strided_slice %21 {offsets = [0, 8], sizes = [8, 8], strides = [1, 1]} : vector<8x32xbf16> to vector<8x8xbf16>
    %48 = vector.shape_cast %47 : vector<8x8xbf16> to vector<1x8x8xbf16>
    %49 = vector.extract_strided_slice %22 {offsets = [0, 8], sizes = [8, 8], strides = [1, 1]} : vector<8x32xbf16> to vector<8x8xbf16>
    %50 = vector.shape_cast %49 : vector<8x8xbf16> to vector<1x8x8xbf16>
    %cst_23 = arith.constant dense<0.000000e+00> : vector<1x8x8xf32>
    %51 = tpu.matmul %46, %48, %cst_23 {dimension_numbers = #tpu.dot_dimension_numbers<[2], [2], [1], [1], [0, 0, 0, 1, 1, 1], [0], [0]>} : vector<1x8x8xbf16>, vector<1x8x8xbf16>, vector<1x8x8xf32> -> vector<1x8x8xf32>
    %cst_24 = arith.constant dense<0xFF800000> : vector<1x8xf32>
    %52 = vector.multi_reduction <maximumf>, %51, %cst_24 [1] : vector<1x8x8xf32> to vector<1x8xf32>
    %53 = vector.shape_cast %52 : vector<1x8xf32> to vector<1x1x8xf32>
    %54 = vector.broadcast %53 : vector<1x1x8xf32> to vector<1x8x8xf32>
    %55 = arith.subf %51, %54 : vector<1x8x8xf32>
    %56 = math.exp %55 : vector<1x8x8xf32>
    %cst_25 = arith.constant dense<0.000000e+00> : vector<1x8xf32>
    %57 = vector.multi_reduction <add>, %56, %cst_25 [1] : vector<1x8x8xf32> to vector<1x8xf32>
    %58 = vector.shape_cast %57 : vector<1x8xf32> to vector<1x1x8xf32>
    %59 = tpu.reciprocal %58 {approx = true} : vector<1x1x8xf32> -> vector<1x1x8xf32>
    %60 = vector.broadcast %59 : vector<1x1x8xf32> to vector<1x8x8xf32>
    %61 = arith.mulf %56, %60 : vector<1x8x8xf32>
    %62 = arith.truncf %61 : vector<1x8x8xf32> to vector<1x8x8xbf16>
    %cst_26 = arith.constant dense<0.000000e+00> : vector<1x8x8xf32>
    %63 = tpu.matmul %62, %50, %cst_26 {dimension_numbers = #tpu.dot_dimension_numbers<[2], [1], [1], [2], [0, 0, 0, 1, 1, 2], [0], [0]>} : vector<1x8x8xbf16>, vector<1x8x8xbf16>, vector<1x8x8xf32> -> vector<1x8x8xf32>
    %64 = vector.shape_cast %63 : vector<1x8x8xf32> to vector<8x8xf32>
    %65 = arith.truncf %64 : vector<8x8xf32> to vector<8x8xbf16>
    %c0_27 = arith.constant 0 : index
    %c8 = arith.constant 8 : index
    %66 = vector.load %arg19[%c0_27, %c8] : memref<8x32xbf16, #tpu.memory_space<vmem>>, vector<8x8xbf16>
    tpu.vector_store %arg19[%c0_27, %c8], %65 {strides = array<i32>} : memref<8x32xbf16, #tpu.memory_space<vmem>>, vector<8x8xbf16>,
    %67 = vector.extract_strided_slice %20 {offsets = [0, 16], sizes = [8, 8], strides = [1, 1]} : vector<8x32xbf16> to vector<8x8xbf16>
    %68 = vector.shape_cast %67 : vector<8x8xbf16> to vector<1x8x8xbf16>
    %69 = vector.extract_strided_slice %21 {offsets = [0, 16], sizes = [8, 8], strides = [1, 1]} : vector<8x32xbf16> to vector<8x8xbf16>
    %70 = vector.shape_cast %69 : vector<8x8xbf16> to vector<1x8x8xbf16>
    %71 = vector.extract_strided_slice %22 {offsets = [0, 16], sizes = [8, 8], strides = [1, 1]} : vector<8x32xbf16> to vector<8x8xbf16>
    %72 = vector.shape_cast %71 : vector<8x8xbf16> to vector<1x8x8xbf16>
    %cst_28 = arith.constant dense<0.000000e+00> : vector<1x8x8xf32>
    %73 = tpu.matmul %68, %70, %cst_28 {dimension_numbers = #tpu.dot_dimension_numbers<[2], [2], [1], [1], [0, 0, 0, 1, 1, 1], [0], [0]>} : vector<1x8x8xbf16>, vector<1x8x8xbf16>, vector<1x8x8xf32> -> vector<1x8x8xf32>
    %cst_29 = arith.constant dense<0xFF800000> : vector<1x8xf32>
    %74 = vector.multi_reduction <maximumf>, %73, %cst_29 [1] : vector<1x8x8xf32> to vector<1x8xf32>
    %75 = vector.shape_cast %74 : vector<1x8xf32> to vector<1x1x8xf32>
    %76 = vector.broadcast %75 : vector<1x1x8xf32> to vector<1x8x8xf32>
    %77 = arith.subf %73, %76 : vector<1x8x8xf32>
    %78 = math.exp %77 : vector<1x8x8xf32>
    %cst_30 = arith.constant dense<0.000000e+00> : vector<1x8xf32>
    %79 = vector.multi_reduction <add>, %78, %cst_30 [1] : vector<1x8x8xf32> to vector<1x8xf32>
    %80 = vector.shape_cast %79 : vector<1x8xf32> to vector<1x1x8xf32>
    %81 = tpu.reciprocal %80 {approx = true} : vector<1x1x8xf32> -> vector<1x1x8xf32>
    %82 = vector.broadcast %81 : vector<1x1x8xf32> to vector<1x8x8xf32>
    %83 = arith.mulf %78, %82 : vector<1x8x8xf32>
    %84 = arith.truncf %83 : vector<1x8x8xf32> to vector<1x8x8xbf16>
    %cst_31 = arith.constant dense<0.000000e+00> : vector<1x8x8xf32>
    %85 = tpu.matmul %84, %72, %cst_31 {dimension_numbers = #tpu.dot_dimension_numbers<[2], [1], [1], [2], [0, 0, 0, 1, 1, 2], [0], [0]>} : vector<1x8x8xbf16>, vector<1x8x8xbf16>, vector<1x8x8xf32> -> vector<1x8x8xf32>
    %86 = vector.shape_cast %85 : vector<1x8x8xf32> to vector<8x8xf32>
    %87 = arith.truncf %86 : vector<8x8xf32> to vector<8x8xbf16>
    %c0_32 = arith.constant 0 : index
    %c16 = arith.constant 16 : index
    %88 = vector.load %arg19[%c0_32, %c16] : memref<8x32xbf16, #tpu.memory_space<vmem>>, vector<8x8xbf16>
    tpu.vector_store %arg19[%c0_32, %c16], %87 {strides = array<i32>} : memref<8x32xbf16, #tpu.memory_space<vmem>>, vector<8x8xbf16>,
    %89 = vector.extract_strided_slice %20 {offsets = [0, 24], sizes = [8, 8], strides = [1, 1]} : vector<8x32xbf16> to vector<8x8xbf16>
    %90 = vector.shape_cast %89 : vector<8x8xbf16> to vector<1x8x8xbf16>
    %91 = vector.extract_strided_slice %21 {offsets = [0, 24], sizes = [8, 8], strides = [1, 1]} : vector<8x32xbf16> to vector<8x8xbf16>
    %92 = vector.shape_cast %91 : vector<8x8xbf16> to vector<1x8x8xbf16>
    %93 = vector.extract_strided_slice %22 {offsets = [0, 24], sizes = [8, 8], strides = [1, 1]} : vector<8x32xbf16> to vector<8x8xbf16>
    %94 = vector.shape_cast %93 : vector<8x8xbf16> to vector<1x8x8xbf16>
    %cst_33 = arith.constant dense<0.000000e+00> : vector<1x8x8xf32>
    %95 = tpu.matmul %90, %92, %cst_33 {dimension_numbers = #tpu.dot_dimension_numbers<[2], [2], [1], [1], [0, 0, 0, 1, 1, 1], [0], [0]>} : vector<1x8x8xbf16>, vector<1x8x8xbf16>, vector<1x8x8xf32> -> vector<1x8x8xf32>
    %cst_34 = arith.constant dense<0xFF800000> : vector<1x8xf32>
    %96 = vector.multi_reduction <maximumf>, %95, %cst_34 [1] : vector<1x8x8xf32> to vector<1x8xf32>
    %97 = vector.shape_cast %96 : vector<1x8xf32> to vector<1x1x8xf32>
    %98 = vector.broadcast %97 : vector<1x1x8xf32> to vector<1x8x8xf32>
    %99 = arith.subf %95, %98 : vector<1x8x8xf32>
    %100 = math.exp %99 : vector<1x8x8xf32>
    %cst_35 = arith.constant dense<0.000000e+00> : vector<1x8xf32>
    %101 = vector.multi_reduction <add>, %100, %cst_35 [1] : vector<1x8x8xf32> to vector<1x8xf32>
    %102 = vector.shape_cast %101 : vector<1x8xf32> to vector<1x1x8xf32>
    %103 = tpu.reciprocal %102 {approx = true} : vector<1x1x8xf32> -> vector<1x1x8xf32>
    %104 = vector.broadcast %103 : vector<1x1x8xf32> to vector<1x8x8xf32>
    %105 = arith.mulf %100, %104 : vector<1x8x8xf32>
    %106 = arith.truncf %105 : vector<1x8x8xf32> to vector<1x8x8xbf16>
    %cst_36 = arith.constant dense<0.000000e+00> : vector<1x8x8xf32>
    %107 = tpu.matmul %106, %94, %cst_36 {dimension_numbers = #tpu.dot_dimension_numbers<[2], [1], [1], [2], [0, 0, 0, 1, 1, 2], [0], [0]>} : vector<1x8x8xbf16>, vector<1x8x8xbf16>, vector<1x8x8xf32> -> vector<1x8x8xf32>
    %108 = vector.shape_cast %107 : vector<1x8x8xf32> to vector<8x8xf32>
    %109 = arith.truncf %108 : vector<8x8xf32> to vector<8x8xbf16>
    %c0_37 = arith.constant 0 : index
    %c24 = arith.constant 24 : index
    %110 = vector.load %arg19[%c0_37, %c24] : memref<8x32xbf16, #tpu.memory_space<vmem>>, vector<8x8xbf16>
    tpu.vector_store %arg19[%c0_37, %c24], %109 {strides = array<i32>} : memref<8x32xbf16, #tpu.memory_space<vmem>>, vector<8x8xbf16>,
    %c0_38 = arith.constant 0 : index
    %c0_39 = arith.constant 0 : index
    %111 = vector.load %arg19[%c0_38, %c0_39] : memref<8x32xbf16, #tpu.memory_space<vmem>>, vector<8x32xbf16>
    %c0_40 = arith.constant 0 : index
    %c0_41 = arith.constant 0 : index
    %112 = vector.load %arg8[%c0_40, %c0_41] : memref<32x32xbf16, #tpu.memory_space<vmem>>, vector<32x32xbf16>
    %cst_42 = arith.constant dense<0.000000e+00> : vector<8x32xf32>
    %113 = tpu.matmul %111, %112, %cst_42 {dimension_numbers = #tpu.dot_dimension_numbers<[1], [0], [0], [1], [0, 0, 1, 1], [], []>} : vector<8x32xbf16>, vector<32x32xbf16>, vector<8x32xf32> -> vector<8x32xf32>
    %c0_43 = arith.constant 0 : index
    %c0_44 = arith.constant 0 : index
    %114 = vector.load %arg9[%c0_43, %c0_44] : memref<1x32xf32, #tpu.memory_space<vmem>>, vector<1x32xf32>
    %115 = vector.broadcast %114 : vector<1x32xf32> to vector<8x32xf32>
    %116 = arith.addf %113, %115 : vector<8x32xf32>
    %117 = arith.addf %116, %1 : vector<8x32xf32>
    %cst_45 = arith.constant dense<0.000000e+00> : vector<8xf32>
    %118 = vector.multi_reduction <add>, %117, %cst_45 [1] : vector<8x32xf32> to vector<8xf32>
    %119 = vector.shape_cast %118 : vector<8xf32> to vector<8x1xf32>
    %cst_46 = arith.constant 3.200000e+01 : f32
    %120 = vector.broadcast %cst_46 : f32 to vector<8x1xf32>
    %121 = arith.divf %119, %120 : vector<8x1xf32>
    %122 = arith.mulf %117, %117 : vector<8x32xf32>
    %cst_47 = arith.constant dense<0.000000e+00> : vector<8xf32>
    %123 = vector.multi_reduction <add>, %122, %cst_47 [1] : vector<8x32xf32> to vector<8xf32>
    %124 = vector.shape_cast %123 : vector<8xf32> to vector<8x1xf32>
    %cst_48 = arith.constant 3.200000e+01 : f32
    %125 = vector.broadcast %cst_48 : f32 to vector<8x1xf32>
    %126 = arith.divf %124, %125 : vector<8x1xf32>
    %127 = arith.mulf %121, %121 : vector<8x1xf32>
    %128 = arith.subf %126, %127 : vector<8x1xf32>
    %129 = vector.broadcast %121 : vector<8x1xf32> to vector<8x32xf32>
    %130 = arith.subf %117, %129 : vector<8x32xf32>
    %cst_49 = arith.constant 9.99999974E-6 : f32
    %131 = vector.broadcast %cst_49 : f32 to vector<8x1xf32>
    %132 = arith.addf %128, %131 : vector<8x1xf32>
    %133 = math.rsqrt %132 : vector<8x1xf32>
    %134 = vector.broadcast %133 : vector<8x1xf32> to vector<8x32xf32>
    %135 = arith.mulf %130, %134 : vector<8x32xf32>
    %c0_50 = arith.constant 0 : index
    %c0_51 = arith.constant 0 : index
    %136 = vector.load %arg10[%c0_50, %c0_51] : memref<1x32xf32, #tpu.memory_space<vmem>>, vector<1x32xf32>
    %137 = vector.broadcast %136 : vector<1x32xf32> to vector<8x32xf32>
    %138 = arith.mulf %135, %137 : vector<8x32xf32>
    %c0_52 = arith.constant 0 : index
    %c0_53 = arith.constant 0 : index
    %139 = vector.load %arg11[%c0_52, %c0_53] : memref<1x32xf32, #tpu.memory_space<vmem>>, vector<1x32xf32>
    %140 = vector.broadcast %139 : vector<1x32xf32> to vector<8x32xf32>
    %141 = arith.addf %138, %140 : vector<8x32xf32>
    %142 = arith.truncf %141 : vector<8x32xf32> to vector<8x32xbf16>
    %c0_54 = arith.constant 0 : index
    %c0_55 = arith.constant 0 : index
    %143 = vector.load %arg15[%c0_54, %c0_55] : memref<1x32xf32, #tpu.memory_space<vmem>>, vector<1x32xf32>
    %144 = vector.shape_cast %143 : vector<1x32xf32> to vector<1x32xf32>
    %145 = vector.broadcast %144 : vector<1x32xf32> to vector<8x32xf32>
    %c0_56 = arith.constant 0 : index
    %c0_57 = arith.constant 0 : index
    %146 = vector.load %arg12[%c0_56, %c0_57] : memref<32x64xbf16, #tpu.memory_space<vmem>>, vector<32x64xbf16>
    %cst_58 = arith.constant dense<0.000000e+00> : vector<8x64xf32>
    %147 = tpu.matmul %142, %146, %cst_58 {dimension_numbers = #tpu.dot_dimension_numbers<[1], [0], [0], [1], [0, 0, 1, 1], [], []>} : vector<8x32xbf16>, vector<32x64xbf16>, vector<8x64xf32> -> vector<8x64xf32>
    %c0_59 = arith.constant 0 : index
    %c0_60 = arith.constant 0 : index
    %148 = vector.load %arg13[%c0_59, %c0_60] : memref<1x64xf32, #tpu.memory_space<vmem>>, vector<1x64xf32>
    %149 = vector.broadcast %148 : vector<1x64xf32> to vector<8x64xf32>
    %150 = arith.addf %147, %149 : vector<8x64xf32>
    %cst_61 = arith.constant 0.000000e+00 : f32
    %151 = vector.broadcast %cst_61 : f32 to vector<8x64xf32>
    %152 = arith.maximumf %150, %151 : vector<8x64xf32>
    %153 = arith.truncf %152 : vector<8x64xf32> to vector<8x64xbf16>
    %c0_62 = arith.constant 0 : index
    %c0_63 = arith.constant 0 : index
    %154 = vector.load %arg14[%c0_62, %c0_63] : memref<64x32xbf16, #tpu.memory_space<vmem>>, vector<64x32xbf16>
    %cst_64 = arith.constant dense<0.000000e+00> : vector<8x32xf32>
    %155 = tpu.matmul %153, %154, %cst_64 {dimension_numbers = #tpu.dot_dimension_numbers<[1], [0], [0], [1], [0, 0, 1, 1], [], []>} : vector<8x64xbf16>, vector<64x32xbf16>, vector<8x32xf32> -> vector<8x32xf32>
    %156 = arith.addf %145, %155 : vector<8x32xf32>
    %157 = arith.addf %141, %156 : vector<8x32xf32>
    %cst_65 = arith.constant dense<0.000000e+00> : vector<8xf32>
    %158 = vector.multi_reduction <add>, %157, %cst_65 [1] : vector<8x32xf32> to vector<8xf32>
    %159 = vector.shape_cast %158 : vector<8xf32> to vector<8x1xf32>
    %cst_66 = arith.constant 3.200000e+01 : f32
    %160 = vector.broadcast %cst_66 : f32 to vector<8x1xf32>
    %161 = arith.divf %159, %160 : vector<8x1xf32>
    %162 = arith.mulf %157, %157 : vector<8x32xf32>
    %cst_67 = arith.constant dense<0.000000e+00> : vector<8xf32>
    %163 = vector.multi_reduction <add>, %162, %cst_67 [1] : vector<8x32xf32> to vector<8xf32>
    %164 = vector.shape_cast %163 : vector<8xf32> to vector<8x1xf32>
    %cst_68 = arith.constant 3.200000e+01 : f32
    %165 = vector.broadcast %cst_68 : f32 to vector<8x1xf32>
    %166 = arith.divf %164, %165 : vector<8x1xf32>
    %167 = arith.mulf %161, %161 : vector<8x1xf32>
    %168 = arith.subf %166, %167 : vector<8x1xf32>
    %169 = vector.broadcast %161 : vector<8x1xf32> to vector<8x32xf32>
    %170 = arith.subf %157, %169 : vector<8x32xf32>
    %cst_69 = arith.constant 9.99999974E-6 : f32
    %171 = vector.broadcast %cst_69 : f32 to vector<8x1xf32>
    %172 = arith.addf %168, %171 : vector<8x1xf32>
    %173 = math.rsqrt %172 : vector<8x1xf32>
    %174 = vector.broadcast %173 : vector<8x1xf32> to vector<8x32xf32>
    %175 = arith.mulf %170, %174 : vector<8x32xf32>
    %c0_70 = arith.constant 0 : index
    %c0_71 = arith.constant 0 : index
    %176 = vector.load %arg16[%c0_70, %c0_71] : memref<1x32xf32, #tpu.memory_space<vmem>>, vector<1x32xf32>
    %177 = vector.broadcast %176 : vector<1x32xf32> to vector<8x32xf32>
    %178 = arith.mulf %175, %177 : vector<8x32xf32>
    %c0_72 = arith.constant 0 : index
    %c0_73 = arith.constant 0 : index
    %179 = vector.load %arg17[%c0_72, %c0_73] : memref<1x32xf32, #tpu.memory_space<vmem>>, vector<1x32xf32>
    %180 = vector.broadcast %179 : vector<1x32xf32> to vector<8x32xf32>
    %181 = arith.addf %178, %180 : vector<8x32xf32>
    %182 = vector.shape_cast %181 : vector<8x32xf32> to vector<1x8x32xf32>
    %c0_74 = arith.constant 0 : index
    %c0_75 = arith.constant 0 : index
    %c0_76 = arith.constant 0 : index
    %183 = vector.load %arg18[%c0_74, %c0_75, %c0_76] : memref<1x8x32xf32, #tpu.memory_space<vmem>>, vector<1x8x32xf32>
    tpu.vector_store %arg18[%c0_74, %c0_75, %c0_76], %182 {strides = array<i32>} : memref<1x8x32xf32, #tpu.memory_space<vmem>>, vector<1x8x32xf32>,
    return
  }
  func.func @transform_0(%arg0: i32) -> (i32, i32, i32) {
    %c0_i32 = arith.constant 0 : i32
    %c0_i32_0 = arith.constant 0 : i32
    %c0_i32_1 = arith.constant 0 : i32
    return %arg0, %c0_i32, %c0_i32_0 : i32, i32, i32
  }
  func.func @transform_1(%arg0: i32) -> (i32, i32) {
    %c0_i32 = arith.constant 0 : i32
    %c0_i32_0 = arith.constant 0 : i32
    %c0_i32_1 = arith.constant 0 : i32
    return %c0_i32, %c0_i32_0 : i32, i32
  }
  func.func @transform_2(%arg0: i32) -> (i32, i32) {
    %c0_i32 = arith.constant 0 : i32
    %c0_i32_0 = arith.constant 0 : i32
    %c0_i32_1 = arith.constant 0 : i32
    return %c0_i32, %c0_i32_0 : i32, i32
  }
  func.func @transform_3(%arg0: i32) -> (i32, i32) {
    %c0_i32 = arith.constant 0 : i32
    %c0_i32_0 = arith.constant 0 : i32
    %c0_i32_1 = arith.constant 0 : i32
    return %c0_i32, %c0_i32_0 : i32, i32
  }
  func.func @transform_4(%arg0: i32) -> (i32, i32) {
    %c0_i32 = arith.constant 0 : i32
    %c0_i32_0 = arith.constant 0 : i32
    %c0_i32_1 = arith.constant 0 : i32
    return %c0_i32, %c0_i32_0 : i32, i32
  }
  func.func @transform_5(%arg0: i32) -> (i32, i32) {
    %c0_i32 = arith.constant 0 : i32
    %c0_i32_0 = arith.constant 0 : i32
    %c0_i32_1 = arith.constant 0 : i32
    return %c0_i32, %c0_i32_0 : i32, i32
  }
  func.func @transform_6(%arg0: i32) -> (i32, i32) {
    %c0_i32 = arith.constant 0 : i32
    %c0_i32_0 = arith.constant 0 : i32
    %c0_i32_1 = arith.constant 0 : i32
    return %c0_i32, %c0_i32_0 : i32, i32
  }
  func.func @transform_7(%arg0: i32) -> (i32, i32) {
    %c0_i32 = arith.constant 0 : i32
    %c0_i32_0 = arith.constant 0 : i32
    %c0_i32_1 = arith.constant 0 : i32
    return %c0_i32, %c0_i32_0 : i32, i32
  }
  func.func @transform_8(%arg0: i32) -> (i32, i32) {
    %c0_i32 = arith.constant 0 : i32
    %c0_i32_0 = arith.constant 0 : i32
    %c0_i32_1 = arith.constant 0 : i32
    return %c0_i32, %c0_i32_0 : i32, i32
  }
  func.func @transform_9(%arg0: i32) -> (i32, i32) {
    %c0_i32 = arith.constant 0 : i32
    %c0_i32_0 = arith.constant 0 : i32
    %c0_i32_1 = arith.constant 0 : i32
    return %c0_i32, %c0_i32_0 : i32, i32
  }
  func.func @transform_10(%arg0: i32) -> (i32, i32) {
    %c0_i32 = arith.constant 0 : i32
    %c0_i32_0 = arith.constant 0 : i32
    %c0_i32_1 = arith.constant 0 : i32
    return %c0_i32, %c0_i32_0 : i32, i32
  }
  func.func @transform_11(%arg0: i32) -> (i32, i32) {
    %c0_i32 = arith.constant 0 : i32
    %c0_i32_0 = arith.constant 0 : i32
    %c0_i32_1 = arith.constant 0 : i32
    return %c0_i32, %c0_i32_0 : i32, i32
  }
  func.func @transform_12(%arg0: i32) -> (i32, i32) {
    %c0_i32 = arith.constant 0 : i32
    %c0_i32_0 = arith.constant 0 : i32
    %c0_i32_1 = arith.constant 0 : i32
    return %c0_i32, %c0_i32_0 : i32, i32
  }
  func.func @transform_13(%arg0: i32) -> (i32, i32) {
    %c0_i32 = arith.constant 0 : i32
    %c0_i32_0 = arith.constant 0 : i32
    %c0_i32_1 = arith.constant 0 : i32
    return %c0_i32, %c0_i32_0 : i32, i32
  }
  func.func @transform_14(%arg0: i32) -> (i32, i32) {
    %c0_i32 = arith.constant 0 : i32
    %c0_i32_0 = arith.constant 0 : i32
    %c0_i32_1 = arith.constant 0 : i32
    return %c0_i32, %c0_i32_0 : i32, i32
  }
  func.func @transform_15(%arg0: i32) -> (i32, i32) {
    %c0_i32 = arith.constant 0 : i32
    %c0_i32_0 = arith.constant 0 : i32
    %c0_i32_1 = arith.constant 0 : i32
    return %c0_i32, %c0_i32_0 : i32, i32
  }
  func.func @transform_16(%arg0: i32) -> (i32, i32) {
    %c0_i32 = arith.constant 0 : i32
    %c0_i32_0 = arith.constant 0 : i32
    %c0_i32_1 = arith.constant 0 : i32
    return %c0_i32, %c0_i32_0 : i32, i32
  }
  func.func @transform_17(%arg0: i32) -> (i32, i32, i32) {
    %c0_i32 = arith.constant 0 : i32
    %c0_i32_0 = arith.constant 0 : i32
    %c0_i32_1 = arith.constant 0 : i32
    return %arg0, %c0_i32, %c0_i32_0 : i32, i32, i32
  }
}

</mosaic_0001>

<llo_original>
// kernel: tpu_custom_call.1
$region0: #{tpu_custom_call.1}
  #allocation0 [shape = 'u32[]', space=smem, size = 0x4, offset = 0x4, fixed_abs, tag = 'smem constant byte address 0x4 - core index']
  #allocation1 [shape = 'u32[144,128]{1,0:T(1,128)}', space=vmem, size = 0x12000, scoped, tag = 'internal scratch']
  #allocation2 [shape = 'bf16[8,32]{1,0:T(8,128)(2,1)}', space=vmem, size = 0x800, scoped, tag = 'scratch operand']
  %s0 = inlined_call_operand.vmem [shape: f32[2,8,32], index: 0, kind: input, shape index: {}]
  %s1 = inlined_call_operand.vmem [shape: bf16[32,32], index: 1, kind: input, shape index: {}]
  %s2 = inlined_call_operand.vmem [shape: f32[1,32], index: 2, kind: input, shape index: {}]
  %s3 = inlined_call_operand.vmem [shape: bf16[32,32], index: 3, kind: input, shape index: {}]
  %s4 = inlined_call_operand.vmem [shape: f32[1,32], index: 4, kind: input, shape index: {}]
  %s5 = inlined_call_operand.hbm [shape: bf16[32,32], index: 5, kind: input, shape index: {}]
  %s6 = inlined_call_operand.hbm [shape: f32[1,32], index: 6, kind: input, shape index: {}]
  %s7 = inlined_call_operand.hbm [shape: bf16[32,32], index: 7, kind: input, shape index: {}]
  %s8 = inlined_call_operand.hbm [shape: f32[1,32], index: 8, kind: input, shape index: {}]
  %s9 = inlined_call_operand.hbm [shape: f32[1,32], index: 9, kind: input, shape index: {}]
  %s10 = inlined_call_operand.vmem [shape: f32[1,32], index: 10, kind: input, shape index: {}]
  %s11 = inlined_call_operand.vmem [shape: bf16[32,64], index: 11, kind: input, shape index: {}]
  %s12 = inlined_call_operand.vmem [shape: f32[1,64], index: 12, kind: input, shape index: {}]
  %s13 = inlined_call_operand.vmem [shape: bf16[64,32], index: 13, kind: input, shape index: {}]
  %s14 = inlined_call_operand.vmem [shape: f32[1,32], index: 14, kind: input, shape index: {}]
  %s15 = inlined_call_operand.vmem [shape: f32[1,32], index: 15, kind: input, shape index: {}]
  %s16 = inlined_call_operand.vmem [shape: f32[1,32], index: 16, kind: input, shape index: {}]
  %s17 = inlined_call_operand.hbm [shape: f32[2,8,32], index: 17, kind: output, shape index: {}]
  %s18 = sld [smem:[#allocation0]]
  $region121: #{tpu_custom_call.1} parent=0
    _
  %s20 = ssub.s32 1, %s18
  %s21 = scalar_select 0, %s20, %s18
  $region1: #{tpu_custom_call.1} parent=0
    #allocation3 [shape = 'u8[8192]{0}', space=vmem, size = 0x2000, scoped, tag = 'input window, operand 5, single buffered']
    #allocation4 [shape = 's32[2]{0}', space=sflag, size = 0x8, scoped, tag = 'scoped memory for tpu_custom_call.1']
    #allocation5 [shape = 's32[2]{0}', space=sflag, size = 0x8, scoped, tag = 'scoped memory for tpu_custom_call.1']
    #allocation6 [shape = 'u8[512]{0}', space=vmem, size = 0x400, scoped, tag = 'input window, operand 6, single buffered']
    #allocation7 [shape = 's32[1]{0}', space=sflag, size = 0x4, scoped, tag = 'scoped memory for tpu_custom_call.1']
    #allocation8 [shape = 'u8[8192]{0}', space=vmem, size = 0x2000, scoped, tag = 'input window, operand 7, single buffered']
    #allocation9 [shape = 'u8[512]{0}', space=vmem, size = 0x400, scoped, tag = 'input window, operand 8, single buffered']
    #allocation10 [shape = 's32[1]{0}', space=sflag, size = 0x4, scoped, tag = 'scoped memory for tpu_custom_call.1']
    #allocation11 [shape = 'u8[512]{0}', space=vmem, size = 0x400, scoped, tag = 'input window, operand 9, single buffered']
    #allocation12 [shape = 'u8[8192]{0}', space=vmem, size = 0x2000, scoped, tag = 'output window, operand 0']
    %22 = vsyncpa [#allocation4], 0
    %23 = vsyncpa [#allocation7], 0
    %24 = vsyncpa [#allocation10], 0
    %25 = vsyncpa [#allocation5], 0
    %s26 = scalar_lea.sflag [#allocation5], 1
    %27 = vsyncpa %s26, 0
    loop: start=0, step=1, limit=4
    $region2: #{tpu_custom_call.1} parent=1 // loop_pre_header
      _
    $region3: #{tpu_custom_call.1} parent=1 // loop_header
      %s29 = sphi 0, %s33
      %p30 = scmp.ge.s32.totalorder %s29, 4
      %s39 = sphi 0, %s41
      %s42 = sphi 0, %s39
      %s43 = sphi 0, %s42
      %s59 = sphi 0, %s43
      %s63 = sphi 0, %s63
      %s65 = sphi 0, %s63
      %s66 = sphi 0, %s65
      %s80 = sphi 0, %s66
      %s84 = sphi 0, %s84
      %s86 = sphi 0, %s84
      %s87 = sphi 0, %s86
      %s101 = sphi 0, %s87
      %s105 = sphi 0, %s105
      %s107 = sphi 0, %s105
      %s108 = sphi 0, %s107
      %s122 = sphi 0, %s108
      %s126 = sphi 0, %s126
      %s128 = sphi 0, %s126
      %s129 = sphi 0, %s128
      %s143 = sphi 0, %s129
      %s147 = sphi 0, %s147
      %s149 = sphi 0, %s147
      %s150 = sphi 0, %s149
      %s164 = sphi 0, %s150
      %s168 = sphi 0, %s168
      %s170 = sphi 0, %s168
      %s171 = sphi 0, %s170
      %s185 = sphi 0, %s171
      %s189 = sphi 0, %s189
      %s191 = sphi 0, %s189
      %s192 = sphi 0, %s191
      %s206 = sphi 0, %s192
      %s210 = sphi 0, %s210
      %s212 = sphi 0, %s210
      %s213 = sphi 0, %s212
      %s227 = sphi 0, %s213
      %s231 = sphi 0, %s231
      %s233 = sphi 0, %s231
      %s234 = sphi 0, %s233
      %s248 = sphi 0, %s234
      %s252 = sphi 0, %s252
      %s254 = sphi 0, %s252
      %s255 = sphi 0, %s254
      %s269 = sphi 0, %s255
      %s273 = sphi 0, %s273
      %s275 = sphi 0, %s273
      %s276 = sphi 0, %s275
      %s290 = sphi 0, %s276
      %s294 = sphi 0, %s294
      %s296 = sphi 0, %s294
      %s297 = sphi 0, %s296
      %s311 = sphi 0, %s297
      %s315 = sphi 0, %s315
      %s317 = sphi 0, %s315
      %s318 = sphi 0, %s317
      %s332 = sphi 0, %s318
      %s336 = sphi 0, %s336
      %s338 = sphi 0, %s336
      %s339 = sphi 0, %s338
      %s353 = sphi 0, %s339
      %s357 = sphi 0, %s357
      %s359 = sphi 0, %s357
      %s360 = sphi 0, %s359
      %s374 = sphi 0, %s360
      %s378 = sphi 0, %s378
      %s380 = sphi 0, %s378
      %s381 = sphi 0, %s380
      %s395 = sphi 0, %s381
      %s401 = sphi 0, %s403
      %s404 = sphi 0, %s401
      %s405 = sphi 0, %s404
      %s421 = sphi 0, %s405
    $region4: #{tpu_custom_call.1} parent=1 // loop_header_branch
      %32 = sbr.rel (%p30) target = $region8
    $region5: #{tpu_custom_call.1} parent=1 // loop_body
      %s34 = ssub.s32 %s29, 1
      %s35 = ssub.s32 %s29, 2
      %s36 = sadd.s32 %s29, 1
      %s37 = ssub.s32 %s29, %s36
      %p38 = scmp.eq.s32.totalorder %s37, 0
      %s40 = sadd.s32 %s39, 1
      %s41 = scalar_select %p38, %s39, %s40
      %p44 = pneg %p38
      %p45 = scmp.eq.s32.totalorder %s29, 1
      %p46 = por %p44, %p45
      %p47 = scmp.ne.s32.totalorder %s39, %s42
      %p48 = scmp.eq.s32.totalorder %s29, 0
      %p49 = por %p47, %p48
      %p50 = scmp.ne.s32.totalorder %s39, %s42
      %p51 = scmp.eq.s32.totalorder %s34, 1
      %p52 = por %p50, %p51
      %p53 = scmp.ne.s32.totalorder %s42, %s43
      %p54 = scmp.eq.s32.totalorder %s34, 0
      %p55 = por %p53, %p54
      %p56 = scmp.ne.s32.totalorder %s42, %s43
      %p57 = scmp.eq.s32.totalorder %s35, 1
      %p58 = por %p56, %p57
      %p60 = scmp.ne.s32.totalorder %s43, %s59
      %p61 = scmp.eq.s32.totalorder %s35, 0
      %p62 = por %p60, %p61
      %s64 = sadd.s32 %s63, 1
      %p67 = scmp.eq.s32.totalorder %s29, 1
      %p68 = scmp.ne.s32.totalorder %s63, %s65
      %p69 = scmp.eq.s32.totalorder %s29, 0
      %p70 = por %p68, %p69
      %p71 = scmp.ne.s32.totalorder %s63, %s65
      %p72 = scmp.eq.s32.totalorder %s34, 1
      %p73 = por %p71, %p72
      %p74 = scmp.ne.s32.totalorder %s65, %s66
      %p75 = scmp.eq.s32.totalorder %s34, 0
      %p76 = por %p74, %p75
      %p77 = scmp.ne.s32.totalorder %s65, %s66
      %p78 = scmp.eq.s32.totalorder %s35, 1
      %p79 = por %p77, %p78
      %p81 = scmp.ne.s32.totalorder %s66, %s80
      %p82 = scmp.eq.s32.totalorder %s35, 0
      %p83 = por %p81, %p82
      %s85 = sadd.s32 %s84, 1
      %p88 = scmp.eq.s32.totalorder %s29, 1
      %p89 = scmp.ne.s32.totalorder %s84, %s86
      %p90 = scmp.eq.s32.totalorder %s29, 0
      %p91 = por %p89, %p90
      %p92 = scmp.ne.s32.totalorder %s84, %s86
      %p93 = scmp.eq.s32.totalorder %s34, 1
      %p94 = por %p92, %p93
      %p95 = scmp.ne.s32.totalorder %s86, %s87
      %p96 = scmp.eq.s32.totalorder %s34, 0
      %p97 = por %p95, %p96
      %p98 = scmp.ne.s32.totalorder %s86, %s87
      %p99 = scmp.eq.s32.totalorder %s35, 1
      %p100 = por %p98, %p99
      %p102 = scmp.ne.s32.totalorder %s87, %s101
      %p103 = scmp.eq.s32.totalorder %s35, 0
      %p104 = por %p102, %p103
      %s106 = sadd.s32 %s105, 1
      %p109 = scmp.eq.s32.totalorder %s29, 1
      %p110 = scmp.ne.s32.totalorder %s105, %s107
      %p111 = scmp.eq.s32.totalorder %s29, 0
      %p112 = por %p110, %p111
      %p113 = scmp.ne.s32.totalorder %s105, %s107
      %p114 = scmp.eq.s32.totalorder %s34, 1
      %p115 = por %p113, %p114
      %p116 = scmp.ne.s32.totalorder %s107, %s108
      %p117 = scmp.eq.s32.totalorder %s34, 0
      %p118 = por %p116, %p117
      %p119 = scmp.ne.s32.totalorder %s107, %s108
      %p120 = scmp.eq.s32.totalorder %s35, 1
      %p121 = por %p119, %p120
      %p123 = scmp.ne.s32.totalorder %s108, %s122
      %p124 = scmp.eq.s32.totalorder %s35, 0
      %p125 = por %p123, %p124
      %s127 = sadd.s32 %s126, 1
      %p130 = scmp.eq.s32.totalorder %s29, 1
      %p131 = scmp.ne.s32.totalorder %s126, %s128
      %p132 = scmp.eq.s32.totalorder %s29, 0
      %p133 = por %p131, %p132
      %p134 = scmp.ne.s32.totalorder %s126, %s128
      %p135 = scmp.eq.s32.totalorder %s34, 1
      %p136 = por %p134, %p135
      %p137 = scmp.ne.s32.totalorder %s128, %s129
      %p138 = scmp.eq.s32.totalorder %s34, 0
      %p139 = por %p137, %p138
      %p140 = scmp.ne.s32.totalorder %s128, %s129
      %p141 = scmp.eq.s32.totalorder %s35, 1
      %p142 = por %p140, %p141
      %p144 = scmp.ne.s32.totalorder %s129, %s143
      %p145 = scmp.eq.s32.totalorder %s35, 0
      %p146 = por %p144, %p145
      %s148 = sadd.s32 %s147, 1
      %p151 = scmp.eq.s32.totalorder %s29, 1
      %p152 = scmp.ne.s32.totalorder %s147, %s149
      %p153 = scmp.eq.s32.totalorder %s29, 0
      %p154 = por %p152, %p153
      %p155 = scmp.ne.s32.totalorder %s147, %s149
      %p156 = scmp.eq.s32.totalorder %s34, 1
      %p157 = por %p155, %p156
      %p158 = scmp.ne.s32.totalorder %s149, %s150
      %p159 = scmp.eq.s32.totalorder %s34, 0
      %p160 = por %p158, %p159
      %p161 = scmp.ne.s32.totalorder %s149, %s150
      %p162 = scmp.eq.s32.totalorder %s35, 1
      %p163 = por %p161, %p162
      %p165 = scmp.ne.s32.totalorder %s150, %s164
      %p166 = scmp.eq.s32.totalorder %s35, 0
      %p167 = por %p165, %p166
      %s169 = sadd.s32 %s168, 1
      %p172 = scmp.eq.s32.totalorder %s29, 1
      %p173 = scmp.ne.s32.totalorder %s168, %s170
      %p174 = scmp.eq.s32.totalorder %s29, 0
      %p175 = por %p173, %p174
      %p176 = scmp.ne.s32.totalorder %s168, %s170
      %p177 = scmp.eq.s32.totalorder %s34, 1
      %p178 = por %p176, %p177
      %p179 = scmp.ne.s32.totalorder %s170, %s171
      %p180 = scmp.eq.s32.totalorder %s34, 0
      %p181 = por %p179, %p180
      %p182 = scmp.ne.s32.totalorder %s170, %s171
      %p183 = scmp.eq.s32.totalorder %s35, 1
      %p184 = por %p182, %p183
      %p186 = scmp.ne.s32.totalorder %s171, %s185
      %p187 = scmp.eq.s32.totalorder %s35, 0
      %p188 = por %p186, %p187
      %s190 = sadd.s32 %s189, 1
      %p193 = scmp.eq.s32.totalorder %s29, 1
      %p194 = scmp.ne.s32.totalorder %s189, %s191
      %p195 = scmp.eq.s32.totalorder %s29, 0
      %p196 = por %p194, %p195
      %p197 = scmp.ne.s32.totalorder %s189, %s191
      %p198 = scmp.eq.s32.totalorder %s34, 1
      %p199 = por %p197, %p198
      %p200 = scmp.ne.s32.totalorder %s191, %s192
      %p201 = scmp.eq.s32.totalorder %s34, 0
      %p202 = por %p200, %p201
      %p203 = scmp.ne.s32.totalorder %s191, %s192
      %p204 = scmp.eq.s32.totalorder %s35, 1
      %p205 = por %p203, %p204
      %p207 = scmp.ne.s32.totalorder %s192, %s206
      %p208 = scmp.eq.s32.totalorder %s35, 0
      %p209 = por %p207, %p208
      %s211 = sadd.s32 %s210, 1
      %p214 = scmp.eq.s32.totalorder %s29, 1
      %p215 = scmp.ne.s32.totalorder %s210, %s212
      %p216 = scmp.eq.s32.totalorder %s29, 0
      %p217 = por %p215, %p216
      %p218 = scmp.ne.s32.totalorder %s210, %s212
      %p219 = scmp.eq.s32.totalorder %s34, 1
      %p220 = por %p218, %p219
      %p221 = scmp.ne.s32.totalorder %s212, %s213
      %p222 = scmp.eq.s32.totalorder %s34, 0
      %p223 = por %p221, %p222
      %p224 = scmp.ne.s32.totalorder %s212, %s213
      %p225 = scmp.eq.s32.totalorder %s35, 1
      %p226 = por %p224, %p225
      %p228 = scmp.ne.s32.totalorder %s213, %s227
      %p229 = scmp.eq.s32.totalorder %s35, 0
      %p230 = por %p228, %p229
      %s232 = sadd.s32 %s231, 1
      %p235 = scmp.eq.s32.totalorder %s29, 1
      %p236 = scmp.ne.s32.totalorder %s231, %s233
      %p237 = scmp.eq.s32.totalorder %s29, 0
      %p238 = por %p236, %p237
      %p239 = scmp.ne.s32.totalorder %s231, %s233
      %p240 = scmp.eq.s32.totalorder %s34, 1
      %p241 = por %p239, %p240
      %p242 = scmp.ne.s32.totalorder %s233, %s234
      %p243 = scmp.eq.s32.totalorder %s34, 0
      %p244 = por %p242, %p243
      %p245 = scmp.ne.s32.totalorder %s233, %s234
      %p246 = scmp.eq.s32.totalorder %s35, 1
      %p247 = por %p245, %p246
      %p249 = scmp.ne.s32.totalorder %s234, %s248
      %p250 = scmp.eq.s32.totalorder %s35, 0
      %p251 = por %p249, %p250
      %s253 = sadd.s32 %s252, 1
      %p256 = scmp.eq.s32.totalorder %s29, 1
      %p257 = scmp.ne.s32.totalorder %s252, %s254
      %p258 = scmp.eq.s32.totalorder %s29, 0
      %p259 = por %p257, %p258
      %p260 = scmp.ne.s32.totalorder %s252, %s254
      %p261 = scmp.eq.s32.totalorder %s34, 1
      %p262 = por %p260, %p261
      %p263 = scmp.ne.s32.totalorder %s254, %s255
      %p264 = scmp.eq.s32.totalorder %s34, 0
      %p265 = por %p263, %p264
      %p266 = scmp.ne.s32.totalorder %s254, %s255
      %p267 = scmp.eq.s32.totalorder %s35, 1
      %p268 = por %p266, %p267
      %p270 = scmp.ne.s32.totalorder %s255, %s269
      %p271 = scmp.eq.s32.totalorder %s35, 0
      %p272 = por %p270, %p271
      %s274 = sadd.s32 %s273, 1
      %p277 = scmp.eq.s32.totalorder %s29, 1
      %p278 = scmp.ne.s32.totalorder %s273, %s275
      %p279 = scmp.eq.s32.totalorder %s29, 0
      %p280 = por %p278, %p279
      %p281 = scmp.ne.s32.totalorder %s273, %s275
      %p282 = scmp.eq.s32.totalorder %s34, 1
      %p283 = por %p281, %p282
      %p284 = scmp.ne.s32.totalorder %s275, %s276
      %p285 = scmp.eq.s32.totalorder %s34, 0
      %p286 = por %p284, %p285
      %p287 = scmp.ne.s32.totalorder %s275, %s276
      %p288 = scmp.eq.s32.totalorder %s35, 1
      %p289 = por %p287, %p288
      %p291 = scmp.ne.s32.totalorder %s276, %s290
      %p292 = scmp.eq.s32.totalorder %s35, 0
      %p293 = por %p291, %p292
      %s295 = sadd.s32 %s294, 1
      %p298 = scmp.eq.s32.totalorder %s29, 1
      %p299 = scmp.ne.s32.totalorder %s294, %s296
      %p300 = scmp.eq.s32.totalorder %s29, 0
      %p301 = por %p299, %p300
      %p302 = scmp.ne.s32.totalorder %s294, %s296
      %p303 = scmp.eq.s32.totalorder %s34, 1
      %p304 = por %p302, %p303
      %p305 = scmp.ne.s32.totalorder %s296, %s297
      %p306 = scmp.eq.s32.totalorder %s34, 0
      %p307 = por %p305, %p306
      %p308 = scmp.ne.s32.totalorder %s296, %s297
      %p309 = scmp.eq.s32.totalorder %s35, 1
      %p310 = por %p308, %p309
      %p312 = scmp.ne.s32.totalorder %s297, %s311
      %p313 = scmp.eq.s32.totalorder %s35, 0
      %p314 = por %p312, %p313
      %s316 = sadd.s32 %s315, 1
      %p319 = scmp.eq.s32.totalorder %s29, 1
      %p320 = scmp.ne.s32.totalorder %s315, %s317
      %p321 = scmp.eq.s32.totalorder %s29, 0
      %p322 = por %p320, %p321
      %p323 = scmp.ne.s32.totalorder %s315, %s317
      %p324 = scmp.eq.s32.totalorder %s34, 1
      %p325 = por %p323, %p324
      %p326 = scmp.ne.s32.totalorder %s317, %s318
      %p327 = scmp.eq.s32.totalorder %s34, 0
      %p328 = por %p326, %p327
      %p329 = scmp.ne.s32.totalorder %s317, %s318
      %p330 = scmp.eq.s32.totalorder %s35, 1
      %p331 = por %p329, %p330
      %p333 = scmp.ne.s32.totalorder %s318, %s332
      %p334 = scmp.eq.s32.totalorder %s35, 0
      %p335 = por %p333, %p334
      %s337 = sadd.s32 %s336, 1
      %p340 = scmp.eq.s32.totalorder %s29, 1
      %p341 = scmp.ne.s32.totalorder %s336, %s338
      %p342 = scmp.eq.s32.totalorder %s29, 0
      %p343 = por %p341, %p342
      %p344 = scmp.ne.s32.totalorder %s336, %s338
      %p345 = scmp.eq.s32.totalorder %s34, 1
      %p346 = por %p344, %p345
      %p347 = scmp.ne.s32.totalorder %s338, %s339
      %p348 = scmp.eq.s32.totalorder %s34, 0
      %p349 = por %p347, %p348
      %p350 = scmp.ne.s32.totalorder %s338, %s339
      %p351 = scmp.eq.s32.totalorder %s35, 1
      %p352 = por %p350, %p351
      %p354 = scmp.ne.s32.totalorder %s339, %s353
      %p355 = scmp.eq.s32.totalorder %s35, 0
      %p356 = por %p354, %p355
      %s358 = sadd.s32 %s357, 1
      %p361 = scmp.eq.s32.totalorder %s29, 1
      %p362 = scmp.ne.s32.totalorder %s357, %s359
      %p363 = scmp.eq.s32.totalorder %s29, 0
      %p364 = por %p362, %p363
      %p365 = scmp.ne.s32.totalorder %s357, %s359
      %p366 = scmp.eq.s32.totalorder %s34, 1
      %p367 = por %p365, %p366
      %p368 = scmp.ne.s32.totalorder %s359, %s360
      %p369 = scmp.eq.s32.totalorder %s34, 0
      %p370 = por %p368, %p369
      %p371 = scmp.ne.s32.totalorder %s359, %s360
      %p372 = scmp.eq.s32.totalorder %s35, 1
      %p373 = por %p371, %p372
      %p375 = scmp.ne.s32.totalorder %s360, %s374
      %p376 = scmp.eq.s32.totalorder %s35, 0
      %p377 = por %p375, %p376
      %s379 = sadd.s32 %s378, 1
      %p382 = scmp.eq.s32.totalorder %s29, 1
      %p383 = scmp.ne.s32.totalorder %s378, %s380
      %p384 = scmp.eq.s32.totalorder %s29, 0
      %p385 = por %p383, %p384
      %p386 = scmp.ne.s32.totalorder %s378, %s380
      %p387 = scmp.eq.s32.totalorder %s34, 1
      %p388 = por %p386, %p387
      %p389 = scmp.ne.s32.totalorder %s380, %s381
      %p390 = scmp.eq.s32.totalorder %s34, 0
      %p391 = por %p389, %p390
      %p392 = scmp.ne.s32.totalorder %s380, %s381
      %p393 = scmp.eq.s32.totalorder %s35, 1
      %p394 = por %p392, %p393
      %p396 = scmp.ne.s32.totalorder %s381, %s395
      %p397 = scmp.eq.s32.totalorder %s35, 0
      %p398 = por %p396, %p397
      %s399 = ssub.s32 %s29, %s36
      %p400 = scmp.eq.s32.totalorder %s399, 0
      %s402 = sadd.s32 %s401, 1
      %s403 = scalar_select %p400, %s401, %s402
      %p406 = pneg %p400
      %p407 = scmp.eq.s32.totalorder %s29, 1
      %p408 = por %p406, %p407
      %p409 = scmp.ne.s32.totalorder %s401, %s404
      %p410 = scmp.eq.s32.totalorder %s29, 0
      %p411 = por %p409, %p410
      %p412 = scmp.ne.s32.totalorder %s401, %s404
      %p413 = scmp.eq.s32.totalorder %s34, 1
      %p414 = por %p412, %p413
      %p415 = scmp.ne.s32.totalorder %s404, %s405
      %p416 = scmp.eq.s32.totalorder %s34, 0
      %p417 = por %p415, %p416
      %p418 = scmp.ne.s32.totalorder %s404, %s405
      %p419 = scmp.eq.s32.totalorder %s35, 1
      %p420 = por %p418, %p419
      %p422 = scmp.ne.s32.totalorder %s405, %s421
      %p423 = scmp.eq.s32.totalorder %s35, 0
      %p424 = por %p422, %p423
      %p425 = scmp.le.s32.totalorder 1, %s29
      %p426 = scmp.lt.s32.totalorder %s29, 3
      %p427 = pnand %p425, %p426
      %p428 = pneg %p427
      // Predicated region
      $region9: #{tpu_custom_call.1} parent=5 // pred_check
        _
      $region10: #{tpu_custom_call.1} parent=5 // pred_check_branch
        %430 = sbr.rel (%p427) target = $region12
      $region11: #{tpu_custom_call.1} parent=5 // pred_region
        %s431 = ssub.s32 %s29, 1
        // Predicated region
        $region13: #{tpu_custom_call.1} parent=11 // pred_check
          %p432 = pneg %p76
        $region14: #{tpu_custom_call.1} parent=11 // pred_check_branch
          %434 = sbr.rel (%p432) target = $region16
        $region15: #{tpu_custom_call.1} parent=11 // pred_region
          _
        $region16: #{tpu_custom_call.1} parent=11 // pred_fallthru
          _
        // Predicated region
        $region17: #{tpu_custom_call.1} parent=11 // pred_check
          %p435 = pneg %p97
        $region18: #{tpu_custom_call.1} parent=11 // pred_check_branch
          %437 = sbr.rel (%p435) target = $region20
        $region19: #{tpu_custom_call.1} parent=11 // pred_region
          _
        $region20: #{tpu_custom_call.1} parent=11 // pred_fallthru
          _
        // Predicated region
        $region21: #{tpu_custom_call.1} parent=11 // pred_check
          %p438 = pneg %p118
        $region22: #{tpu_custom_call.1} parent=11 // pred_check_branch
          %440 = sbr.rel (%p438) target = $region24
        $region23: #{tpu_custom_call.1} parent=11 // pred_region
          _
        $region24: #{tpu_custom_call.1} parent=11 // pred_fallthru
          _
        // Predicated region
        $region25: #{tpu_custom_call.1} parent=11 // pred_check
          %p441 = pneg %p139
        $region26: #{tpu_custom_call.1} parent=11 // pred_check_branch
          %443 = sbr.rel (%p441) target = $region28
        $region27: #{tpu_custom_call.1} parent=11 // pred_region
          _
        $region28: #{tpu_custom_call.1} parent=11 // pred_fallthru
          _
        // Predicated region
        $region29: #{tpu_custom_call.1} parent=11 // pred_check
          %p444 = pneg %p160
        $region30: #{tpu_custom_call.1} parent=11 // pred_check_branch
          %446 = sbr.rel (%p444) target = $region32
        $region31: #{tpu_custom_call.1} parent=11 // pred_region
          %s448 = ssub.s32 256, 256
          %449 = vsyncadd [#allocation4], %s448
          %s450 = sshll.u32 [#allocation3], 4
          %s451 = int_to_ptr.vmem [resolvable:$true] %s450
          %456 = dma.hbm_to_vmem [thread:$0]  %s5, 256, %s451, [#allocation4], 64, 64, 4
        $region32: #{tpu_custom_call.1} parent=11 // pred_fallthru
          _
        // Predicated region
        $region33: #{tpu_custom_call.1} parent=11 // pred_check
          %p457 = pneg %p181
        $region34: #{tpu_custom_call.1} parent=11 // pred_check_branch
          %459 = sbr.rel (%p457) target = $region36
        $region35: #{tpu_custom_call.1} parent=11 // pred_region
          %s461 = ssub.s32 16, 16
          %462 = vsyncadd [#allocation7], %s461
          %s464 = sshll.u32 [#allocation6], 4
          %s465 = int_to_ptr.vmem [resolvable:$true] %s464
          %467 = dma.hbm_to_vmem [thread:$0]  %s6, 16, %s465, [#allocation7]
        $region36: #{tpu_custom_call.1} parent=11 // pred_fallthru
          _
        // Predicated region
        $region37: #{tpu_custom_call.1} parent=11 // pred_check
          %p468 = pneg %p202
        $region38: #{tpu_custom_call.1} parent=11 // pred_check_branch
          %470 = sbr.rel (%p468) target = $region40
        $region39: #{tpu_custom_call.1} parent=11 // pred_region
          %s472 = ssub.s32 256, 256
          %473 = vsyncadd [#allocation7], %s472
          %s474 = sshll.u32 [#allocation8], 4
          %s475 = int_to_ptr.vmem [resolvable:$true] %s474
          %480 = dma.hbm_to_vmem [thread:$0]  %s7, 256, %s475, [#allocation7], 64, 64, 4
        $region40: #{tpu_custom_call.1} parent=11 // pred_fallthru
          _
        // Predicated region
        $region41: #{tpu_custom_call.1} parent=11 // pred_check
          %p481 = pneg %p223
        $region42: #{tpu_custom_call.1} parent=11 // pred_check_branch
          %483 = sbr.rel (%p481) target = $region44
        $region43: #{tpu_custom_call.1} parent=11 // pred_region
          %s485 = ssub.s32 16, 16
          %486 = vsyncadd [#allocation10], %s485
          %s488 = sshll.u32 [#allocation9], 4
          %s489 = int_to_ptr.vmem [resolvable:$true] %s488
          %491 = dma.hbm_to_vmem [thread:$0]  %s8, 16, %s489, [#allocation10]
        $region44: #{tpu_custom_call.1} parent=11 // pred_fallthru
          _
        // Predicated region
        $region45: #{tpu_custom_call.1} parent=11 // pred_check
          %p492 = pneg %p244
        $region46: #{tpu_custom_call.1} parent=11 // pred_check_branch
          %494 = sbr.rel (%p492) target = $region48
        $region47: #{tpu_custom_call.1} parent=11 // pred_region
          %s496 = ssub.s32 16, 16
          %497 = vsyncadd [#allocation10], %s496
          %s499 = sshll.u32 [#allocation11], 4
          %s500 = int_to_ptr.vmem [resolvable:$true] %s499
          %502 = dma.hbm_to_vmem [thread:$0]  %s9, 16, %s500, [#allocation10]
        $region48: #{tpu_custom_call.1} parent=11 // pred_fallthru
          _
        // Predicated region
        $region49: #{tpu_custom_call.1} parent=11 // pred_check
          %p503 = pneg %p265
        $region50: #{tpu_custom_call.1} parent=11 // pred_check_branch
          %505 = sbr.rel (%p503) target = $region52
        $region51: #{tpu_custom_call.1} parent=11 // pred_region
          _
        $region52: #{tpu_custom_call.1} parent=11 // pred_fallthru
          _
        // Predicated region
        $region53: #{tpu_custom_call.1} parent=11 // pred_check
          %p506 = pneg %p286
        $region54: #{tpu_custom_call.1} parent=11 // pred_check_branch
          %508 = sbr.rel (%p506) target = $region56
        $region55: #{tpu_custom_call.1} parent=11 // pred_region
          _
        $region56: #{tpu_custom_call.1} parent=11 // pred_fallthru
          _
        // Predicated region
        $region57: #{tpu_custom_call.1} parent=11 // pred_check
          %p509 = pneg %p307
        $region58: #{tpu_custom_call.1} parent=11 // pred_check_branch
          %511 = sbr.rel (%p509) target = $region60
        $region59: #{tpu_custom_call.1} parent=11 // pred_region
          _
        $region60: #{tpu_custom_call.1} parent=11 // pred_fallthru
          _
        // Predicated region
        $region61: #{tpu_custom_call.1} parent=11 // pred_check
          %p512 = pneg %p328
        $region62: #{tpu_custom_call.1} parent=11 // pred_check_branch
          %514 = sbr.rel (%p512) target = $region64
        $region63: #{tpu_custom_call.1} parent=11 // pred_region
          _
        $region64: #{tpu_custom_call.1} parent=11 // pred_fallthru
          _
        // Predicated region
        $region65: #{tpu_custom_call.1} parent=11 // pred_check
          %p515 = pneg %p349
        $region66: #{tpu_custom_call.1} parent=11 // pred_check_branch
          %517 = sbr.rel (%p515) target = $region68
        $region67: #{tpu_custom_call.1} parent=11 // pred_region
          _
        $region68: #{tpu_custom_call.1} parent=11 // pred_fallthru
          _
        // Predicated region
        $region69: #{tpu_custom_call.1} parent=11 // pred_check
          %p518 = pneg %p370
        $region70: #{tpu_custom_call.1} parent=11 // pred_check_branch
          %520 = sbr.rel (%p518) target = $region72
        $region71: #{tpu_custom_call.1} parent=11 // pred_region
          _
        $region72: #{tpu_custom_call.1} parent=11 // pred_fallthru
          _
        // Predicated region
        $region73: #{tpu_custom_call.1} parent=11 // pred_check
          %p521 = pneg %p391
        $region74: #{tpu_custom_call.1} parent=11 // pred_check_branch
          %523 = sbr.rel (%p521) target = $region76
        $region75: #{tpu_custom_call.1} parent=11 // pred_region
          _
        $region76: #{tpu_custom_call.1} parent=11 // pred_fallthru
          _
      $region12: #{tpu_custom_call.1} parent=5 // pred_fallthru
        _
      %p524 = scmp.lt.s32.totalorder %s29, 2
      // Predicated region
      $region77: #{tpu_custom_call.1} parent=5 // pred_check
        %p525 = pneg %p524
      $region78: #{tpu_custom_call.1} parent=5 // pred_check_branch
        %527 = sbr.rel (%p525) target = $region80
      $region79: #{tpu_custom_call.1} parent=5 // pred_region
        // Predicated region
        $region81: #{tpu_custom_call.1} parent=79 // pred_check
          %p528 = pneg %p49
        $region82: #{tpu_custom_call.1} parent=79 // pred_check_branch
          %530 = sbr.rel (%p528) target = $region84
        $region83: #{tpu_custom_call.1} parent=79 // pred_region
          %p531 = scmp.lt.s32.totalorder %s29, 1
          %s532 = scalar_select %p531, %s29, 1
          %s533 = smul.addr %s532, 8
          %s534 = scalar_lea.vmem %s0, %s533
        $region84: #{tpu_custom_call.1} parent=79 // pred_fallthru
          _
      $region80: #{tpu_custom_call.1} parent=5 // pred_fallthru
        _
      %p535 = scmp.le.s32.totalorder 1, %s29
      %p536 = scmp.lt.s32.totalorder %s29, 3
      %p537 = pnand %p535, %p536
      %p538 = pneg %p537
      // Predicated region
      $region85: #{tpu_custom_call.1} parent=5 // pred_check
        _
      $region86: #{tpu_custom_call.1} parent=5 // pred_check_branch
        %540 = sbr.rel (%p537) target = $region88
      $region87: #{tpu_custom_call.1} parent=5 // pred_region
        %s541 = ssub.s32 %s29, 1
        // Predicated region
        $region89: #{tpu_custom_call.1} parent=87 // pred_check
          %p542 = pneg %p160
        $region90: #{tpu_custom_call.1} parent=87 // pred_check_branch
          %544 = sbr.rel (%p542) target = $region92
        $region91: #{tpu_custom_call.1} parent=87 // pred_region
          %545 = dma.done [#allocation4], 256
        $region92: #{tpu_custom_call.1} parent=87 // pred_fallthru
          _
        // Predicated region
        $region93: #{tpu_custom_call.1} parent=87 // pred_check
          %p546 = pneg %p181
        $region94: #{tpu_custom_call.1} parent=87 // pred_check_branch
          %548 = sbr.rel (%p546) target = $region96
        $region95: #{tpu_custom_call.1} parent=87 // pred_region
          %549 = dma.done [#allocation7], 16
        $region96: #{tpu_custom_call.1} parent=87 // pred_fallthru
          _
        // Predicated region
        $region97: #{tpu_custom_call.1} parent=87 // pred_check
          %p550 = pneg %p202
        $region98: #{tpu_custom_call.1} parent=87 // pred_check_branch
          %552 = sbr.rel (%p550) target = $region100
        $region99: #{tpu_custom_call.1} parent=87 // pred_region
          %553 = dma.done [#allocation7], 256
        $region100: #{tpu_custom_call.1} parent=87 // pred_fallthru
          _
        // Predicated region
        $region101: #{tpu_custom_call.1} parent=87 // pred_check
          %p554 = pneg %p223
        $region102: #{tpu_custom_call.1} parent=87 // pred_check_branch
          %556 = sbr.rel (%p554) target = $region104
        $region103: #{tpu_custom_call.1} parent=87 // pred_region
          %557 = dma.done [#allocation10], 16
        $region104: #{tpu_custom_call.1} parent=87 // pred_fallthru
          _
        // Predicated region
        $region105: #{tpu_custom_call.1} parent=87 // pred_check
          %p558 = pneg %p244
        $region106: #{tpu_custom_call.1} parent=87 // pred_check_branch
          %560 = sbr.rel (%p558) target = $region108
        $region107: #{tpu_custom_call.1} parent=87 // pred_region
          %561 = dma.done [#allocation10], 16
        $region108: #{tpu_custom_call.1} parent=87 // pred_fallthru
          _
        %p562 = scmp.lt.s32.totalorder %s34, 1
        %s563 = scalar_select %p562, %s34, 1
        %s564 = smul.addr %s563, 8
        %s565 = scalar_lea.vmem %s0, %s564
        %p566 = pneg %p55
        %p567 = pneg %p52
        %p568 = pneg %p76
        %p569 = pneg %p73
        %p570 = pneg %p97
        %p571 = pneg %p94
        %p572 = pneg %p118
        %p573 = pneg %p115
        %p574 = pneg %p139
        %p575 = pneg %p136
        %p576 = pneg %p160
        %p577 = pneg %p157
        %p578 = pneg %p181
        %p579 = pneg %p178
        %p580 = pneg %p202
        %p581 = pneg %p199
        %p582 = pneg %p223
        %p583 = pneg %p220
        %p584 = pneg %p244
        %p585 = pneg %p241
        %p586 = pneg %p265
        %p587 = pneg %p262
        %p588 = pneg %p286
        %p589 = pneg %p283
        %p590 = pneg %p307
        %p591 = pneg %p304
        %p592 = pneg %p328
        %p593 = pneg %p325
        %p594 = pneg %p349
        %p595 = pneg %p346
        %p596 = pneg %p370
        %p597 = pneg %p367
        %p598 = pneg %p391
        %p599 = pneg %p388
        %p600 = pneg %p417
        %p601 = pneg %p414
        %s602 = sand.u32 %s404, 1
        %s603 = scalar_lea.sflag [#allocation5], %s602
        %s604 = sand.u32 %s404, 1
        %s605 = smul.addr %s604, 8
        %s606 = scalar_lea.vmem [#allocation12], %s605
        %p607 = scmp.lt.s32.totalorder %s34, 1
        %s608 = scalar_select %p607, %s34, 1
        %s609 = smul.addr %s608, 8
        %s610 = scalar_lea.vmem %s0, %s609
        %v612 = vld [vmem:[%s610] sm:$0xff]
        %v613 = vpack.c.bf16 %v612, %v612
        %v614 = vld [vmem:[%s1] sm:$0xf]
        %v615 = vld [vmem:[%s1 + $0x4] sm:$0xf]
        %v616 = vld [vmem:[%s1 + $0x8] sm:$0xf]
        %v617 = vld [vmem:[%s1 + $0xc] sm:$0xf]
        %v618 = vld [vmem:[%s2] sm:$0x1]
        %v620 = vlaneseq
        %v621 = vshrl.u32 %v620, 7
        %v622 = vsub.s32 0, %v621
        %v623 = vrot.slane %v618, %v622
        %v629 = vunpack.c.l.b16 %v614
        %v630 = vunpack.c.l.b16 %v615
        %v631 = vunpack.c.l.b16 %v616
        %v632 = vunpack.c.l.b16 %v617
        %v633 = vpack.c.b16 %v630, %v629
        %v634 = vpack.c.b16 %v632, %v631
        %vm637 = vcmask 261120
        %v639 = vsel %vm637, %v613, 0
        %641 = vmatprep.subr.bf16.mxu0 0
        %642 = vmatpush1.bf16.msra.mxu0 %v633
        %643 = vmatprep.subr.bf16.mxu0 0
        %644 = vmatpush1.bf16.msra.mxu0 %v634
        %645 = vmatprep.subr.bf16.mxu0 0
        %646 = vmatpush1.bf16.msra.mxu0 0
        %647 = vmatprep.subr.bf16.mxu0 0
        %648 = vmatpush1.bf16.msra.mxu0 0
        %649 = vmatprep.subr.bf16.mxu0 0
        %650 = vmatpush1.bf16.msra.mxu0 0
        %651 = vmatprep.subr.bf16.mxu0 0
        %652 = vmatpush1.bf16.msra.mxu0 0
        %653 = vmatprep.subr.bf16.mxu0 0
        %654 = vmatpush1.bf16.msra.mxu0 0
        %655 = vmatprep.subr.bf16.mxu0 0
        %656 = vmatpush1.bf16.msra.mxu0 0
        %657 = vmatprep.subr.bf16.mxu0 0
        %658 = vmatpush1.bf16.msra.mxu0 0
        %659 = vmatprep.subr.bf16.mxu0 0
        %660 = vmatpush1.bf16.msra.mxu0 0
        %661 = vmatprep.subr.bf16.mxu0 0
        %662 = vmatpush1.bf16.msra.mxu0 0
        %663 = vmatprep.subr.bf16.mxu0 0
        %664 = vmatpush1.bf16.msra.mxu0 0
        %665 = vmatprep.subr.bf16.mxu0 0
        %666 = vmatpush1.bf16.msra.mxu0 0
        %667 = vmatprep.subr.bf16.mxu0 0
        %668 = vmatpush1.bf16.msra.mxu0 0
        %669 = vmatprep.subr.bf16.mxu0 0
        %670 = vmatpush1.bf16.msra.mxu0 0
        %671 = vmatprep.subr.bf16.mxu0 0
        %672 = vmatpush1.bf16.msra.mxu0 0
        %673 = vmatprep.mubr.bf16.mxu0 0
        %674 = vmatmul.mubr.bf16.gmra.mrb[0].mxu0 %v639
        %v675 = vpop.f32.mrb[0].mxu0
        %v676 = vadd.f32 %v623, %v675
        %v677 = vpop.f32.mrb[0].mxu0
        %v678 = vpop.f32.mrb[0].mxu0
        %v679 = vpop.f32.mrb[0].mxu0
        %680 = vdwg.mxu0
        %v681 = vld [vmem:[%s3] sm:$0xf]
        %v682 = vld [vmem:[%s3 + $0x4] sm:$0xf]
        %v683 = vld [vmem:[%s3 + $0x8] sm:$0xf]
        %v684 = vld [vmem:[%s3 + $0xc] sm:$0xf]
        %v685 = vld [vmem:[%s4] sm:$0x1]
        %v687 = vlaneseq
        %v688 = vshrl.u32 %v687, 7
        %v689 = vsub.s32 0, %v688
        %v690 = vrot.slane %v685, %v689
        %v696 = vunpack.c.l.b16 %v681
        %v697 = vunpack.c.l.b16 %v682
        %v698 = vunpack.c.l.b16 %v683
        %v699 = vunpack.c.l.b16 %v684
        %v700 = vpack.c.b16 %v697, %v696
        %v701 = vpack.c.b16 %v699, %v698
        %704 = vmatprep.subr.bf16.mxu0 0
        %705 = vmatpush1.bf16.msra.mxu0 %v700
        %706 = vmatprep.subr.bf16.mxu0 0
        %707 = vmatpush1.bf16.msra.mxu0 %v701
        %708 = vmatprep.subr.bf16.mxu0 0
        %709 = vmatpush1.bf16.msra.mxu0 0
        %710 = vmatprep.subr.bf16.mxu0 0
        %711 = vmatpush1.bf16.msra.mxu0 0
        %712 = vmatprep.subr.bf16.mxu0 0
        %713 = vmatpush1.bf16.msra.mxu0 0
        %714 = vmatprep.subr.bf16.mxu0 0
        %715 = vmatpush1.bf16.msra.mxu0 0
        %716 = vmatprep.subr.bf16.mxu0 0
        %717 = vmatpush1.bf16.msra.mxu0 0
        %718 = vmatprep.subr.bf16.mxu0 0
        %719 = vmatpush1.bf16.msra.mxu0 0
        %720 = vmatprep.subr.bf16.mxu0 0
        %721 = vmatpush1.bf16.msra.mxu0 0
        %722 = vmatprep.subr.bf16.mxu0 0
        %723 = vmatpush1.bf16.msra.mxu0 0
        %724 = vmatprep.subr.bf16.mxu0 0
        %725 = vmatpush1.bf16.msra.mxu0 0
        %726 = vmatprep.subr.bf16.mxu0 0
        %727 = vmatpush1.bf16.msra.mxu0 0
        %728 = vmatprep.subr.bf16.mxu0 0
        %729 = vmatpush1.bf16.msra.mxu0 0
        %730 = vmatprep.subr.bf16.mxu0 0
        %731 = vmatpush1.bf16.msra.mxu0 0
        %732 = vmatprep.subr.bf16.mxu0 0
        %733 = vmatpush1.bf16.msra.mxu0 0
        %734 = vmatprep.subr.bf16.mxu0 0
        %735 = vmatpush1.bf16.msra.mxu0 0
        %736 = vmatprep.mubr.bf16.mxu0 0
        %737 = vmatmul.mubr.bf16.gmra.mrb[0].mxu0 %v639
        %v738 = vpop.f32.mrb[0].mxu0
        %v739 = vadd.f32 %v690, %v738
        %v740 = vpop.f32.mrb[0].mxu0
        %v741 = vpop.f32.mrb[0].mxu0
        %v742 = vpop.f32.mrb[0].mxu0
        %743 = vdwg.mxu0
        %v744 = vld [vmem:[#allocation3] sm:$0xf]
        %v745 = vld [vmem:[#allocation3 + $0x4] sm:$0xf]
        %v746 = vld [vmem:[#allocation3 + $0x8] sm:$0xf]
        %v747 = vld [vmem:[#allocation3 + $0xc] sm:$0xf]
        %v748 = vld [vmem:[#allocation6] sm:$0x1]
        %v750 = vlaneseq
        %v751 = vshrl.u32 %v750, 7
        %v752 = vsub.s32 0, %v751
        %v753 = vrot.slane %v748, %v752
        %v759 = vunpack.c.l.b16 %v744
        %v760 = vunpack.c.l.b16 %v745
        %v761 = vunpack.c.l.b16 %v746
        %v762 = vunpack.c.l.b16 %v747
        %v763 = vpack.c.b16 %v760, %v759
        %v764 = vpack.c.b16 %v762, %v761
        %767 = vmatprep.subr.bf16.mxu0 0
        %768 = vmatpush1.bf16.msra.mxu0 %v763
        %769 = vmatprep.subr.bf16.mxu0 0
        %770 = vmatpush1.bf16.msra.mxu0 %v764
        %771 = vmatprep.subr.bf16.mxu0 0
        %772 = vmatpush1.bf16.msra.mxu0 0
        %773 = vmatprep.subr.bf16.mxu0 0
        %774 = vmatpush1.bf16.msra.mxu0 0
        %775 = vmatprep.subr.bf16.mxu0 0
        %776 = vmatpush1.bf16.msra.mxu0 0
        %777 = vmatprep.subr.bf16.mxu0 0
        %778 = vmatpush1.bf16.msra.mxu0 0
        %779 = vmatprep.subr.bf16.mxu0 0
        %780 = vmatpush1.bf16.msra.mxu0 0
        %781 = vmatprep.subr.bf16.mxu0 0
        %782 = vmatpush1.bf16.msra.mxu0 0
        %783 = vmatprep.subr.bf16.mxu0 0
        %784 = vmatpush1.bf16.msra.mxu0 0
        %785 = vmatprep.subr.bf16.mxu0 0
        %786 = vmatpush1.bf16.msra.mxu0 0
        %787 = vmatprep.subr.bf16.mxu0 0
        %788 = vmatpush1.bf16.msra.mxu0 0
        %789 = vmatprep.subr.bf16.mxu0 0
        %790 = vmatpush1.bf16.msra.mxu0 0
        %791 = vmatprep.subr.bf16.mxu0 0
        %792 = vmatpush1.bf16.msra.mxu0 0
        %793 = vmatprep.subr.bf16.mxu0 0
        %794 = vmatpush1.bf16.msra.mxu0 0
        %795 = vmatprep.subr.bf16.mxu0 0
        %796 = vmatpush1.bf16.msra.mxu0 0
        %797 = vmatprep.subr.bf16.mxu0 0
        %798 = vmatpush1.bf16.msra.mxu0 0
        %799 = vmatprep.mubr.bf16.mxu0 0
        %800 = vmatmul.mubr.bf16.gmra.mrb[0].mxu0 %v639
        %v801 = vpop.f32.mrb[0].mxu0
        %v802 = vadd.f32 %v753, %v801
        %v803 = vpop.f32.mrb[0].mxu0
        %v804 = vpop.f32.mrb[0].mxu0
        %v805 = vpop.f32.mrb[0].mxu0
        %806 = vdwg.mxu0
        %v807 = vmul.f32 %v676, 0.17677669
        %v808 = vpack.c.bf16 %v807, %v807
        %v809 = vpack.c.bf16 %v739, %v739
        %v810 = vpack.c.bf16 %v802, %v802
        %vm811 = vcmask 64512
        %v813 = vsel %vm811, %v808, 0
        %v816 = vsel %vm811, %v809, 0
        %818 = vmatprep.subr.bf16.mxu0 0
        %819 = vmatpush1.bf16.xpose.msra.mxu0 %v816
        %820 = vmatprep.subr.bf16.mxu0 0
        %821 = vmatpush1.bf16.xpose.msra.mxu0 0
        %822 = vmatprep.subr.bf16.mxu0 0
        %823 = vmatpush1.bf16.xpose.msra.mxu0 0
        %824 = vmatprep.subr.bf16.mxu0 0
        %825 = vmatpush1.bf16.xpose.msra.mxu0 0
        %826 = vmatprep.subr.bf16.mxu0 0
        %827 = vmatpush1.bf16.xpose.msra.mxu0 0
        %828 = vmatprep.subr.bf16.mxu0 0
        %829 = vmatpush1.bf16.xpose.msra.mxu0 0
        %830 = vmatprep.subr.bf16.mxu0 0
        %831 = vmatpush1.bf16.xpose.msra.mxu0 0
        %832 = vmatprep.subr.bf16.mxu0 0
        %833 = vmatpush1.bf16.xpose.msra.mxu0 0
        %834 = vmatprep.subr.bf16.mxu0 0
        %835 = vmatpush1.bf16.xpose.msra.mxu0 0
        %836 = vmatprep.subr.bf16.mxu0 0
        %837 = vmatpush1.bf16.xpose.msra.mxu0 0
        %838 = vmatprep.subr.bf16.mxu0 0
        %839 = vmatpush1.bf16.xpose.msra.mxu0 0
        %840 = vmatprep.subr.bf16.mxu0 0
        %841 = vmatpush1.bf16.xpose.msra.mxu0 0
        %842 = vmatprep.subr.bf16.mxu0 0
        %843 = vmatpush1.bf16.xpose.msra.mxu0 0
        %844 = vmatprep.subr.bf16.mxu0 0
        %845 = vmatpush1.bf16.xpose.msra.mxu0 0
        %846 = vmatprep.subr.bf16.mxu0 0
        %847 = vmatpush1.bf16.xpose.msra.mxu0 0
        %848 = vmatprep.subr.bf16.mxu0 0
        %849 = vmatpush1.bf16.xpose.msra.mxu0 0
        %850 = vmatprep.mubr.bf16.mxu0 0
        %851 = vmatmul.mubr.bf16.gmra.mrb[0].mxu0 %v813
        %v852 = vpop.f32.mrb[0].mxu0
        %v853 = vadd.f32 0.0, %v852
        %v854 = vpop.f32.mrb[0].mxu0
        %v855 = vpop.f32.mrb[0].mxu0
        %v856 = vpop.f32.mrb[0].mxu0
        %857 = vdwg.mxu0
        %v858 = vsel %vm811, %v853, -inf
        %v859 = vrot.slane %v858, 4
        %v860 = vmax.f32 %v858, %v859
        %v861 = vrot.slane %v860, 2
        %v862 = vmax.f32 %v860, %v861
        %v863 = vrot.slane %v862, 1
        %v864 = vmax.f32 %v862, %v863
        %v865 = vsub.f32 %v853, %v864
        %v866 = vmul.f32 %v865, 1.442695
        %v867 = vpow.pop %v866
        %v868 = vsel %vm811, %v867, 0.0
        %v869 = vrot.slane %v868, 4
        %v870 = vadd.f32 %v868, %v869
        %v871 = vrot.slane %v870, 2
        %v872 = vadd.f32 %v870, %v871
        %v873 = vrot.slane %v872, 1
        %v874 = vadd.f32 %v872, %v873
        %v875 = vrcp.pop %v874
        %v876 = vmul.f32 %v867, %v875
        %v877 = vpack.c.bf16 %v876, %v876
        %v879 = vsel %vm811, %v877, 0
        %vm881 = vcmask 1043456
        %v883 = vsel %vm881, %v810, 0
        %885 = vmatprep.subr.bf16.mxu0 0
        %886 = vmatpush1.bf16.msra.mxu0 %v883
        %887 = vmatprep.subr.bf16.mxu0 0
        %888 = vmatpush1.bf16.msra.mxu0 0
        %889 = vmatprep.subr.bf16.mxu0 0
        %890 = vmatpush1.bf16.msra.mxu0 0
        %891 = vmatprep.subr.bf16.mxu0 0
        %892 = vmatpush1.bf16.msra.mxu0 0
        %893 = vmatprep.subr.bf16.mxu0 0
        %894 = vmatpush1.bf16.msra.mxu0 0
        %895 = vmatprep.subr.bf16.mxu0 0
        %896 = vmatpush1.bf16.msra.mxu0 0
        %897 = vmatprep.subr.bf16.mxu0 0
        %898 = vmatpush1.bf16.msra.mxu0 0
        %899 = vmatprep.subr.bf16.mxu0 0
        %900 = vmatpush1.bf16.msra.mxu0 0
        %901 = vmatprep.subr.bf16.mxu0 0
        %902 = vmatpush1.bf16.msra.mxu0 0
        %903 = vmatprep.subr.bf16.mxu0 0
        %904 = vmatpush1.bf16.msra.mxu0 0
        %905 = vmatprep.subr.bf16.mxu0 0
        %906 = vmatpush1.bf16.msra.mxu0 0
        %907 = vmatprep.subr.bf16.mxu0 0
        %908 = vmatpush1.bf16.msra.mxu0 0
        %909 = vmatprep.subr.bf16.mxu0 0
        %910 = vmatpush1.bf16.msra.mxu0 0
        %911 = vmatprep.subr.bf16.mxu0 0
        %912 = vmatpush1.bf16.msra.mxu0 0
        %913 = vmatprep.subr.bf16.mxu0 0
        %914 = vmatpush1.bf16.msra.mxu0 0
        %915 = vmatprep.subr.bf16.mxu0 0
        %916 = vmatpush1.bf16.msra.mxu0 0
        %917 = vmatprep.mubr.bf16.mxu0 0
        %918 = vmatmul.mubr.bf16.gmra.mrb[0].mxu0 %v879
        %v919 = vpop.f32.mrb[0].mxu0
        %v920 = vadd.f32 0.0, %v919
        %v921 = vpop.f32.mrb[0].mxu0
        %v922 = vpop.f32.mrb[0].mxu0
        %v923 = vpop.f32.mrb[0].mxu0
        %924 = vdwg.mxu0
        %v925 = vpack.c.bf16 %v920, %v920
        %vm926 = vcmask 60416
        %927 = vst.msk [vmem:[#allocation2] sm:$0xf] %vm926, %v925
        %929 = vrot.lane.b32.xlu0 %v808, 120
        %v930 = vpop.permute.xlu0 %929
        %932 = vrot.lane.b32.xlu0 %v809, 120
        %v933 = vpop.permute.xlu0 %932
        %v935 = vsel %vm811, %v930, 0
        %v938 = vsel %vm811, %v933, 0
        %940 = vmatprep.subr.bf16.mxu0 0
        %941 = vmatpush1.bf16.xpose.msra.mxu0 %v938
        %942 = vmatprep.subr.bf16.mxu0 0
        %943 = vmatpush1.bf16.xpose.msra.mxu0 0
        %944 = vmatprep.subr.bf16.mxu0 0
        %945 = vmatpush1.bf16.xpose.msra.mxu0 0
        %946 = vmatprep.subr.bf16.mxu0 0
        %947 = vmatpush1.bf16.xpose.msra.mxu0 0
        %948 = vmatprep.subr.bf16.mxu0 0
        %949 = vmatpush1.bf16.xpose.msra.mxu0 0
        %950 = vmatprep.subr.bf16.mxu0 0
        %951 = vmatpush1.bf16.xpose.msra.mxu0 0
        %952 = vmatprep.subr.bf16.mxu0 0
        %953 = vmatpush1.bf16.xpose.msra.mxu0 0
        %954 = vmatprep.subr.bf16.mxu0 0
        %955 = vmatpush1.bf16.xpose.msra.mxu0 0
        %956 = vmatprep.subr.bf16.mxu0 0
        %957 = vmatpush1.bf16.xpose.msra.mxu0 0
        %958 = vmatprep.subr.bf16.mxu0 0
        %959 = vmatpush1.bf16.xpose.msra.mxu0 0
        %960 = vmatprep.subr.bf16.mxu0 0
        %961 = vmatpush1.bf16.xpose.msra.mxu0 0
        %962 = vmatprep.subr.bf16.mxu0 0
        %963 = vmatpush1.bf16.xpose.msra.mxu0 0
        %964 = vmatprep.subr.bf16.mxu0 0
        %965 = vmatpush1.bf16.xpose.msra.mxu0 0
        %966 = vmatprep.subr.bf16.mxu0 0
        %967 = vmatpush1.bf16.xpose.msra.mxu0 0
        %968 = vmatprep.subr.bf16.mxu0 0
        %969 = vmatpush1.bf16.xpose.msra.mxu0 0
        %970 = vmatprep.subr.bf16.mxu0 0
        %971 = vmatpush1.bf16.xpose.msra.mxu0 0
        %972 = vmatprep.mubr.bf16.mxu0 0
        %973 = vmatmul.mubr.bf16.gmra.mrb[0].mxu0 %v935
        %v974 = vpop.f32.mrb[0].mxu0
        %v975 = vadd.f32 0.0, %v974
        %v976 = vpop.f32.mrb[0].mxu0
        %v977 = vpop.f32.mrb[0].mxu0
        %v978 = vpop.f32.mrb[0].mxu0
        %979 = vdwg.mxu0
        %v980 = vsel %vm811, %v975, -inf
        %v981 = vrot.slane %v980, 4
        %v982 = vmax.f32 %v980, %v981
        %v983 = vrot.slane %v982, 2
        %v984 = vmax.f32 %v982, %v983
        %v985 = vrot.slane %v984, 1
        %v986 = vmax.f32 %v984, %v985
        %v987 = vsub.f32 %v975, %v986
        %v988 = vmul.f32 %v987, 1.442695
        %v989 = vpow.pop %v988
        %v990 = vsel %vm811, %v989, 0.0
        %v991 = vrot.slane %v990, 4
        %v992 = vadd.f32 %v990, %v991
        %v993 = vrot.slane %v992, 2
        %v994 = vadd.f32 %v992, %v993
        %v995 = vrot.slane %v994, 1
        %v996 = vadd.f32 %v994, %v995
        %v997 = vrcp.pop %v996
        %v998 = vmul.f32 %v989, %v997
        %v999 = vpack.c.bf16 %v998, %v998
        %1001 = vrot.lane.b32.xlu0 %v810, 120
        %v1002 = vpop.permute.xlu0 %1001
        %v1004 = vsel %vm811, %v999, 0
        %v1007 = vsel %vm881, %v1002, 0
        %1009 = vmatprep.subr.bf16.mxu0 0
        %1010 = vmatpush1.bf16.msra.mxu0 %v1007
        %1011 = vmatprep.subr.bf16.mxu0 0
        %1012 = vmatpush1.bf16.msra.mxu0 0
        %1013 = vmatprep.subr.bf16.mxu0 0
        %1014 = vmatpush1.bf16.msra.mxu0 0
        %1015 = vmatprep.subr.bf16.mxu0 0
        %1016 = vmatpush1.bf16.msra.mxu0 0
        %1017 = vmatprep.subr.bf16.mxu0 0
        %1018 = vmatpush1.bf16.msra.mxu0 0
        %1019 = vmatprep.subr.bf16.mxu0 0
        %1020 = vmatpush1.bf16.msra.mxu0 0
        %1021 = vmatprep.subr.bf16.mxu0 0
        %1022 = vmatpush1.bf16.msra.mxu0 0
        %1023 = vmatprep.subr.bf16.mxu0 0
        %1024 = vmatpush1.bf16.msra.mxu0 0
        %1025 = vmatprep.subr.bf16.mxu0 0
        %1026 = vmatpush1.bf16.msra.mxu0 0
        %1027 = vmatprep.subr.bf16.mxu0 0
        %1028 = vmatpush1.bf16.msra.mxu0 0
        %1029 = vmatprep.subr.bf16.mxu0 0
        %1030 = vmatpush1.bf16.msra.mxu0 0
        %1031 = vmatprep.subr.bf16.mxu0 0
        %1032 = vmatpush1.bf16.msra.mxu0 0
        %1033 = vmatprep.subr.bf16.mxu0 0
        %1034 = vmatpush1.bf16.msra.mxu0 0
        %1035 = vmatprep.subr.bf16.mxu0 0
        %1036 = vmatpush1.bf16.msra.mxu0 0
        %1037 = vmatprep.subr.bf16.mxu0 0
        %1038 = vmatpush1.bf16.msra.mxu0 0
        %1039 = vmatprep.subr.bf16.mxu0 0
        %1040 = vmatpush1.bf16.msra.mxu0 0
        %1041 = vmatprep.mubr.bf16.mxu0 0
        %1042 = vmatmul.mubr.bf16.gmra.mrb[0].mxu0 %v1004
        %v1043 = vpop.f32.mrb[0].mxu0
        %v1044 = vadd.f32 0.0, %v1043
        %v1045 = vpop.f32.mrb[0].mxu0
        %v1046 = vpop.f32.mrb[0].mxu0
        %v1047 = vpop.f32.mrb[0].mxu0
        %1048 = vdwg.mxu0
        %v1049 = vpack.c.bf16 %v1044, %v1044
        %v1051 = vunpack.c.l.b16 %v1049
        %v1052 = vpack.c.b16 %v1051, %v1051
        %1053 = vrot.lane.b32.xlu0 %v1052, 8
        %v1054 = vpop.permute.xlu0 %1053
        %vm1056 = vcmask 126016
        %1057 = vst.msk [vmem:[#allocation2] sm:$0xf] %vm1056, %v1054
        %1058 = vrot.lane.b32.xlu0 %v808, 112
        %v1059 = vpop.permute.xlu0 %1058
        %1060 = vrot.lane.b32.xlu0 %v809, 112
        %v1061 = vpop.permute.xlu0 %1060
        %v1063 = vsel %vm811, %v1059, 0
        %v1066 = vsel %vm811, %v1061, 0
        %1068 = vmatprep.subr.bf16.mxu0 0
        %1069 = vmatpush1.bf16.xpose.msra.mxu0 %v1066
        %1070 = vmatprep.subr.bf16.mxu0 0
        %1071 = vmatpush1.bf16.xpose.msra.mxu0 0
        %1072 = vmatprep.subr.bf16.mxu0 0
        %1073 = vmatpush1.bf16.xpose.msra.mxu0 0
        %1074 = vmatprep.subr.bf16.mxu0 0
        %1075 = vmatpush1.bf16.xpose.msra.mxu0 0
        %1076 = vmatprep.subr.bf16.mxu0 0
        %1077 = vmatpush1.bf16.xpose.msra.mxu0 0
        %1078 = vmatprep.subr.bf16.mxu0 0
        %1079 = vmatpush1.bf16.xpose.msra.mxu0 0
        %1080 = vmatprep.subr.bf16.mxu0 0
        %1081 = vmatpush1.bf16.xpose.msra.mxu0 0
        %1082 = vmatprep.subr.bf16.mxu0 0
        %1083 = vmatpush1.bf16.xpose.msra.mxu0 0
        %1084 = vmatprep.subr.bf16.mxu0 0
        %1085 = vmatpush1.bf16.xpose.msra.mxu0 0
        %1086 = vmatprep.subr.bf16.mxu0 0
        %1087 = vmatpush1.bf16.xpose.msra.mxu0 0
        %1088 = vmatprep.subr.bf16.mxu0 0
        %1089 = vmatpush1.bf16.xpose.msra.mxu0 0
        %1090 = vmatprep.subr.bf16.mxu0 0
        %1091 = vmatpush1.bf16.xpose.msra.mxu0 0
        %1092 = vmatprep.subr.bf16.mxu0 0
        %1093 = vmatpush1.bf16.xpose.msra.mxu0 0
        %1094 = vmatprep.subr.bf16.mxu0 0
        %1095 = vmatpush1.bf16.xpose.msra.mxu0 0
        %1096 = vmatprep.subr.bf16.mxu0 0
        %1097 = vmatpush1.bf16.xpose.msra.mxu0 0
        %1098 = vmatprep.subr.bf16.mxu0 0
        %1099 = vmatpush1.bf16.xpose.msra.mxu0 0
        %1100 = vmatprep.mubr.bf16.mxu0 0
        %1101 = vmatmul.mubr.bf16.gmra.mrb[0].mxu0 %v1063
        %v1102 = vpop.f32.mrb[0].mxu0
        %v1103 = vadd.f32 0.0, %v1102
        %v1104 = vpop.f32.mrb[0].mxu0
        %v1105 = vpop.f32.mrb[0].mxu0
        %v1106 = vpop.f32.mrb[0].mxu0
        %1107 = vdwg.mxu0
        %v1108 = vsel %vm811, %v1103, -inf
        %v1109 = vrot.slane %v1108, 4
        %v1110 = vmax.f32 %v1108, %v1109
        %v1111 = vrot.slane %v1110, 2
        %v1112 = vmax.f32 %v1110, %v1111
        %v1113 = vrot.slane %v1112, 1
        %v1114 = vmax.f32 %v1112, %v1113
        %v1115 = vsub.f32 %v1103, %v1114
        %v1116 = vmul.f32 %v1115, 1.442695
        %v1117 = vpow.pop %v1116
        %v1118 = vsel %vm811, %v1117, 0.0
        %v1119 = vrot.slane %v1118, 4
        %v1120 = vadd.f32 %v1118, %v1119
        %v1121 = vrot.slane %v1120, 2
        %v1122 = vadd.f32 %v1120, %v1121
        %v1123 = vrot.slane %v1122, 1
        %v1124 = vadd.f32 %v1122, %v1123
        %v1125 = vrcp.pop %v1124
        %v1126 = vmul.f32 %v1117, %v1125
        %v1127 = vpack.c.bf16 %v1126, %v1126
        %1128 = vrot.lane.b32.xlu0 %v810, 112
        %v1129 = vpop.permute.xlu0 %1128
        %v1131 = vsel %vm811, %v1127, 0
        %v1134 = vsel %vm881, %v1129, 0
        %1136 = vmatprep.subr.bf16.mxu0 0
        %1137 = vmatpush1.bf16.msra.mxu0 %v1134
        %1138 = vmatprep.subr.bf16.mxu0 0
        %1139 = vmatpush1.bf16.msra.mxu0 0
        %1140 = vmatprep.subr.bf16.mxu0 0
        %1141 = vmatpush1.bf16.msra.mxu0 0
        %1142 = vmatprep.subr.bf16.mxu0 0
        %1143 = vmatpush1.bf16.msra.mxu0 0
        %1144 = vmatprep.subr.bf16.mxu0 0
        %1145 = vmatpush1.bf16.msra.mxu0 0
        %1146 = vmatprep.subr.bf16.mxu0 0
        %1147 = vmatpush1.bf16.msra.mxu0 0
        %1148 = vmatprep.subr.bf16.mxu0 0
        %1149 = vmatpush1.bf16.msra.mxu0 0
        %1150 = vmatprep.subr.bf16.mxu0 0
        %1151 = vmatpush1.bf16.msra.mxu0 0
        %1152 = vmatprep.subr.bf16.mxu0 0
        %1153 = vmatpush1.bf16.msra.mxu0 0
        %1154 = vmatprep.subr.bf16.mxu0 0
        %1155 = vmatpush1.bf16.msra.mxu0 0
        %1156 = vmatprep.subr.bf16.mxu0 0
        %1157 = vmatpush1.bf16.msra.mxu0 0
        %1158 = vmatprep.subr.bf16.mxu0 0
        %1159 = vmatpush1.bf16.msra.mxu0 0
        %1160 = vmatprep.subr.bf16.mxu0 0
        %1161 = vmatpush1.bf16.msra.mxu0 0
        %1162 = vmatprep.subr.bf16.mxu0 0
        %1163 = vmatpush1.bf16.msra.mxu0 0
        %1164 = vmatprep.subr.bf16.mxu0 0
        %1165 = vmatpush1.bf16.msra.mxu0 0
        %1166 = vmatprep.subr.bf16.mxu0 0
        %1167 = vmatpush1.bf16.msra.mxu0 0
        %1168 = vmatprep.mubr.bf16.mxu0 0
        %1169 = vmatmul.mubr.bf16.gmra.mrb[0].mxu0 %v1131
        %v1170 = vpop.f32.mrb[0].mxu0
        %v1171 = vadd.f32 0.0, %v1170
        %v1172 = vpop.f32.mrb[0].mxu0
        %v1173 = vpop.f32.mrb[0].mxu0
        %v1174 = vpop.f32.mrb[0].mxu0
        %1175 = vdwg.mxu0
        %v1176 = vpack.c.bf16 %v1171, %v1171
        %v1178 = vunpack.c.l.b16 %v1176
        %v1179 = vpack.c.b16 %v1178, %v1178
        %1180 = vrot.lane.b32.xlu0 %v1179, 16
        %v1181 = vpop.permute.xlu0 %1180
        %vm1183 = vcmask 191616
        %1184 = vst.msk [vmem:[#allocation2] sm:$0xf] %vm1183, %v1181
        %1185 = vrot.lane.b32.xlu0 %v808, 104
        %v1186 = vpop.permute.xlu0 %1185
        %1187 = vrot.lane.b32.xlu0 %v809, 104
        %v1188 = vpop.permute.xlu0 %1187
        %v1190 = vsel %vm811, %v1186, 0
        %v1193 = vsel %vm811, %v1188, 0
        %1195 = vmatprep.subr.bf16.mxu0 0
        %1196 = vmatpush1.bf16.xpose.msra.mxu0 %v1193
        %1197 = vmatprep.subr.bf16.mxu0 0
        %1198 = vmatpush1.bf16.xpose.msra.mxu0 0
        %1199 = vmatprep.subr.bf16.mxu0 0
        %1200 = vmatpush1.bf16.xpose.msra.mxu0 0
        %1201 = vmatprep.subr.bf16.mxu0 0
        %1202 = vmatpush1.bf16.xpose.msra.mxu0 0
        %1203 = vmatprep.subr.bf16.mxu0 0
        %1204 = vmatpush1.bf16.xpose.msra.mxu0 0
        %1205 = vmatprep.subr.bf16.mxu0 0
        %1206 = vmatpush1.bf16.xpose.msra.mxu0 0
        %1207 = vmatprep.subr.bf16.mxu0 0
        %1208 = vmatpush1.bf16.xpose.msra.mxu0 0
        %1209 = vmatprep.subr.bf16.mxu0 0
        %1210 = vmatpush1.bf16.xpose.msra.mxu0 0
        %1211 = vmatprep.subr.bf16.mxu0 0
        %1212 = vmatpush1.bf16.xpose.msra.mxu0 0
        %1213 = vmatprep.subr.bf16.mxu0 0
        %1214 = vmatpush1.bf16.xpose.msra.mxu0 0
        %1215 = vmatprep.subr.bf16.mxu0 0
        %1216 = vmatpush1.bf16.xpose.msra.mxu0 0
        %1217 = vmatprep.subr.bf16.mxu0 0
        %1218 = vmatpush1.bf16.xpose.msra.mxu0 0
        %1219 = vmatprep.subr.bf16.mxu0 0
        %1220 = vmatpush1.bf16.xpose.msra.mxu0 0
        %1221 = vmatprep.subr.bf16.mxu0 0
        %1222 = vmatpush1.bf16.xpose.msra.mxu0 0
        %1223 = vmatprep.subr.bf16.mxu0 0
        %1224 = vmatpush1.bf16.xpose.msra.mxu0 0
        %1225 = vmatprep.subr.bf16.mxu0 0
        %1226 = vmatpush1.bf16.xpose.msra.mxu0 0
        %1227 = vmatprep.mubr.bf16.mxu0 0
        %1228 = vmatmul.mubr.bf16.gmra.mrb[0].mxu0 %v1190
        %v1229 = vpop.f32.mrb[0].mxu0
        %v1230 = vadd.f32 0.0, %v1229
        %v1231 = vpop.f32.mrb[0].mxu0
        %v1232 = vpop.f32.mrb[0].mxu0
        %v1233 = vpop.f32.mrb[0].mxu0
        %1234 = vdwg.mxu0
        %v1235 = vsel %vm811, %v1230, -inf
        %v1236 = vrot.slane %v1235, 4
        %v1237 = vmax.f32 %v1235, %v1236
        %v1238 = vrot.slane %v1237, 2
        %v1239 = vmax.f32 %v1237, %v1238
        %v1240 = vrot.slane %v1239, 1
        %v1241 = vmax.f32 %v1239, %v1240
        %v1242 = vsub.f32 %v1230, %v1241
        %v1243 = vmul.f32 %v1242, 1.442695
        %v1244 = vpow.pop %v1243
        %v1245 = vsel %vm811, %v1244, 0.0
        %v1246 = vrot.slane %v1245, 4
        %v1247 = vadd.f32 %v1245, %v1246
        %v1248 = vrot.slane %v1247, 2
        %v1249 = vadd.f32 %v1247, %v1248
        %v1250 = vrot.slane %v1249, 1
        %v1251 = vadd.f32 %v1249, %v1250
        %v1252 = vrcp.pop %v1251
        %v1253 = vmul.f32 %v1244, %v1252
        %v1254 = vpack.c.bf16 %v1253, %v1253
        %1255 = vrot.lane.b32.xlu0 %v810, 104
        %v1256 = vpop.permute.xlu0 %1255
        %v1258 = vsel %vm811, %v1254, 0
        %v1261 = vsel %vm881, %v1256, 0
        %1263 = vmatprep.subr.bf16.mxu0 0
        %1264 = vmatpush1.bf16.msra.mxu0 %v1261
        %1265 = vmatprep.subr.bf16.mxu0 0
        %1266 = vmatpush1.bf16.msra.mxu0 0
        %1267 = vmatprep.subr.bf16.mxu0 0
        %1268 = vmatpush1.bf16.msra.mxu0 0
        %1269 = vmatprep.subr.bf16.mxu0 0
        %1270 = vmatpush1.bf16.msra.mxu0 0
        %1271 = vmatprep.subr.bf16.mxu0 0
        %1272 = vmatpush1.bf16.msra.mxu0 0
        %1273 = vmatprep.subr.bf16.mxu0 0
        %1274 = vmatpush1.bf16.msra.mxu0 0
        %1275 = vmatprep.subr.bf16.mxu0 0
        %1276 = vmatpush1.bf16.msra.mxu0 0
        %1277 = vmatprep.subr.bf16.mxu0 0
        %1278 = vmatpush1.bf16.msra.mxu0 0
        %1279 = vmatprep.subr.bf16.mxu0 0
        %1280 = vmatpush1.bf16.msra.mxu0 0
        %1281 = vmatprep.subr.bf16.mxu0 0
        %1282 = vmatpush1.bf16.msra.mxu0 0
        %1283 = vmatprep.subr.bf16.mxu0 0
        %1284 = vmatpush1.bf16.msra.mxu0 0
        %1285 = vmatprep.subr.bf16.mxu0 0
        %1286 = vmatpush1.bf16.msra.mxu0 0
        %1287 = vmatprep.subr.bf16.mxu0 0
        %1288 = vmatpush1.bf16.msra.mxu0 0
        %1289 = vmatprep.subr.bf16.mxu0 0
        %1290 = vmatpush1.bf16.msra.mxu0 0
        %1291 = vmatprep.subr.bf16.mxu0 0
        %1292 = vmatpush1.bf16.msra.mxu0 0
        %1293 = vmatprep.subr.bf16.mxu0 0
        %1294 = vmatpush1.bf16.msra.mxu0 0
        %1295 = vmatprep.mubr.bf16.mxu0 0
        %1296 = vmatmul.mubr.bf16.gmra.mrb[0].mxu0 %v1258
        %v1297 = vpop.f32.mrb[0].mxu0
        %v1298 = vadd.f32 0.0, %v1297
        %v1299 = vpop.f32.mrb[0].mxu0
        %v1300 = vpop.f32.mrb[0].mxu0
        %v1301 = vpop.f32.mrb[0].mxu0
        %1302 = vdwg.mxu0
        %v1303 = vpack.c.bf16 %v1298, %v1298
        %v1305 = vunpack.c.l.b16 %v1303
        %v1306 = vpack.c.b16 %v1305, %v1305
        %1307 = vrot.lane.b32.xlu0 %v1306, 24
        %v1308 = vpop.permute.xlu0 %1307
        %vm1310 = vcmask 257216
        %1311 = vst.msk [vmem:[#allocation2] sm:$0xf] %vm1310, %v1308
        %v1312 = vld [vmem:[#allocation2] sm:$0xf]
        %v1313 = vld [vmem:[#allocation8] sm:$0xf]
        %v1314 = vld [vmem:[#allocation8 + $0x4] sm:$0xf]
        %v1315 = vld [vmem:[#allocation8 + $0x8] sm:$0xf]
        %v1316 = vld [vmem:[#allocation8 + $0xc] sm:$0xf]
        %v1317 = vld [vmem:[#allocation9] sm:$0x1]
        %v1319 = vlaneseq
        %v1320 = vshrl.u32 %v1319, 7
        %v1321 = vsub.s32 0, %v1320
        %v1322 = vrot.slane %v1317, %v1321
        %v1328 = vunpack.c.l.b16 %v1313
        %v1329 = vunpack.c.l.b16 %v1314
        %v1330 = vunpack.c.l.b16 %v1315
        %v1331 = vunpack.c.l.b16 %v1316
        %v1332 = vpack.c.b16 %v1329, %v1328
        %v1333 = vpack.c.b16 %v1331, %v1330
        %v1337 = vsel %vm637, %v1312, 0
        %1339 = vmatprep.subr.bf16.mxu0 0
        %1340 = vmatpush1.bf16.msra.mxu0 %v1332
        %1341 = vmatprep.subr.bf16.mxu0 0
        %1342 = vmatpush1.bf16.msra.mxu0 %v1333
        %1343 = vmatprep.subr.bf16.mxu0 0
        %1344 = vmatpush1.bf16.msra.mxu0 0
        %1345 = vmatprep.subr.bf16.mxu0 0
        %1346 = vmatpush1.bf16.msra.mxu0 0
        %1347 = vmatprep.subr.bf16.mxu0 0
        %1348 = vmatpush1.bf16.msra.mxu0 0
        %1349 = vmatprep.subr.bf16.mxu0 0
        %1350 = vmatpush1.bf16.msra.mxu0 0
        %1351 = vmatprep.subr.bf16.mxu0 0
        %1352 = vmatpush1.bf16.msra.mxu0 0
        %1353 = vmatprep.subr.bf16.mxu0 0
        %1354 = vmatpush1.bf16.msra.mxu0 0
        %1355 = vmatprep.subr.bf16.mxu0 0
        %1356 = vmatpush1.bf16.msra.mxu0 0
        %1357 = vmatprep.subr.bf16.mxu0 0
        %1358 = vmatpush1.bf16.msra.mxu0 0
        %1359 = vmatprep.subr.bf16.mxu0 0
        %1360 = vmatpush1.bf16.msra.mxu0 0
        %1361 = vmatprep.subr.bf16.mxu0 0
        %1362 = vmatpush1.bf16.msra.mxu0 0
        %1363 = vmatprep.subr.bf16.mxu0 0
        %1364 = vmatpush1.bf16.msra.mxu0 0
        %1365 = vmatprep.subr.bf16.mxu0 0
        %1366 = vmatpush1.bf16.msra.mxu0 0
        %1367 = vmatprep.subr.bf16.mxu0 0
        %1368 = vmatpush1.bf16.msra.mxu0 0
        %1369 = vmatprep.subr.bf16.mxu0 0
        %1370 = vmatpush1.bf16.msra.mxu0 0
        %1371 = vmatprep.mubr.bf16.mxu0 0
        %1372 = vmatmul.mubr.bf16.gmra.mrb[0].mxu0 %v1337
        %v1373 = vpop.f32.mrb[0].mxu0
        %v1374 = vadd.f32 %v1322, %v1373
        %v1375 = vpop.f32.mrb[0].mxu0
        %v1376 = vpop.f32.mrb[0].mxu0
        %v1377 = vpop.f32.mrb[0].mxu0
        %1378 = vdwg.mxu0
        %v1379 = vadd.f32 %v1374, %v612
        %v1380 = vsel %vm637, %v1379, 0.0
        %1381 = vadd.xlane.f32.xlu0 %v1380
        %v1382 = vpop.xlane.xlu0 %1381
        %v1383 = vrcp.pop 32.0
        %v1384 = vmul.f32 %v1382, %v1383
        %v1385 = vmul.f32 %v1379, %v1379
        %v1386 = vsel %vm637, %v1385, 0.0
        %1387 = vadd.xlane.f32.xlu0 %v1386
        %v1388 = vpop.xlane.xlu0 %1387
        %v1389 = vmul.f32 %v1388, %v1383
        %v1390 = vmul.f32 %v1384, %v1384
        %v1391 = vsub.f32 %v1389, %v1390
        %v1392 = vsub.f32 %v1379, %v1384
        %v1393 = vadd.f32 %v1391, 1e-05
        %v1394 = vrsqrt.pop %v1393
        %v1395 = vmul.f32 %v1392, %v1394
        %v1396 = vld [vmem:[#allocation11] sm:$0x1]
        %v1398 = vlaneseq
        %v1399 = vshrl.u32 %v1398, 7
        %v1400 = vsub.s32 0, %v1399
        %v1401 = vrot.slane %v1396, %v1400
        %v1403 = vmul.f32 %v1395, %v1401
        %v1404 = vld [vmem:[%s10] sm:$0x1]
        %v1406 = vlaneseq
        %v1407 = vshrl.u32 %v1406, 7
        %v1408 = vsub.s32 0, %v1407
        %v1409 = vrot.slane %v1404, %v1408
        %v1411 = vadd.f32 %v1403, %v1409
        %v1412 = vpack.c.bf16 %v1411, %v1411
        %v1413 = vld [vmem:[%s14] sm:$0x1]
        %v1415 = vlaneseq
        %v1416 = vshrl.u32 %v1415, 7
        %v1417 = vsub.s32 0, %v1416
        %v1418 = vrot.slane %v1413, %v1417
        %v1420 = vld [vmem:[%s11] sm:$0xf]
        %v1421 = vld [vmem:[%s11 + $0x4] sm:$0xf]
        %v1422 = vld [vmem:[%s11 + $0x8] sm:$0xf]
        %v1423 = vld [vmem:[%s11 + $0xc] sm:$0xf]
        %v1424 = vld [vmem:[%s12] sm:$0x1]
        %v1426 = vlaneseq
        %v1427 = vshrl.u32 %v1426, 7
        %v1428 = vsub.s32 0, %v1427
        %v1429 = vrot.slane %v1424, %v1428
        %v1435 = vunpack.c.l.b16 %v1420
        %v1436 = vunpack.c.l.b16 %v1421
        %v1437 = vunpack.c.l.b16 %v1422
        %v1438 = vunpack.c.l.b16 %v1423
        %v1439 = vpack.c.b16 %v1436, %v1435
        %v1440 = vpack.c.b16 %v1438, %v1437
        %v1444 = vsel %vm637, %v1412, 0
        %1446 = vmatprep.subr.bf16.mxu0 0
        %1447 = vmatpush1.bf16.msra.mxu0 %v1439
        %1448 = vmatprep.subr.bf16.mxu0 0
        %1449 = vmatpush1.bf16.msra.mxu0 %v1440
        %1450 = vmatprep.subr.bf16.mxu0 0
        %1451 = vmatpush1.bf16.msra.mxu0 0
        %1452 = vmatprep.subr.bf16.mxu0 0
        %1453 = vmatpush1.bf16.msra.mxu0 0
        %1454 = vmatprep.subr.bf16.mxu0 0
        %1455 = vmatpush1.bf16.msra.mxu0 0
        %1456 = vmatprep.subr.bf16.mxu0 0
        %1457 = vmatpush1.bf16.msra.mxu0 0
        %1458 = vmatprep.subr.bf16.mxu0 0
        %1459 = vmatpush1.bf16.msra.mxu0 0
        %1460 = vmatprep.subr.bf16.mxu0 0
        %1461 = vmatpush1.bf16.msra.mxu0 0
        %1462 = vmatprep.subr.bf16.mxu0 0
        %1463 = vmatpush1.bf16.msra.mxu0 0
        %1464 = vmatprep.subr.bf16.mxu0 0
        %1465 = vmatpush1.bf16.msra.mxu0 0
        %1466 = vmatprep.subr.bf16.mxu0 0
        %1467 = vmatpush1.bf16.msra.mxu0 0
        %1468 = vmatprep.subr.bf16.mxu0 0
        %1469 = vmatpush1.bf16.msra.mxu0 0
        %1470 = vmatprep.subr.bf16.mxu0 0
        %1471 = vmatpush1.bf16.msra.mxu0 0
        %1472 = vmatprep.subr.bf16.mxu0 0
        %1473 = vmatpush1.bf16.msra.mxu0 0
        %1474 = vmatprep.subr.bf16.mxu0 0
        %1475 = vmatpush1.bf16.msra.mxu0 0
        %1476 = vmatprep.subr.bf16.mxu0 0
        %1477 = vmatpush1.bf16.msra.mxu0 0
        %1478 = vmatprep.mubr.bf16.mxu0 0
        %1479 = vmatmul.mubr.bf16.gmra.mrb[0].mxu0 %v1444
        %v1480 = vpop.f32.mrb[0].mxu0
        %v1481 = vadd.f32 %v1429, %v1480
        %v1482 = vpop.f32.mrb[0].mxu0
        %v1483 = vpop.f32.mrb[0].mxu0
        %v1484 = vpop.f32.mrb[0].mxu0
        %1485 = vdwg.mxu0
        %v1486 = vmax.f32 %v1481, 0.0
        %v1487 = vpack.c.bf16 %v1486, %v1486
        %v1488 = vld [vmem:[%s13] sm:$0xf]
        %v1489 = vld [vmem:[%s13 + $0x4] sm:$0xf]
        %v1490 = vld [vmem:[%s13 + $0x8] sm:$0xf]
        %v1491 = vld [vmem:[%s13 + $0xc] sm:$0xf]
        %v1492 = vld [vmem:[%s13 + $0x10] sm:$0xf]
        %v1493 = vld [vmem:[%s13 + $0x14] sm:$0xf]
        %v1494 = vld [vmem:[%s13 + $0x18] sm:$0xf]
        %v1495 = vld [vmem:[%s13 + $0x1c] sm:$0xf]
        %v1504 = vunpack.c.l.b16 %v1488
        %v1505 = vunpack.c.l.b16 %v1489
        %v1506 = vunpack.c.l.b16 %v1490
        %v1507 = vunpack.c.l.b16 %v1491
        %v1508 = vunpack.c.l.b16 %v1492
        %v1509 = vunpack.c.l.b16 %v1493
        %v1510 = vunpack.c.l.b16 %v1494
        %v1511 = vunpack.c.l.b16 %v1495
        %v1512 = vpack.c.b16 %v1505, %v1504
        %v1513 = vpack.c.b16 %v1507, %v1506
        %v1514 = vpack.c.b16 %v1509, %v1508
        %v1515 = vpack.c.b16 %v1511, %v1510
        %vm1520 = vcmask 523264
        %v1522 = vsel %vm1520, %v1487, 0
        %1524 = vmatprep.subr.bf16.mxu0 0
        %1525 = vmatpush1.bf16.msra.mxu0 %v1512
        %1526 = vmatprep.subr.bf16.mxu0 0
        %1527 = vmatpush1.bf16.msra.mxu0 %v1513
        %1528 = vmatprep.subr.bf16.mxu0 0
        %1529 = vmatpush1.bf16.msra.mxu0 %v1514
        %1530 = vmatprep.subr.bf16.mxu0 0
        %1531 = vmatpush1.bf16.msra.mxu0 %v1515
        %1532 = vmatprep.subr.bf16.mxu0 0
        %1533 = vmatpush1.bf16.msra.mxu0 0
        %1534 = vmatprep.subr.bf16.mxu0 0
        %1535 = vmatpush1.bf16.msra.mxu0 0
        %1536 = vmatprep.subr.bf16.mxu0 0
        %1537 = vmatpush1.bf16.msra.mxu0 0
        %1538 = vmatprep.subr.bf16.mxu0 0
        %1539 = vmatpush1.bf16.msra.mxu0 0
        %1540 = vmatprep.subr.bf16.mxu0 0
        %1541 = vmatpush1.bf16.msra.mxu0 0
        %1542 = vmatprep.subr.bf16.mxu0 0
        %1543 = vmatpush1.bf16.msra.mxu0 0
        %1544 = vmatprep.subr.bf16.mxu0 0
        %1545 = vmatpush1.bf16.msra.mxu0 0
        %1546 = vmatprep.subr.bf16.mxu0 0
        %1547 = vmatpush1.bf16.msra.mxu0 0
        %1548 = vmatprep.subr.bf16.mxu0 0
        %1549 = vmatpush1.bf16.msra.mxu0 0
        %1550 = vmatprep.subr.bf16.mxu0 0
        %1551 = vmatpush1.bf16.msra.mxu0 0
        %1552 = vmatprep.subr.bf16.mxu0 0
        %1553 = vmatpush1.bf16.msra.mxu0 0
        %1554 = vmatprep.subr.bf16.mxu0 0
        %1555 = vmatpush1.bf16.msra.mxu0 0
        %1556 = vmatprep.mubr.bf16.mxu0 0
        %1557 = vmatmul.mubr.bf16.gmra.mrb[0].mxu0 %v1522
        %v1558 = vpop.f32.mrb[0].mxu0
        %v1559 = vadd.f32 0.0, %v1558
        %v1560 = vpop.f32.mrb[0].mxu0
        %v1561 = vpop.f32.mrb[0].mxu0
        %v1562 = vpop.f32.mrb[0].mxu0
        %1563 = vdwg.mxu0
        %v1564 = vadd.f32 %v1418, %v1559
        %v1565 = vadd.f32 %v1411, %v1564
        %v1566 = vsel %vm637, %v1565, 0.0
        %1567 = vadd.xlane.f32.xlu0 %v1566
        %v1568 = vpop.xlane.xlu0 %1567
        %v1569 = vmul.f32 %v1568, %v1383
        %v1570 = vmul.f32 %v1565, %v1565
        %v1571 = vsel %vm637, %v1570, 0.0
        %1572 = vadd.xlane.f32.xlu0 %v1571
        %v1573 = vpop.xlane.xlu0 %1572
        %v1574 = vmul.f32 %v1573, %v1383
        %v1575 = vmul.f32 %v1569, %v1569
        %v1576 = vsub.f32 %v1574, %v1575
        %v1577 = vsub.f32 %v1565, %v1569
        %v1578 = vadd.f32 %v1576, 1e-05
        %v1579 = vrsqrt.pop %v1578
        %v1580 = vmul.f32 %v1577, %v1579
        %v1581 = vld [vmem:[%s15] sm:$0x1]
        %v1583 = vlaneseq
        %v1584 = vshrl.u32 %v1583, 7
        %v1585 = vsub.s32 0, %v1584
        %v1586 = vrot.slane %v1581, %v1585
        %v1588 = vmul.f32 %v1580, %v1586
        %v1589 = vld [vmem:[%s16] sm:$0x1]
        %v1591 = vlaneseq
        %v1592 = vshrl.u32 %v1591, 7
        %v1593 = vsub.s32 0, %v1592
        %v1594 = vrot.slane %v1589, %v1593
        %v1596 = vadd.f32 %v1588, %v1594
        %1597 = vst.msk [vmem:[%s606] sm:$0xff] %vm637, %v1596
        %s1598 = sand.u32 %s404, 1
        %s1599 = scalar_lea.sflag [#allocation5], %s1598
        %s1600 = sand.u32 %s404, 1
        %s1601 = smul.addr %s1600, 8
        %s1602 = scalar_lea.vmem [#allocation12], %s1601
        // Predicated region
        $region109: #{tpu_custom_call.1} parent=87 // pred_check
          %p1603 = pneg %p414
        $region110: #{tpu_custom_call.1} parent=87 // pred_check_branch
          %1605 = sbr.rel (%p1603) target = $region112
        $region111: #{tpu_custom_call.1} parent=87 // pred_region
          %s1607 = ssub.s32 128, 128
          %1608 = vsyncadd %s1599, %s1607
          %s1609 = smul.addr %s34, 128
          %s1610 = scalar_lea.hbm %s17, %s1609
          %s1612 = sshll.u32 %s1602, 4
          %s1613 = int_to_ptr.vmem [resolvable:$true] %s1612
          %1615 = dma.vmem_to_hbm [thread:$0]  %s1613, 128, %s1610, %s1599
        $region112: #{tpu_custom_call.1} parent=87 // pred_fallthru
          _
      $region88: #{tpu_custom_call.1} parent=5 // pred_fallthru
        _
      %p1616 = scmp.le.s32.totalorder 2, %s29
      // Predicated region
      $region113: #{tpu_custom_call.1} parent=5 // pred_check
        %p1617 = pneg %p1616
      $region114: #{tpu_custom_call.1} parent=5 // pred_check_branch
        %1619 = sbr.rel (%p1617) target = $region116
      $region115: #{tpu_custom_call.1} parent=5 // pred_region
        %s1620 = ssub.s32 %s29, 2
        // Predicated region
        $region117: #{tpu_custom_call.1} parent=115 // pred_check
          %p1621 = pneg %p420
        $region118: #{tpu_custom_call.1} parent=115 // pred_check_branch
          %1623 = sbr.rel (%p1621) target = $region120
        $region119: #{tpu_custom_call.1} parent=115 // pred_region
          %s1624 = sand.u32 %s405, 1
          %s1625 = scalar_lea.sflag [#allocation5], %s1624
          %s1626 = sand.u32 %s405, 1
          %s1627 = smul.addr %s1626, 8
          %s1628 = scalar_lea.vmem [#allocation12], %s1627
          %1629 = dma.done %s1625, 128
        $region120: #{tpu_custom_call.1} parent=115 // pred_fallthru
          _
      $region116: #{tpu_custom_call.1} parent=5 // pred_fallthru
        _
    $region6: #{tpu_custom_call.1} parent=1 // loop_footer
      %s33 = sadd.s32 1, %s29
    $region7: #{tpu_custom_call.1} parent=1 // loop_footer_branch
      %28 = sbr.rel target = $region3
    $region8: #{tpu_custom_call.1} parent=1 // loop_exit
      _
    %1630 = vsyncpa [#allocation4], 1
    %s1631 = scalar_lea.sflag [#allocation4], 1
    %1632 = vsyncpa %s1631, 1
    %1633 = vsyncpa [#allocation7], 1
    %1634 = vsyncpa [#allocation10], 1
    %1635 = vsyncpa [#allocation5], 1
    %s1636 = scalar_lea.sflag [#allocation5], 1
    %1637 = vsyncpa %s1636, 1

// kernel: tpu_custom_call.1
$region0: #{tpu_custom_call.1}
  #allocation0 [shape = 'u32[]', space=smem, size = 0x4, offset = 0x4, fixed_abs, tag = 'smem constant byte address 0x4 - core index']
  #allocation1 [shape = 'u32[144,128]{1,0:T(1,128)}', space=vmem, size = 0x12000, scoped, tag = 'internal scratch']
  #allocation2 [shape = 'bf16[8,32]{1,0:T(8,128)(2,1)}', space=vmem, size = 0x800, scoped, tag = 'scratch operand']
  %s0 = inlined_call_operand.vmem [shape: f32[2,8,32], index: 0, kind: input, shape index: {}]
  %s1 = inlined_call_operand.vmem [shape: bf16[32,32], index: 1, kind: input, shape index: {}]
  %s2 = inlined_call_operand.vmem [shape: f32[1,32], index: 2, kind: input, shape index: {}]
  %s3 = inlined_call_operand.vmem [shape: bf16[32,32], index: 3, kind: input, shape index: {}]
  %s4 = inlined_call_operand.vmem [shape: f32[1,32], index: 4, kind: input, shape index: {}]
  %s5 = inlined_call_operand.hbm [shape: bf16[32,32], index: 5, kind: input, shape index: {}]
  %s6 = inlined_call_operand.hbm [shape: f32[1,32], index: 6, kind: input, shape index: {}]
  %s7 = inlined_call_operand.hbm [shape: bf16[32,32], index: 7, kind: input, shape index: {}]
  %s8 = inlined_call_operand.hbm [shape: f32[1,32], index: 8, kind: input, shape index: {}]
  %s9 = inlined_call_operand.hbm [shape: f32[1,32], index: 9, kind: input, shape index: {}]
  %s10 = inlined_call_operand.vmem [shape: f32[1,32], index: 10, kind: input, shape index: {}]
  %s11 = inlined_call_operand.vmem [shape: bf16[32,64], index: 11, kind: input, shape index: {}]
  %s12 = inlined_call_operand.vmem [shape: f32[1,64], index: 12, kind: input, shape index: {}]
  %s13 = inlined_call_operand.vmem [shape: bf16[64,32], index: 13, kind: input, shape index: {}]
  %s14 = inlined_call_operand.vmem [shape: f32[1,32], index: 14, kind: input, shape index: {}]
  %s15 = inlined_call_operand.vmem [shape: f32[1,32], index: 15, kind: input, shape index: {}]
  %s16 = inlined_call_operand.vmem [shape: f32[1,32], index: 16, kind: input, shape index: {}]
  %s17 = inlined_call_operand.hbm [shape: f32[2,8,32], index: 17, kind: output, shape index: {}]
  %s18 = sld [smem:[#allocation0]]
  $region121: #{tpu_custom_call.1} parent=0
    _
  %s20 = ssub.s32 1, %s18
  %s21 = scalar_select 0, %s20, %s18
  $region1: #{tpu_custom_call.1} parent=0
    #allocation3 [shape = 'u8[8192]{0}', space=vmem, size = 0x2000, scoped, tag = 'input window, operand 5, single buffered']
    #allocation4 [shape = 's32[2]{0}', space=sflag, size = 0x8, scoped, tag = 'scoped memory for tpu_custom_call.1']
    #allocation5 [shape = 's32[2]{0}', space=sflag, size = 0x8, scoped, tag = 'scoped memory for tpu_custom_call.1']
    #allocation6 [shape = 'u8[512]{0}', space=vmem, size = 0x400, scoped, tag = 'input window, operand 6, single buffered']
    #allocation7 [shape = 's32[1]{0}', space=sflag, size = 0x4, scoped, tag = 'scoped memory for tpu_custom_call.1']
    #allocation8 [shape = 'u8[8192]{0}', space=vmem, size = 0x2000, scoped, tag = 'input window, operand 7, single buffered']
    #allocation9 [shape = 'u8[512]{0}', space=vmem, size = 0x400, scoped, tag = 'input window, operand 8, single buffered']
    #allocation10 [shape = 's32[1]{0}', space=sflag, size = 0x4, scoped, tag = 'scoped memory for tpu_custom_call.1']
    #allocation11 [shape = 'u8[512]{0}', space=vmem, size = 0x400, scoped, tag = 'input window, operand 9, single buffered']
    #allocation12 [shape = 'u8[8192]{0}', space=vmem, size = 0x2000, scoped, tag = 'output window, operand 0']
    %22 = vsyncpa [#allocation4], 0
    %23 = vsyncpa [#allocation7], 0
    %24 = vsyncpa [#allocation10], 0
    %25 = vsyncpa [#allocation5], 0
    %s26 = scalar_lea.sflag [#allocation5], 1
    %27 = vsyncpa %s26, 0
    loop: start=0, step=1, limit=4
    $region2: #{tpu_custom_call.1} parent=1 // loop_pre_header
      _
    $region3: #{tpu_custom_call.1} parent=1 // loop_header
      %s29 = sphi 0, %s33
      %p30 = scmp.ge.s32.totalorder %s29, 4
      %s39 = sphi 0, %s41
      %s42 = sphi 0, %s39
      %s43 = sphi 0, %s42
      %s59 = sphi 0, %s43
      %s63 = sphi 0, %s63
      %s65 = sphi 0, %s63
      %s66 = sphi 0, %s65
      %s80 = sphi 0, %s66
      %s84 = sphi 0, %s84
      %s86 = sphi 0, %s84
      %s87 = sphi 0, %s86
      %s101 = sphi 0, %s87
      %s105 = sphi 0, %s105
      %s107 = sphi 0, %s105
      %s108 = sphi 0, %s107
      %s122 = sphi 0, %s108
      %s126 = sphi 0, %s126
      %s128 = sphi 0, %s126
      %s129 = sphi 0, %s128
      %s143 = sphi 0, %s129
      %s147 = sphi 0, %s147
      %s149 = sphi 0, %s147
      %s150 = sphi 0, %s149
      %s164 = sphi 0, %s150
      %s168 = sphi 0, %s168
      %s170 = sphi 0, %s168
      %s171 = sphi 0, %s170
      %s185 = sphi 0, %s171
      %s189 = sphi 0, %s189
      %s191 = sphi 0, %s189
      %s192 = sphi 0, %s191
      %s206 = sphi 0, %s192
      %s210 = sphi 0, %s210
      %s212 = sphi 0, %s210
      %s213 = sphi 0, %s212
      %s227 = sphi 0, %s213
      %s231 = sphi 0, %s231
      %s233 = sphi 0, %s231
      %s234 = sphi 0, %s233
      %s248 = sphi 0, %s234
      %s252 = sphi 0, %s252
      %s254 = sphi 0, %s252
      %s255 = sphi 0, %s254
      %s269 = sphi 0, %s255
      %s273 = sphi 0, %s273
      %s275 = sphi 0, %s273
      %s276 = sphi 0, %s275
      %s290 = sphi 0, %s276
      %s294 = sphi 0, %s294
      %s296 = sphi 0, %s294
      %s297 = sphi 0, %s296
      %s311 = sphi 0, %s297
      %s315 = sphi 0, %s315
      %s317 = sphi 0, %s315
      %s318 = sphi 0, %s317
      %s332 = sphi 0, %s318
      %s336 = sphi 0, %s336
      %s338 = sphi 0, %s336
      %s339 = sphi 0, %s338
      %s353 = sphi 0, %s339
      %s357 = sphi 0, %s357
      %s359 = sphi 0, %s357
      %s360 = sphi 0, %s359
      %s374 = sphi 0, %s360
      %s378 = sphi 0, %s378
      %s380 = sphi 0, %s378
      %s381 = sphi 0, %s380
      %s395 = sphi 0, %s381
      %s401 = sphi 0, %s403
      %s404 = sphi 0, %s401
      %s405 = sphi 0, %s404
      %s421 = sphi 0, %s405
    $region4: #{tpu_custom_call.1} parent=1 // loop_header_branch
      %32 = sbr.rel (%p30) target = $region8
    $region5: #{tpu_custom_call.1} parent=1 // loop_body
      %s34 = ssub.s32 %s29, 1
      %s35 = ssub.s32 %s29, 2
      %s36 = sadd.s32 %s29, 1
      %s37 = ssub.s32 %s29, %s36
      %p38 = scmp.eq.s32.totalorder %s37, 0
      %s40 = sadd.s32 %s39, 1
      %s41 = scalar_select %p38, %s39, %s40
      %p44 = pneg %p38
      %p45 = scmp.eq.s32.totalorder %s29, 1
      %p46 = por %p44, %p45
      %p47 = scmp.ne.s32.totalorder %s39, %s42
      %p48 = scmp.eq.s32.totalorder %s29, 0
      %p49 = por %p47, %p48
      %p50 = scmp.ne.s32.totalorder %s39, %s42
      %p51 = scmp.eq.s32.totalorder %s34, 1
      %p52 = por %p50, %p51
      %p53 = scmp.ne.s32.totalorder %s42, %s43
      %p54 = scmp.eq.s32.totalorder %s34, 0
      %p55 = por %p53, %p54
      %p56 = scmp.ne.s32.totalorder %s42, %s43
      %p57 = scmp.eq.s32.totalorder %s35, 1
      %p58 = por %p56, %p57
      %p60 = scmp.ne.s32.totalorder %s43, %s59
      %p61 = scmp.eq.s32.totalorder %s35, 0
      %p62 = por %p60, %p61
      %s64 = sadd.s32 %s63, 1
      %p67 = scmp.eq.s32.totalorder %s29, 1
      %p68 = scmp.ne.s32.totalorder %s63, %s65
      %p69 = scmp.eq.s32.totalorder %s29, 0
      %p70 = por %p68, %p69
      %p71 = scmp.ne.s32.totalorder %s63, %s65
      %p72 = scmp.eq.s32.totalorder %s34, 1
      %p73 = por %p71, %p72
      %p74 = scmp.ne.s32.totalorder %s65, %s66
      %p75 = scmp.eq.s32.totalorder %s34, 0
      %p76 = por %p74, %p75
      %p77 = scmp.ne.s32.totalorder %s65, %s66
      %p78 = scmp.eq.s32.totalorder %s35, 1
      %p79 = por %p77, %p78
      %p81 = scmp.ne.s32.totalorder %s66, %s80
      %p82 = scmp.eq.s32.totalorder %s35, 0
      %p83 = por %p81, %p82
      %s85 = sadd.s32 %s84, 1
      %p88 = scmp.eq.s32.totalorder %s29, 1
      %p89 = scmp.ne.s32.totalorder %s84, %s86
      %p90 = scmp.eq.s32.totalorder %s29, 0
      %p91 = por %p89, %p90
      %p92 = scmp.ne.s32.totalorder %s84, %s86
      %p93 = scmp.eq.s32.totalorder %s34, 1
      %p94 = por %p92, %p93
      %p95 = scmp.ne.s32.totalorder %s86, %s87
      %p96 = scmp.eq.s32.totalorder %s34, 0
      %p97 = por %p95, %p96
      %p98 = scmp.ne.s32.totalorder %s86, %s87
      %p99 = scmp.eq.s32.totalorder %s35, 1
      %p100 = por %p98, %p99
      %p102 = scmp.ne.s32.totalorder %s87, %s101
      %p103 = scmp.eq.s32.totalorder %s35, 0
      %p104 = por %p102, %p103
      %s106 = sadd.s32 %s105, 1
      %p109 = scmp.eq.s32.totalorder %s29, 1
      %p110 = scmp.ne.s32.totalorder %s105, %s107
      %p111 = scmp.eq.s32.totalorder %s29, 0
      %p112 = por %p110, %p111
      %p113 = scmp.ne.s32.totalorder %s105, %s107
      %p114 = scmp.eq.s32.totalorder %s34, 1
      %p115 = por %p113, %p114
      %p116 = scmp.ne.s32.totalorder %s107, %s108
      %p117 = scmp.eq.s32.totalorder %s34, 0
      %p118 = por %p116, %p117
      %p119 = scmp.ne.s32.totalorder %s107, %s108
      %p120 = scmp.eq.s32.totalorder %s35, 1
      %p121 = por %p119, %p120
      %p123 = scmp.ne.s32.totalorder %s108, %s122
      %p124 = scmp.eq.s32.totalorder %s35, 0
      %p125 = por %p123, %p124
      %s127 = sadd.s32 %s126, 1
      %p130 = scmp.eq.s32.totalorder %s29, 1
      %p131 = scmp.ne.s32.totalorder %s126, %s128
      %p132 = scmp.eq.s32.totalorder %s29, 0
      %p133 = por %p131, %p132
      %p134 = scmp.ne.s32.totalorder %s126, %s128
      %p135 = scmp.eq.s32.totalorder %s34, 1
      %p136 = por %p134, %p135
      %p137 = scmp.ne.s32.totalorder %s128, %s129
      %p138 = scmp.eq.s32.totalorder %s34, 0
      %p139 = por %p137, %p138
      %p140 = scmp.ne.s32.totalorder %s128, %s129
      %p141 = scmp.eq.s32.totalorder %s35, 1
      %p142 = por %p140, %p141
      %p144 = scmp.ne.s32.totalorder %s129, %s143
      %p145 = scmp.eq.s32.totalorder %s35, 0
      %p146 = por %p144, %p145
      %s148 = sadd.s32 %s147, 1
      %p151 = scmp.eq.s32.totalorder %s29, 1
      %p152 = scmp.ne.s32.totalorder %s147, %s149
      %p153 = scmp.eq.s32.totalorder %s29, 0
      %p154 = por %p152, %p153
      %p155 = scmp.ne.s32.totalorder %s147, %s149
      %p156 = scmp.eq.s32.totalorder %s34, 1
      %p157 = por %p155, %p156
      %p158 = scmp.ne.s32.totalorder %s149, %s150
      %p159 = scmp.eq.s32.totalorder %s34, 0
      %p160 = por %p158, %p159
      %p161 = scmp.ne.s32.totalorder %s149, %s150
      %p162 = scmp.eq.s32.totalorder %s35, 1
      %p163 = por %p161, %p162
      %p165 = scmp.ne.s32.totalorder %s150, %s164
      %p166 = scmp.eq.s32.totalorder %s35, 0
      %p167 = por %p165, %p166
      %s169 = sadd.s32 %s168, 1
      %p172 = scmp.eq.s32.totalorder %s29, 1
      %p173 = scmp.ne.s32.totalorder %s168, %s170
      %p174 = scmp.eq.s32.totalorder %s29, 0
      %p175 = por %p173, %p174
      %p176 = scmp.ne.s32.totalorder %s168, %s170
      %p177 = scmp.eq.s32.totalorder %s34, 1
      %p178 = por %p176, %p177
      %p179 = scmp.ne.s32.totalorder %s170, %s171
      %p180 = scmp.eq.s32.totalorder %s34, 0
      %p181 = por %p179, %p180
      %p182 = scmp.ne.s32.totalorder %s170, %s171
      %p183 = scmp.eq.s32.totalorder %s35, 1
      %p184 = por %p182, %p183
      %p186 = scmp.ne.s32.totalorder %s171, %s185
      %p187 = scmp.eq.s32.totalorder %s35, 0
      %p188 = por %p186, %p187
      %s190 = sadd.s32 %s189, 1
      %p193 = scmp.eq.s32.totalorder %s29, 1
      %p194 = scmp.ne.s32.totalorder %s189, %s191
      %p195 = scmp.eq.s32.totalorder %s29, 0
      %p196 = por %p194, %p195
      %p197 = scmp.ne.s32.totalorder %s189, %s191
      %p198 = scmp.eq.s32.totalorder %s34, 1
      %p199 = por %p197, %p198
      %p200 = scmp.ne.s32.totalorder %s191, %s192
      %p201 = scmp.eq.s32.totalorder %s34, 0
      %p202 = por %p200, %p201
      %p203 = scmp.ne.s32.totalorder %s191, %s192
      %p204 = scmp.eq.s32.totalorder %s35, 1
      %p205 = por %p203, %p204
      %p207 = scmp.ne.s32.totalorder %s192, %s206
      %p208 = scmp.eq.s32.totalorder %s35, 0
      %p209 = por %p207, %p208
      %s211 = sadd.s32 %s210, 1
      %p214 = scmp.eq.s32.totalorder %s29, 1
      %p215 = scmp.ne.s32.totalorder %s210, %s212
      %p216 = scmp.eq.s32.totalorder %s29, 0
      %p217 = por %p215, %p216
      %p218 = scmp.ne.s32.totalorder %s210, %s212
      %p219 = scmp.eq.s32.totalorder %s34, 1
      %p220 = por %p218, %p219
      %p221 = scmp.ne.s32.totalorder %s212, %s213
      %p222 = scmp.eq.s32.totalorder %s34, 0
      %p223 = por %p221, %p222
      %p224 = scmp.ne.s32.totalorder %s212, %s213
      %p225 = scmp.eq.s32.totalorder %s35, 1
      %p226 = por %p224, %p225
      %p228 = scmp.ne.s32.totalorder %s213, %s227
      %p229 = scmp.eq.s32.totalorder %s35, 0
      %p230 = por %p228, %p229
      %s232 = sadd.s32 %s231, 1
      %p235 = scmp.eq.s32.totalorder %s29, 1
      %p236 = scmp.ne.s32.totalorder %s231, %s233
      %p237 = scmp.eq.s32.totalorder %s29, 0
      %p238 = por %p236, %p237
      %p239 = scmp.ne.s32.totalorder %s231, %s233
      %p240 = scmp.eq.s32.totalorder %s34, 1
      %p241 = por %p239, %p240
      %p242 = scmp.ne.s32.totalorder %s233, %s234
      %p243 = scmp.eq.s32.totalorder %s34, 0
      %p244 = por %p242, %p243
      %p245 = scmp.ne.s32.totalorder %s233, %s234
      %p246 = scmp.eq.s32.totalorder %s35, 1
      %p247 = por %p245, %p246
      %p249 = scmp.ne.s32.totalorder %s234, %s248
      %p250 = scmp.eq.s32.totalorder %s35, 0
      %p251 = por %p249, %p250
      %s253 = sadd.s32 %s252, 1
      %p256 = scmp.eq.s32.totalorder %s29, 1
      %p257 = scmp.ne.s32.totalorder %s252, %s254
      %p258 = scmp.eq.s32.totalorder %s29, 0
      %p259 = por %p257, %p258
      %p260 = scmp.ne.s32.totalorder %s252, %s254
      %p261 = scmp.eq.s32.totalorder %s34, 1
      %p262 = por %p260, %p261
      %p263 = scmp.ne.s32.totalorder %s254, %s255
      %p264 = scmp.eq.s32.totalorder %s34, 0
      %p265 = por %p263, %p264
      %p266 = scmp.ne.s32.totalorder %s254, %s255
      %p267 = scmp.eq.s32.totalorder %s35, 1
      %p268 = por %p266, %p267
      %p270 = scmp.ne.s32.totalorder %s255, %s269
      %p271 = scmp.eq.s32.totalorder %s35, 0
      %p272 = por %p270, %p271
      %s274 = sadd.s32 %s273, 1
      %p277 = scmp.eq.s32.totalorder %s29, 1
      %p278 = scmp.ne.s32.totalorder %s273, %s275
      %p279 = scmp.eq.s32.totalorder %s29, 0
      %p280 = por %p278, %p279
      %p281 = scmp.ne.s32.totalorder %s273, %s275
      %p282 = scmp.eq.s32.totalorder %s34, 1
      %p283 = por %p281, %p282
      %p284 = scmp.ne.s32.totalorder %s275, %s276
      %p285 = scmp.eq.s32.totalorder %s34, 0
      %p286 = por %p284, %p285
      %p287 = scmp.ne.s32.totalorder %s275, %s276
      %p288 = scmp.eq.s32.totalorder %s35, 1
      %p289 = por %p287, %p288
      %p291 = scmp.ne.s32.totalorder %s276, %s290
      %p292 = scmp.eq.s32.totalorder %s35, 0
      %p293 = por %p291, %p292
      %s295 = sadd.s32 %s294, 1
      %p298 = scmp.eq.s32.totalorder %s29, 1
      %p299 = scmp.ne.s32.totalorder %s294, %s296
      %p300 = scmp.eq.s32.totalorder %s29, 0
      %p301 = por %p299, %p300
      %p302 = scmp.ne.s32.totalorder %s294, %s296
      %p303 = scmp.eq.s32.totalorder %s34, 1
      %p304 = por %p302, %p303
      %p305 = scmp.ne.s32.totalorder %s296, %s297
      %p306 = scmp.eq.s32.totalorder %s34, 0
      %p307 = por %p305, %p306
      %p308 = scmp.ne.s32.totalorder %s296, %s297
      %p309 = scmp.eq.s32.totalorder %s35, 1
      %p310 = por %p308, %p309
      %p312 = scmp.ne.s32.totalorder %s297, %s311
      %p313 = scmp.eq.s32.totalorder %s35, 0
      %p314 = por %p312, %p313
      %s316 = sadd.s32 %s315, 1
      %p319 = scmp.eq.s32.totalorder %s29, 1
      %p320 = scmp.ne.s32.totalorder %s315, %s317
      %p321 = scmp.eq.s32.totalorder %s29, 0
      %p322 = por %p320, %p321
      %p323 = scmp.ne.s32.totalorder %s315, %s317
      %p324 = scmp.eq.s32.totalorder %s34, 1
      %p325 = por %p323, %p324
      %p326 = scmp.ne.s32.totalorder %s317, %s318
      %p327 = scmp.eq.s32.totalorder %s34, 0
      %p328 = por %p326, %p327
      %p329 = scmp.ne.s32.totalorder %s317, %s318
      %p330 = scmp.eq.s32.totalorder %s35, 1
      %p331 = por %p329, %p330
      %p333 = scmp.ne.s32.totalorder %s318, %s332
      %p334 = scmp.eq.s32.totalorder %s35, 0
      %p335 = por %p333, %p334
      %s337 = sadd.s32 %s336, 1
      %p340 = scmp.eq.s32.totalorder %s29, 1
      %p341 = scmp.ne.s32.totalorder %s336, %s338
      %p342 = scmp.eq.s32.totalorder %s29, 0
      %p343 = por %p341, %p342
      %p344 = scmp.ne.s32.totalorder %s336, %s338
      %p345 = scmp.eq.s32.totalorder %s34, 1
      %p346 = por %p344, %p345
      %p347 = scmp.ne.s32.totalorder %s338, %s339
      %p348 = scmp.eq.s32.totalorder %s34, 0
      %p349 = por %p347, %p348
      %p350 = scmp.ne.s32.totalorder %s338, %s339
      %p351 = scmp.eq.s32.totalorder %s35, 1
      %p352 = por %p350, %p351
      %p354 = scmp.ne.s32.totalorder %s339, %s353
      %p355 = scmp.eq.s32.totalorder %s35, 0
      %p356 = por %p354, %p355
      %s358 = sadd.s32 %s357, 1
      %p361 = scmp.eq.s32.totalorder %s29, 1
      %p362 = scmp.ne.s32.totalorder %s357, %s359
      %p363 = scmp.eq.s32.totalorder %s29, 0
      %p364 = por %p362, %p363
      %p365 = scmp.ne.s32.totalorder %s357, %s359
      %p366 = scmp.eq.s32.totalorder %s34, 1
      %p367 = por %p365, %p366
      %p368 = scmp.ne.s32.totalorder %s359, %s360
      %p369 = scmp.eq.s32.totalorder %s34, 0
      %p370 = por %p368, %p369
      %p371 = scmp.ne.s32.totalorder %s359, %s360
      %p372 = scmp.eq.s32.totalorder %s35, 1
      %p373 = por %p371, %p372
      %p375 = scmp.ne.s32.totalorder %s360, %s374
      %p376 = scmp.eq.s32.totalorder %s35, 0
      %p377 = por %p375, %p376
      %s379 = sadd.s32 %s378, 1
      %p382 = scmp.eq.s32.totalorder %s29, 1
      %p383 = scmp.ne.s32.totalorder %s378, %s380
      %p384 = scmp.eq.s32.totalorder %s29, 0
      %p385 = por %p383, %p384
      %p386 = scmp.ne.s32.totalorder %s378, %s380
      %p387 = scmp.eq.s32.totalorder %s34, 1
      %p388 = por %p386, %p387
      %p389 = scmp.ne.s32.totalorder %s380, %s381
      %p390 = scmp.eq.s32.totalorder %s34, 0
      %p391 = por %p389, %p390
      %p392 = scmp.ne.s32.totalorder %s380, %s381
      %p393 = scmp.eq.s32.totalorder %s35, 1
      %p394 = por %p392, %p393
      %p396 = scmp.ne.s32.totalorder %s381, %s395
      %p397 = scmp.eq.s32.totalorder %s35, 0
      %p398 = por %p396, %p397
      %s399 = ssub.s32 %s29, %s36
      %p400 = scmp.eq.s32.totalorder %s399, 0
      %s402 = sadd.s32 %s401, 1
      %s403 = scalar_select %p400, %s401, %s402
      %p406 = pneg %p400
      %p407 = scmp.eq.s32.totalorder %s29, 1
      %p408 = por %p406, %p407
      %p409 = scmp.ne.s32.totalorder %s401, %s404
      %p410 = scmp.eq.s32.totalorder %s29, 0
      %p411 = por %p409, %p410
      %p412 = scmp.ne.s32.totalorder %s401, %s404
      %p413 = scmp.eq.s32.totalorder %s34, 1
      %p414 = por %p412, %p413
      %p415 = scmp.ne.s32.totalorder %s404, %s405
      %p416 = scmp.eq.s32.totalorder %s34, 0
      %p417 = por %p415, %p416
      %p418 = scmp.ne.s32.totalorder %s404, %s405
      %p419 = scmp.eq.s32.totalorder %s35, 1
      %p420 = por %p418, %p419
      %p422 = scmp.ne.s32.totalorder %s405, %s421
      %p423 = scmp.eq.s32.totalorder %s35, 0
      %p424 = por %p422, %p423
      %p425 = scmp.le.s32.totalorder 1, %s29
      %p426 = scmp.lt.s32.totalorder %s29, 3
      %p427 = pnand %p425, %p426
      %p428 = pneg %p427
      // Predicated region
      $region9: #{tpu_custom_call.1} parent=5 // pred_check
        _
      $region10: #{tpu_custom_call.1} parent=5 // pred_check_branch
        %430 = sbr.rel (%p427) target = $region12
      $region11: #{tpu_custom_call.1} parent=5 // pred_region
        %s431 = ssub.s32 %s29, 1
        // Predicated region
        $region13: #{tpu_custom_call.1} parent=11 // pred_check
          %p432 = pneg %p76
        $region14: #{tpu_custom_call.1} parent=11 // pred_check_branch
          %434 = sbr.rel (%p432) target = $region16
        $region15: #{tpu_custom_call.1} parent=11 // pred_region
          _
        $region16: #{tpu_custom_call.1} parent=11 // pred_fallthru
          _
        // Predicated region
        $region17: #{tpu_custom_call.1} parent=11 // pred_check
          %p435 = pneg %p97
        $region18: #{tpu_custom_call.1} parent=11 // pred_check_branch
          %437 = sbr.rel (%p435) target = $region20
        $region19: #{tpu_custom_call.1} parent=11 // pred_region
          _
        $region20: #{tpu_custom_call.1} parent=11 // pred_fallthru
          _
        // Predicated region
        $region21: #{tpu_custom_call.1} parent=11 // pred_check
          %p438 = pneg %p118
        $region22: #{tpu_custom_call.1} parent=11 // pred_check_branch
          %440 = sbr.rel (%p438) target = $region24
        $region23: #{tpu_custom_call.1} parent=11 // pred_region
          _
        $region24: #{tpu_custom_call.1} parent=11 // pred_fallthru
          _
        // Predicated region
        $region25: #{tpu_custom_call.1} parent=11 // pred_check
          %p441 = pneg %p139
        $region26: #{tpu_custom_call.1} parent=11 // pred_check_branch
          %443 = sbr.rel (%p441) target = $region28
        $region27: #{tpu_custom_call.1} parent=11 // pred_region
          _
        $region28: #{tpu_custom_call.1} parent=11 // pred_fallthru
          _
        // Predicated region
        $region29: #{tpu_custom_call.1} parent=11 // pred_check
          %p444 = pneg %p160
        $region30: #{tpu_custom_call.1} parent=11 // pred_check_branch
          %446 = sbr.rel (%p444) target = $region32
        $region31: #{tpu_custom_call.1} parent=11 // pred_region
          %s448 = ssub.s32 256, 256
          %449 = vsyncadd [#allocation4], %s448
          %s450 = sshll.u32 [#allocation3], 4
          %s451 = int_to_ptr.vmem [resolvable:$true] %s450
          %456 = dma.hbm_to_vmem [thread:$0]  %s5, 256, %s451, [#allocation4], 64, 64, 4
        $region32: #{tpu_custom_call.1} parent=11 // pred_fallthru
          _
        // Predicated region
        $region33: #{tpu_custom_call.1} parent=11 // pred_check
          %p457 = pneg %p181
        $region34: #{tpu_custom_call.1} parent=11 // pred_check_branch
          %459 = sbr.rel (%p457) target = $region36
        $region35: #{tpu_custom_call.1} parent=11 // pred_region
          %s461 = ssub.s32 16, 16
          %462 = vsyncadd [#allocation7], %s461
          %s464 = sshll.u32 [#allocation6], 4
          %s465 = int_to_ptr.vmem [resolvable:$true] %s464
          %467 = dma.hbm_to_vmem [thread:$0]  %s6, 16, %s465, [#allocation7]
        $region36: #{tpu_custom_call.1} parent=11 // pred_fallthru
          _
        // Predicated region
        $region37: #{tpu_custom_call.1} parent=11 // pred_check
          %p468 = pneg %p202
        $region38: #{tpu_custom_call.1} parent=11 // pred_check_branch
          %470 = sbr.rel (%p468) target = $region40
        $region39: #{tpu_custom_call.1} parent=11 // pred_region
          %s472 = ssub.s32 256, 256
          %473 = vsyncadd [#allocation7], %s472
          %s474 = sshll.u32 [#allocation8], 4
          %s475 = int_to_ptr.vmem [resolvable:$true] %s474
          %480 = dma.hbm_to_vmem [thread:$0]  %s7, 256, %s475, [#allocation7], 64, 64, 4
        $region40: #{tpu_custom_call.1} parent=11 // pred_fallthru
          _
        // Predicated region
        $region41: #{tpu_custom_call.1} parent=11 // pred_check
          %p481 = pneg %p223
        $region42: #{tpu_custom_call.1} parent=11 // pred_check_branch
          %483 = sbr.rel (%p481) target = $region44
        $region43: #{tpu_custom_call.1} parent=11 // pred_region
          %s485 = ssub.s32 16, 16
          %486 = vsyncadd [#allocation10], %s485
          %s488 = sshll.u32 [#allocation9], 4
          %s489 = int_to_ptr.vmem [resolvable:$true] %s488
          %491 = dma.hbm_to_vmem [thread:$0]  %s8, 16, %s489, [#allocation10]
        $region44: #{tpu_custom_call.1} parent=11 // pred_fallthru
          _
        // Predicated region
        $region45: #{tpu_custom_call.1} parent=11 // pred_check
          %p492 = pneg %p244
        $region46: #{tpu_custom_call.1} parent=11 // pred_check_branch
          %494 = sbr.rel (%p492) target = $region48
        $region47: #{tpu_custom_call.1} parent=11 // pred_region
          %s496 = ssub.s32 16, 16
          %497 = vsyncadd [#allocation10], %s496
          %s499 = sshll.u32 [#allocation11], 4
          %s500 = int_to_ptr.vmem [resolvable:$true] %s499
          %502 = dma.hbm_to_vmem [thread:$0]  %s9, 16, %s500, [#allocation10]
        $region48: #{tpu_custom_call.1} parent=11 // pred_fallthru
          _
        // Predicated region
        $region49: #{tpu_custom_call.1} parent=11 // pred_check
          %p503 = pneg %p265
        $region50: #{tpu_custom_call.1} parent=11 // pred_check_branch
          %505 = sbr.rel (%p503) target = $region52
        $region51: #{tpu_custom_call.1} parent=11 // pred_region
          _
        $region52: #{tpu_custom_call.1} parent=11 // pred_fallthru
          _
        // Predicated region
        $region53: #{tpu_custom_call.1} parent=11 // pred_check
          %p506 = pneg %p286
        $region54: #{tpu_custom_call.1} parent=11 // pred_check_branch
          %508 = sbr.rel (%p506) target = $region56
        $region55: #{tpu_custom_call.1} parent=11 // pred_region
          _
        $region56: #{tpu_custom_call.1} parent=11 // pred_fallthru
          _
        // Predicated region
        $region57: #{tpu_custom_call.1} parent=11 // pred_check
          %p509 = pneg %p307
        $region58: #{tpu_custom_call.1} parent=11 // pred_check_branch
          %511 = sbr.rel (%p509) target = $region60
        $region59: #{tpu_custom_call.1} parent=11 // pred_region
          _
        $region60: #{tpu_custom_call.1} parent=11 // pred_fallthru
          _
        // Predicated region
        $region61: #{tpu_custom_call.1} parent=11 // pred_check
          %p512 = pneg %p328
        $region62: #{tpu_custom_call.1} parent=11 // pred_check_branch
          %514 = sbr.rel (%p512) target = $region64
        $region63: #{tpu_custom_call.1} parent=11 // pred_region
          _
        $region64: #{tpu_custom_call.1} parent=11 // pred_fallthru
          _
        // Predicated region
        $region65: #{tpu_custom_call.1} parent=11 // pred_check
          %p515 = pneg %p349
        $region66: #{tpu_custom_call.1} parent=11 // pred_check_branch
          %517 = sbr.rel (%p515) target = $region68
        $region67: #{tpu_custom_call.1} parent=11 // pred_region
          _
        $region68: #{tpu_custom_call.1} parent=11 // pred_fallthru
          _
        // Predicated region
        $region69: #{tpu_custom_call.1} parent=11 // pred_check
          %p518 = pneg %p370
        $region70: #{tpu_custom_call.1} parent=11 // pred_check_branch
          %520 = sbr.rel (%p518) target = $region72
        $region71: #{tpu_custom_call.1} parent=11 // pred_region
          _
        $region72: #{tpu_custom_call.1} parent=11 // pred_fallthru
          _
        // Predicated region
        $region73: #{tpu_custom_call.1} parent=11 // pred_check
          %p521 = pneg %p391
        $region74: #{tpu_custom_call.1} parent=11 // pred_check_branch
          %523 = sbr.rel (%p521) target = $region76
        $region75: #{tpu_custom_call.1} parent=11 // pred_region
          _
        $region76: #{tpu_custom_call.1} parent=11 // pred_fallthru
          _
      $region12: #{tpu_custom_call.1} parent=5 // pred_fallthru
        _
      %p524 = scmp.lt.s32.totalorder %s29, 2
      // Predicated region
      $region77: #{tpu_custom_call.1} parent=5 // pred_check
        %p525 = pneg %p524
      $region78: #{tpu_custom_call.1} parent=5 // pred_check_branch
        %527 = sbr.rel (%p525) target = $region80
      $region79: #{tpu_custom_call.1} parent=5 // pred_region
        // Predicated region
        $region81: #{tpu_custom_call.1} parent=79 // pred_check
          %p528 = pneg %p49
        $region82: #{tpu_custom_call.1} parent=79 // pred_check_branch
          %530 = sbr.rel (%p528) target = $region84
        $region83: #{tpu_custom_call.1} parent=79 // pred_region
          %p531 = scmp.lt.s32.totalorder %s29, 1
          %s532 = scalar_select %p531, %s29, 1
          %s533 = smul.addr %s532, 8
          %s534 = scalar_lea.vmem %s0, %s533
        $region84: #{tpu_custom_call.1} parent=79 // pred_fallthru
          _
      $region80: #{tpu_custom_call.1} parent=5 // pred_fallthru
        _
      %p535 = scmp.le.s32.totalorder 1, %s29
      %p536 = scmp.lt.s32.totalorder %s29, 3
      %p537 = pnand %p535, %p536
      %p538 = pneg %p537
      // Predicated region
      $region85: #{tpu_custom_call.1} parent=5 // pred_check
        _
      $region86: #{tpu_custom_call.1} parent=5 // pred_check_branch
        %540 = sbr.rel (%p537) target = $region88
      $region87: #{tpu_custom_call.1} parent=5 // pred_region
        %s541 = ssub.s32 %s29, 1
        // Predicated region
        $region89: #{tpu_custom_call.1} parent=87 // pred_check
          %p542 = pneg %p160
        $region90: #{tpu_custom_call.1} parent=87 // pred_check_branch
          %544 = sbr.rel (%p542) target = $region92
        $region91: #{tpu_custom_call.1} parent=87 // pred_region
          %545 = dma.done [#allocation4], 256
        $region92: #{tpu_custom_call.1} parent=87 // pred_fallthru
          _
        // Predicated region
        $region93: #{tpu_custom_call.1} parent=87 // pred_check
          %p546 = pneg %p181
        $region94: #{tpu_custom_call.1} parent=87 // pred_check_branch
          %548 = sbr.rel (%p546) target = $region96
        $region95: #{tpu_custom_call.1} parent=87 // pred_region
          %549 = dma.done [#allocation7], 16
        $region96: #{tpu_custom_call.1} parent=87 // pred_fallthru
          _
        // Predicated region
        $region97: #{tpu_custom_call.1} parent=87 // pred_check
          %p550 = pneg %p202
        $region98: #{tpu_custom_call.1} parent=87 // pred_check_branch
          %552 = sbr.rel (%p550) target = $region100
        $region99: #{tpu_custom_call.1} parent=87 // pred_region
          %553 = dma.done [#allocation7], 256
        $region100: #{tpu_custom_call.1} parent=87 // pred_fallthru
          _
        // Predicated region
        $region101: #{tpu_custom_call.1} parent=87 // pred_check
          %p554 = pneg %p223
        $region102: #{tpu_custom_call.1} parent=87 // pred_check_branch
          %556 = sbr.rel (%p554) target = $region104
        $region103: #{tpu_custom_call.1} parent=87 // pred_region
          %557 = dma.done [#allocation10], 16
        $region104: #{tpu_custom_call.1} parent=87 // pred_fallthru
          _
        // Predicated region
        $region105: #{tpu_custom_call.1} parent=87 // pred_check
          %p558 = pneg %p244
        $region106: #{tpu_custom_call.1} parent=87 // pred_check_branch
          %560 = sbr.rel (%p558) target = $region108
        $region107: #{tpu_custom_call.1} parent=87 // pred_region
          %561 = dma.done [#allocation10], 16
        $region108: #{tpu_custom_call.1} parent=87 // pred_fallthru
          _
        %p562 = scmp.lt.s32.totalorder %s34, 1
        %s563 = scalar_select %p562, %s34, 1
        %s564 = smul.addr %s563, 8
        %s565 = scalar_lea.vmem %s0, %s564
        %p566 = pneg %p55
        %p567 = pneg %p52
        %p568 = pneg %p76
        %p569 = pneg %p73
        %p570 = pneg %p97
        %p571 = pneg %p94
        %p572 = pneg %p118
        %p573 = pneg %p115
        %p574 = pneg %p139
        %p575 = pneg %p136
        %p576 = pneg %p160
        %p577 = pneg %p157
        %p578 = pneg %p181
        %p579 = pneg %p178
        %p580 = pneg %p202
        %p581 = pneg %p199
        %p582 = pneg %p223
        %p583 = pneg %p220
        %p584 = pneg %p244
        %p585 = pneg %p241
        %p586 = pneg %p265
        %p587 = pneg %p262
        %p588 = pneg %p286
        %p589 = pneg %p283
        %p590 = pneg %p307
        %p591 = pneg %p304
        %p592 = pneg %p328
        %p593 = pneg %p325
        %p594 = pneg %p349
        %p595 = pneg %p346
        %p596 = pneg %p370
        %p597 = pneg %p367
        %p598 = pneg %p391
        %p599 = pneg %p388
        %p600 = pneg %p417
        %p601 = pneg %p414
        %s602 = sand.u32 %s404, 1
        %s603 = scalar_lea.sflag [#allocation5], %s602
        %s604 = sand.u32 %s404, 1
        %s605 = smul.addr %s604, 8
        %s606 = scalar_lea.vmem [#allocation12], %s605
        %p607 = scmp.lt.s32.totalorder %s34, 1
        %s608 = scalar_select %p607, %s34, 1
        %s609 = smul.addr %s608, 8
        %s610 = scalar_lea.vmem %s0, %s609
        %v612 = vld [vmem:[%s610] sm:$0xff]
        %v613 = vpack.c.bf16 %v612, %v612
        %v614 = vld [vmem:[%s1] sm:$0xf]
        %v615 = vld [vmem:[%s1 + $0x4] sm:$0xf]
        %v616 = vld [vmem:[%s1 + $0x8] sm:$0xf]
        %v617 = vld [vmem:[%s1 + $0xc] sm:$0xf]
        %v618 = vld [vmem:[%s2] sm:$0x1]
        %v620 = vlaneseq
        %v621 = vshrl.u32 %v620, 7
        %v622 = vsub.s32 0, %v621
        %v623 = vrot.slane %v618, %v622
        %v629 = vunpack.c.l.b16 %v614
        %v630 = vunpack.c.l.b16 %v615
        %v631 = vunpack.c.l.b16 %v616
        %v632 = vunpack.c.l.b16 %v617
        %v633 = vpack.c.b16 %v630, %v629
        %v634 = vpack.c.b16 %v632, %v631
        %vm637 = vcmask 261120
        %v639 = vsel %vm637, %v613, 0
        %641 = vmatprep.subr.bf16.mxu0 0
        %642 = vmatpush1.bf16.msra.mxu0 %v633
        %643 = vmatprep.subr.bf16.mxu0 0
        %644 = vmatpush1.bf16.msra.mxu0 %v634
        %645 = vmatprep.subr.bf16.mxu0 0
        %646 = vmatpush1.bf16.msra.mxu0 0
        %647 = vmatprep.subr.bf16.mxu0 0
        %648 = vmatpush1.bf16.msra.mxu0 0
        %649 = vmatprep.subr.bf16.mxu0 0
        %650 = vmatpush1.bf16.msra.mxu0 0
        %651 = vmatprep.subr.bf16.mxu0 0
        %652 = vmatpush1.bf16.msra.mxu0 0
        %653 = vmatprep.subr.bf16.mxu0 0
        %654 = vmatpush1.bf16.msra.mxu0 0
        %655 = vmatprep.subr.bf16.mxu0 0
        %656 = vmatpush1.bf16.msra.mxu0 0
        %657 = vmatprep.subr.bf16.mxu0 0
        %658 = vmatpush1.bf16.msra.mxu0 0
        %659 = vmatprep.subr.bf16.mxu0 0
        %660 = vmatpush1.bf16.msra.mxu0 0
        %661 = vmatprep.subr.bf16.mxu0 0
        %662 = vmatpush1.bf16.msra.mxu0 0
        %663 = vmatprep.subr.bf16.mxu0 0
        %664 = vmatpush1.bf16.msra.mxu0 0
        %665 = vmatprep.subr.bf16.mxu0 0
        %666 = vmatpush1.bf16.msra.mxu0 0
        %667 = vmatprep.subr.bf16.mxu0 0
        %668 = vmatpush1.bf16.msra.mxu0 0
        %669 = vmatprep.subr.bf16.mxu0 0
        %670 = vmatpush1.bf16.msra.mxu0 0
        %671 = vmatprep.subr.bf16.mxu0 0
        %672 = vmatpush1.bf16.msra.mxu0 0
        %673 = vmatprep.mubr.bf16.mxu0 0
        %674 = vmatmul.mubr.bf16.gmra.mrb[0].mxu0 %v639
        %v675 = vpop.f32.mrb[0].mxu0
        %v676 = vadd.f32 %v623, %v675
        %v677 = vpop.f32.mrb[0].mxu0
        %v678 = vpop.f32.mrb[0].mxu0
        %v679 = vpop.f32.mrb[0].mxu0
        %680 = vdwg.mxu0
        %v681 = vld [vmem:[%s3] sm:$0xf]
        %v682 = vld [vmem:[%s3 + $0x4] sm:$0xf]
        %v683 = vld [vmem:[%s3 + $0x8] sm:$0xf]
        %v684 = vld [vmem:[%s3 + $0xc] sm:$0xf]
        %v685 = vld [vmem:[%s4] sm:$0x1]
        %v687 = vlaneseq
        %v688 = vshrl.u32 %v687, 7
        %v689 = vsub.s32 0, %v688
        %v690 = vrot.slane %v685, %v689
        %v696 = vunpack.c.l.b16 %v681
        %v697 = vunpack.c.l.b16 %v682
        %v698 = vunpack.c.l.b16 %v683
        %v699 = vunpack.c.l.b16 %v684
        %v700 = vpack.c.b16 %v697, %v696
        %v701 = vpack.c.b16 %v699, %v698
        %704 = vmatprep.subr.bf16.mxu0 0
        %705 = vmatpush1.bf16.msra.mxu0 %v700
        %706 = vmatprep.subr.bf16.mxu0 0
        %707 = vmatpush1.bf16.msra.mxu0 %v701
        %708 = vmatprep.subr.bf16.mxu0 0
        %709 = vmatpush1.bf16.msra.mxu0 0
        %710 = vmatprep.subr.bf16.mxu0 0
        %711 = vmatpush1.bf16.msra.mxu0 0
        %712 = vmatprep.subr.bf16.mxu0 0
        %713 = vmatpush1.bf16.msra.mxu0 0
        %714 = vmatprep.subr.bf16.mxu0 0
        %715 = vmatpush1.bf16.msra.mxu0 0
        %716 = vmatprep.subr.bf16.mxu0 0
        %717 = vmatpush1.bf16.msra.mxu0 0
        %718 = vmatprep.subr.bf16.mxu0 0
        %719 = vmatpush1.bf16.msra.mxu0 0
        %720 = vmatprep.subr.bf16.mxu0 0
        %721 = vmatpush1.bf16.msra.mxu0 0
        %722 = vmatprep.subr.bf16.mxu0 0
        %723 = vmatpush1.bf16.msra.mxu0 0
        %724 = vmatprep.subr.bf16.mxu0 0
        %725 = vmatpush1.bf16.msra.mxu0 0
        %726 = vmatprep.subr.bf16.mxu0 0
        %727 = vmatpush1.bf16.msra.mxu0 0
        %728 = vmatprep.subr.bf16.mxu0 0
        %729 = vmatpush1.bf16.msra.mxu0 0
        %730 = vmatprep.subr.bf16.mxu0 0
        %731 = vmatpush1.bf16.msra.mxu0 0
        %732 = vmatprep.subr.bf16.mxu0 0
        %733 = vmatpush1.bf16.msra.mxu0 0
        %734 = vmatprep.subr.bf16.mxu0 0
        %735 = vmatpush1.bf16.msra.mxu0 0
        %736 = vmatprep.mubr.bf16.mxu0 0
        %737 = vmatmul.mubr.bf16.gmra.mrb[0].mxu0 %v639
        %v738 = vpop.f32.mrb[0].mxu0
        %v739 = vadd.f32 %v690, %v738
        %v740 = vpop.f32.mrb[0].mxu0
        %v741 = vpop.f32.mrb[0].mxu0
        %v742 = vpop.f32.mrb[0].mxu0
        %743 = vdwg.mxu0
        %v744 = vld [vmem:[#allocation3] sm:$0xf]
        %v745 = vld [vmem:[#allocation3 + $0x4] sm:$0xf]
        %v746 = vld [vmem:[#allocation3 + $0x8] sm:$0xf]
        %v747 = vld [vmem:[#allocation3 + $0xc] sm:$0xf]
        %v748 = vld [vmem:[#allocation6] sm:$0x1]
        %v750 = vlaneseq
        %v751 = vshrl.u32 %v750, 7
        %v752 = vsub.s32 0, %v751
        %v753 = vrot.slane %v748, %v752
        %v759 = vunpack.c.l.b16 %v744
        %v760 = vunpack.c.l.b16 %v745
        %v761 = vunpack.c.l.b16 %v746
        %v762 = vunpack.c.l.b16 %v747
        %v763 = vpack.c.b16 %v760, %v759
        %v764 = vpack.c.b16 %v762, %v761
        %767 = vmatprep.subr.bf16.mxu0 0
        %768 = vmatpush1.bf16.msra.mxu0 %v763
        %769 = vmatprep.subr.bf16.mxu0 0
        %770 = vmatpush1.bf16.msra.mxu0 %v764
        %771 = vmatprep.subr.bf16.mxu0 0
        %772 = vmatpush1.bf16.msra.mxu0 0
        %773 = vmatprep.subr.bf16.mxu0 0
        %774 = vmatpush1.bf16.msra.mxu0 0
        %775 = vmatprep.subr.bf16.mxu0 0
        %776 = vmatpush1.bf16.msra.mxu0 0
        %777 = vmatprep.subr.bf16.mxu0 0
        %778 = vmatpush1.bf16.msra.mxu0 0
        %779 = vmatprep.subr.bf16.mxu0 0
        %780 = vmatpush1.bf16.msra.mxu0 0
        %781 = vmatprep.subr.bf16.mxu0 0
        %782 = vmatpush1.bf16.msra.mxu0 0
        %783 = vmatprep.subr.bf16.mxu0 0
        %784 = vmatpush1.bf16.msra.mxu0 0
        %785 = vmatprep.subr.bf16.mxu0 0
        %786 = vmatpush1.bf16.msra.mxu0 0
        %787 = vmatprep.subr.bf16.mxu0 0
        %788 = vmatpush1.bf16.msra.mxu0 0
        %789 = vmatprep.subr.bf16.mxu0 0
        %790 = vmatpush1.bf16.msra.mxu0 0
        %791 = vmatprep.subr.bf16.mxu0 0
        %792 = vmatpush1.bf16.msra.mxu0 0
        %793 = vmatprep.subr.bf16.mxu0 0
        %794 = vmatpush1.bf16.msra.mxu0 0
        %795 = vmatprep.subr.bf16.mxu0 0
        %796 = vmatpush1.bf16.msra.mxu0 0
        %797 = vmatprep.subr.bf16.mxu0 0
        %798 = vmatpush1.bf16.msra.mxu0 0
        %799 = vmatprep.mubr.bf16.mxu0 0
        %800 = vmatmul.mubr.bf16.gmra.mrb[0].mxu0 %v639
        %v801 = vpop.f32.mrb[0].mxu0
        %v802 = vadd.f32 %v753, %v801
        %v803 = vpop.f32.mrb[0].mxu0
        %v804 = vpop.f32.mrb[0].mxu0
        %v805 = vpop.f32.mrb[0].mxu0
        %806 = vdwg.mxu0
        %v807 = vmul.f32 %v676, 0.17677669
        %v808 = vpack.c.bf16 %v807, %v807
        %v809 = vpack.c.bf16 %v739, %v739
        %v810 = vpack.c.bf16 %v802, %v802
        %vm811 = vcmask 64512
        %v813 = vsel %vm811, %v808, 0
        %v816 = vsel %vm811, %v809, 0
        %818 = vmatprep.subr.bf16.mxu0 0
        %819 = vmatpush1.bf16.xpose.msra.mxu0 %v816
        %820 = vmatprep.subr.bf16.mxu0 0
        %821 = vmatpush1.bf16.xpose.msra.mxu0 0
        %822 = vmatprep.subr.bf16.mxu0 0
        %823 = vmatpush1.bf16.xpose.msra.mxu0 0
        %824 = vmatprep.subr.bf16.mxu0 0
        %825 = vmatpush1.bf16.xpose.msra.mxu0 0
        %826 = vmatprep.subr.bf16.mxu0 0
        %827 = vmatpush1.bf16.xpose.msra.mxu0 0
        %828 = vmatprep.subr.bf16.mxu0 0
        %829 = vmatpush1.bf16.xpose.msra.mxu0 0
        %830 = vmatprep.subr.bf16.mxu0 0
        %831 = vmatpush1.bf16.xpose.msra.mxu0 0
        %832 = vmatprep.subr.bf16.mxu0 0
        %833 = vmatpush1.bf16.xpose.msra.mxu0 0
        %834 = vmatprep.subr.bf16.mxu0 0
        %835 = vmatpush1.bf16.xpose.msra.mxu0 0
        %836 = vmatprep.subr.bf16.mxu0 0
        %837 = vmatpush1.bf16.xpose.msra.mxu0 0
        %838 = vmatprep.subr.bf16.mxu0 0
        %839 = vmatpush1.bf16.xpose.msra.mxu0 0
        %840 = vmatprep.subr.bf16.mxu0 0
        %841 = vmatpush1.bf16.xpose.msra.mxu0 0
        %842 = vmatprep.subr.bf16.mxu0 0
        %843 = vmatpush1.bf16.xpose.msra.mxu0 0
        %844 = vmatprep.subr.bf16.mxu0 0
        %845 = vmatpush1.bf16.xpose.msra.mxu0 0
        %846 = vmatprep.subr.bf16.mxu0 0
        %847 = vmatpush1.bf16.xpose.msra.mxu0 0
        %848 = vmatprep.subr.bf16.mxu0 0
        %849 = vmatpush1.bf16.xpose.msra.mxu0 0
        %850 = vmatprep.mubr.bf16.mxu0 0
        %851 = vmatmul.mubr.bf16.gmra.mrb[0].mxu0 %v813
        %v852 = vpop.f32.mrb[0].mxu0
        %v853 = vadd.f32 0.0, %v852
        %v854 = vpop.f32.mrb[0].mxu0
        %v855 = vpop.f32.mrb[0].mxu0
        %v856 = vpop.f32.mrb[0].mxu0
        %857 = vdwg.mxu0
        %v858 = vsel %vm811, %v853, -inf
        %v859 = vrot.slane %v858, 4
        %v860 = vmax.f32 %v858, %v859
        %v861 = vrot.slane %v860, 2
        %v862 = vmax.f32 %v860, %v861
        %v863 = vrot.slane %v862, 1
        %v864 = vmax.f32 %v862, %v863
        %v865 = vsub.f32 %v853, %v864
        %v866 = vmul.f32 %v865, 1.442695
        %v867 = vpow.pop %v866
        %v868 = vsel %vm811, %v867, 0.0
        %v869 = vrot.slane %v868, 4
        %v870 = vadd.f32 %v868, %v869
        %v871 = vrot.slane %v870, 2
        %v872 = vadd.f32 %v870, %v871
        %v873 = vrot.slane %v872, 1
        %v874 = vadd.f32 %v872, %v873
        %v875 = vrcp.pop %v874
        %v876 = vmul.f32 %v867, %v875
        %v877 = vpack.c.bf16 %v876, %v876
        %v879 = vsel %vm811, %v877, 0
        %vm881 = vcmask 1043456
        %v883 = vsel %vm881, %v810, 0
        %885 = vmatprep.subr.bf16.mxu0 0
        %886 = vmatpush1.bf16.msra.mxu0 %v883
        %887 = vmatprep.subr.bf16.mxu0 0
        %888 = vmatpush1.bf16.msra.mxu0 0
        %889 = vmatprep.subr.bf16.mxu0 0
        %890 = vmatpush1.bf16.msra.mxu0 0
        %891 = vmatprep.subr.bf16.mxu0 0
        %892 = vmatpush1.bf16.msra.mxu0 0
        %893 = vmatprep.subr.bf16.mxu0 0
        %894 = vmatpush1.bf16.msra.mxu0 0
        %895 = vmatprep.subr.bf16.mxu0 0
        %896 = vmatpush1.bf16.msra.mxu0 0
        %897 = vmatprep.subr.bf16.mxu0 0
        %898 = vmatpush1.bf16.msra.mxu0 0
        %899 = vmatprep.subr.bf16.mxu0 0
        %900 = vmatpush1.bf16.msra.mxu0 0
        %901 = vmatprep.subr.bf16.mxu0 0
        %902 = vmatpush1.bf16.msra.mxu0 0
        %903 = vmatprep.subr.bf16.mxu0 0
        %904 = vmatpush1.bf16.msra.mxu0 0
        %905 = vmatprep.subr.bf16.mxu0 0
        %906 = vmatpush1.bf16.msra.mxu0 0
        %907 = vmatprep.subr.bf16.mxu0 0
        %908 = vmatpush1.bf16.msra.mxu0 0
        %909 = vmatprep.subr.bf16.mxu0 0
        %910 = vmatpush1.bf16.msra.mxu0 0
        %911 = vmatprep.subr.bf16.mxu0 0
        %912 = vmatpush1.bf16.msra.mxu0 0
        %913 = vmatprep.subr.bf16.mxu0 0
        %914 = vmatpush1.bf16.msra.mxu0 0
        %915 = vmatprep.subr.bf16.mxu0 0
        %916 = vmatpush1.bf16.msra.mxu0 0
        %917 = vmatprep.mubr.bf16.mxu0 0
        %918 = vmatmul.mubr.bf16.gmra.mrb[0].mxu0 %v879
        %v919 = vpop.f32.mrb[0].mxu0
        %v920 = vadd.f32 0.0, %v919
        %v921 = vpop.f32.mrb[0].mxu0
        %v922 = vpop.f32.mrb[0].mxu0
        %v923 = vpop.f32.mrb[0].mxu0
        %924 = vdwg.mxu0
        %v925 = vpack.c.bf16 %v920, %v920
        %vm926 = vcmask 60416
        %927 = vst.msk [vmem:[#allocation2] sm:$0xf] %vm926, %v925
        %929 = vrot.lane.b32.xlu0 %v808, 120
        %v930 = vpop.permute.xlu0 %929
        %932 = vrot.lane.b32.xlu0 %v809, 120
        %v933 = vpop.permute.xlu0 %932
        %v935 = vsel %vm811, %v930, 0
        %v938 = vsel %vm811, %v933, 0
        %940 = vmatprep.subr.bf16.mxu0 0
        %941 = vmatpush1.bf16.xpose.msra.mxu0 %v938
        %942 = vmatprep.subr.bf16.mxu0 0
        %943 = vmatpush1.bf16.xpose.msra.mxu0 0
        %944 = vmatprep.subr.bf16.mxu0 0
        %945 = vmatpush1.bf16.xpose.msra.mxu0 0
        %946 = vmatprep.subr.bf16.mxu0 0
        %947 = vmatpush1.bf16.xpose.msra.mxu0 0
        %948 = vmatprep.subr.bf16.mxu0 0
        %949 = vmatpush1.bf16.xpose.msra.mxu0 0
        %950 = vmatprep.subr.bf16.mxu0 0
        %951 = vmatpush1.bf16.xpose.msra.mxu0 0
        %952 = vmatprep.subr.bf16.mxu0 0
        %953 = vmatpush1.bf16.xpose.msra.mxu0 0
        %954 = vmatprep.subr.bf16.mxu0 0
        %955 = vmatpush1.bf16.xpose.msra.mxu0 0
        %956 = vmatprep.subr.bf16.mxu0 0
        %957 = vmatpush1.bf16.xpose.msra.mxu0 0
        %958 = vmatprep.subr.bf16.mxu0 0
        %959 = vmatpush1.bf16.xpose.msra.mxu0 0
        %960 = vmatprep.subr.bf16.mxu0 0
        %961 = vmatpush1.bf16.xpose.msra.mxu0 0
        %962 = vmatprep.subr.bf16.mxu0 0
        %963 = vmatpush1.bf16.xpose.msra.mxu0 0
        %964 = vmatprep.subr.bf16.mxu0 0
        %965 = vmatpush1.bf16.xpose.msra.mxu0 0
        %966 = vmatprep.subr.bf16.mxu0 0
        %967 = vmatpush1.bf16.xpose.msra.mxu0 0
        %968 = vmatprep.subr.bf16.mxu0 0
        %969 = vmatpush1.bf16.xpose.msra.mxu0 0
        %970 = vmatprep.subr.bf16.mxu0 0
        %971 = vmatpush1.bf16.xpose.msra.mxu0 0
        %972 = vmatprep.mubr.bf16.mxu0 0
        %973 = vmatmul.mubr.bf16.gmra.mrb[0].mxu0 %v935
        %v974 = vpop.f32.mrb[0].mxu0
        %v975 = vadd.f32 0.0, %v974
        %v976 = vpop.f32.mrb[0].mxu0
        %v977 = vpop.f32.mrb[0].mxu0
        %v978 = vpop.f32.mrb[0].mxu0
        %979 = vdwg.mxu0
        %v980 = vsel %vm811, %v975, -inf
        %v981 = vrot.slane %v980, 4
        %v982 = vmax.f32 %v980, %v981
        %v983 = vrot.slane %v982, 2
        %v984 = vmax.f32 %v982, %v983
        %v985 = vrot.slane %v984, 1
        %v986 = vmax.f32 %v984, %v985
        %v987 = vsub.f32 %v975, %v986
        %v988 = vmul.f32 %v987, 1.442695
        %v989 = vpow.pop %v988
        %v990 = vsel %vm811, %v989, 0.0
        %v991 = vrot.slane %v990, 4
        %v992 = vadd.f32 %v990, %v991
        %v993 = vrot.slane %v992, 2
        %v994 = vadd.f32 %v992, %v993
        %v995 = vrot.slane %v994, 1
        %v996 = vadd.f32 %v994, %v995
        %v997 = vrcp.pop %v996
        %v998 = vmul.f32 %v989, %v997
        %v999 = vpack.c.bf16 %v998, %v998
        %1001 = vrot.lane.b32.xlu0 %v810, 120
        %v1002 = vpop.permute.xlu0 %1001
        %v1004 = vsel %vm811, %v999, 0
        %v1007 = vsel %vm881, %v1002, 0
        %1009 = vmatprep.subr.bf16.mxu0 0
        %1010 = vmatpush1.bf16.msra.mxu0 %v1007
        %1011 = vmatprep.subr.bf16.mxu0 0
        %1012 = vmatpush1.bf16.msra.mxu0 0
        %1013 = vmatprep.subr.bf16.mxu0 0
        %1014 = vmatpush1.bf16.msra.mxu0 0
        %1015 = vmatprep.subr.bf16.mxu0 0
        %1016 = vmatpush1.bf16.msra.mxu0 0
        %1017 = vmatprep.subr.bf16.mxu0 0
        %1018 = vmatpush1.bf16.msra.mxu0 0
        %1019 = vmatprep.subr.bf16.mxu0 0
        %1020 = vmatpush1.bf16.msra.mxu0 0
        %1021 = vmatprep.subr.bf16.mxu0 0
        %1022 = vmatpush1.bf16.msra.mxu0 0
        %1023 = vmatprep.subr.bf16.mxu0 0
        %1024 = vmatpush1.bf16.msra.mxu0 0
        %1025 = vmatprep.subr.bf16.mxu0 0
        %1026 = vmatpush1.bf16.msra.mxu0 0
        %1027 = vmatprep.subr.bf16.mxu0 0
        %1028 = vmatpush1.bf16.msra.mxu0 0
        %1029 = vmatprep.subr.bf16.mxu0 0
        %1030 = vmatpush1.bf16.msra.mxu0 0
        %1031 = vmatprep.subr.bf16.mxu0 0
        %1032 = vmatpush1.bf16.msra.mxu0 0
        %1033 = vmatprep.subr.bf16.mxu0 0
        %1034 = vmatpush1.bf16.msra.mxu0 0
        %1035 = vmatprep.subr.bf16.mxu0 0
        %1036 = vmatpush1.bf16.msra.mxu0 0
        %1037 = vmatprep.subr.bf16.mxu0 0
        %1038 = vmatpush1.bf16.msra.mxu0 0
        %1039 = vmatprep.subr.bf16.mxu0 0
        %1040 = vmatpush1.bf16.msra.mxu0 0
        %1041 = vmatprep.mubr.bf16.mxu0 0
        %1042 = vmatmul.mubr.bf16.gmra.mrb[0].mxu0 %v1004
        %v1043 = vpop.f32.mrb[0].mxu0
        %v1044 = vadd.f32 0.0, %v1043
        %v1045 = vpop.f32.mrb[0].mxu0
        %v1046 = vpop.f32.mrb[0].mxu0
        %v1047 = vpop.f32.mrb[0].mxu0
        %1048 = vdwg.mxu0
        %v1049 = vpack.c.bf16 %v1044, %v1044
        %v1051 = vunpack.c.l.b16 %v1049
        %v1052 = vpack.c.b16 %v1051, %v1051
        %1053 = vrot.lane.b32.xlu0 %v1052, 8
        %v1054 = vpop.permute.xlu0 %1053
        %vm1056 = vcmask 126016
        %1057 = vst.msk [vmem:[#allocation2] sm:$0xf] %vm1056, %v1054
        %1058 = vrot.lane.b32.xlu0 %v808, 112
        %v1059 = vpop.permute.xlu0 %1058
        %1060 = vrot.lane.b32.xlu0 %v809, 112
        %v1061 = vpop.permute.xlu0 %1060
        %v1063 = vsel %vm811, %v1059, 0
        %v1066 = vsel %vm811, %v1061, 0
        %1068 = vmatprep.subr.bf16.mxu0 0
        %1069 = vmatpush1.bf16.xpose.msra.mxu0 %v1066
        %1070 = vmatprep.subr.bf16.mxu0 0
        %1071 = vmatpush1.bf16.xpose.msra.mxu0 0
        %1072 = vmatprep.subr.bf16.mxu0 0
        %1073 = vmatpush1.bf16.xpose.msra.mxu0 0
        %1074 = vmatprep.subr.bf16.mxu0 0
        %1075 = vmatpush1.bf16.xpose.msra.mxu0 0
        %1076 = vmatprep.subr.bf16.mxu0 0
        %1077 = vmatpush1.bf16.xpose.msra.mxu0 0
        %1078 = vmatprep.subr.bf16.mxu0 0
        %1079 = vmatpush1.bf16.xpose.msra.mxu0 0
        %1080 = vmatprep.subr.bf16.mxu0 0
        %1081 = vmatpush1.bf16.xpose.msra.mxu0 0
        %1082 = vmatprep.subr.bf16.mxu0 0
        %1083 = vmatpush1.bf16.xpose.msra.mxu0 0
        %1084 = vmatprep.subr.bf16.mxu0 0
        %1085 = vmatpush1.bf16.xpose.msra.mxu0 0
        %1086 = vmatprep.subr.bf16.mxu0 0
        %1087 = vmatpush1.bf16.xpose.msra.mxu0 0
        %1088 = vmatprep.subr.bf16.mxu0 0
        %1089 = vmatpush1.bf16.xpose.msra.mxu0 0
        %1090 = vmatprep.subr.bf16.mxu0 0
        %1091 = vmatpush1.bf16.xpose.msra.mxu0 0
        %1092 = vmatprep.subr.bf16.mxu0 0
        %1093 = vmatpush1.bf16.xpose.msra.mxu0 0
        %1094 = vmatprep.subr.bf16.mxu0 0
        %1095 = vmatpush1.bf16.xpose.msra.mxu0 0
        %1096 = vmatprep.subr.bf16.mxu0 0
        %1097 = vmatpush1.bf16.xpose.msra.mxu0 0
        %1098 = vmatprep.subr.bf16.mxu0 0
        %1099 = vmatpush1.bf16.xpose.msra.mxu0 0
        %1100 = vmatprep.mubr.bf16.mxu0 0
        %1101 = vmatmul.mubr.bf16.gmra.mrb[0].mxu0 %v1063
        %v1102 = vpop.f32.mrb[0].mxu0
        %v1103 = vadd.f32 0.0, %v1102
        %v1104 = vpop.f32.mrb[0].mxu0
        %v1105 = vpop.f32.mrb[0].mxu0
        %v1106 = vpop.f32.mrb[0].mxu0
        %1107 = vdwg.mxu0
        %v1108 = vsel %vm811, %v1103, -inf
        %v1109 = vrot.slane %v1108, 4
        %v1110 = vmax.f32 %v1108, %v1109
        %v1111 = vrot.slane %v1110, 2
        %v1112 = vmax.f32 %v1110, %v1111
        %v1113 = vrot.slane %v1112, 1
        %v1114 = vmax.f32 %v1112, %v1113
        %v1115 = vsub.f32 %v1103, %v1114
        %v1116 = vmul.f32 %v1115, 1.442695
        %v1117 = vpow.pop %v1116
        %v1118 = vsel %vm811, %v1117, 0.0
        %v1119 = vrot.slane %v1118, 4
        %v1120 = vadd.f32 %v1118, %v1119
        %v1121 = vrot.slane %v1120, 2
        %v1122 = vadd.f32 %v1120, %v1121
        %v1123 = vrot.slane %v1122, 1
        %v1124 = vadd.f32 %v1122, %v1123
        %v1125 = vrcp.pop %v1124
        %v1126 = vmul.f32 %v1117, %v1125
        %v1127 = vpack.c.bf16 %v1126, %v1126
        %1128 = vrot.lane.b32.xlu0 %v810, 112
        %v1129 = vpop.permute.xlu0 %1128
        %v1131 = vsel %vm811, %v1127, 0
        %v1134 = vsel %vm881, %v1129, 0
        %1136 = vmatprep.subr.bf16.mxu0 0
        %1137 = vmatpush1.bf16.msra.mxu0 %v1134
        %1138 = vmatprep.subr.bf16.mxu0 0
        %1139 = vmatpush1.bf16.msra.mxu0 0
        %1140 = vmatprep.subr.bf16.mxu0 0
        %1141 = vmatpush1.bf16.msra.mxu0 0
        %1142 = vmatprep.subr.bf16.mxu0 0
        %1143 = vmatpush1.bf16.msra.mxu0 0
        %1144 = vmatprep.subr.bf16.mxu0 0
        %1145 = vmatpush1.bf16.msra.mxu0 0
        %1146 = vmatprep.subr.bf16.mxu0 0
        %1147 = vmatpush1.bf16.msra.mxu0 0
        %1148 = vmatprep.subr.bf16.mxu0 0
        %1149 = vmatpush1.bf16.msra.mxu0 0
        %1150 = vmatprep.subr.bf16.mxu0 0
        %1151 = vmatpush1.bf16.msra.mxu0 0
        %1152 = vmatprep.subr.bf16.mxu0 0
        %1153 = vmatpush1.bf16.msra.mxu0 0
        %1154 = vmatprep.subr.bf16.mxu0 0
        %1155 = vmatpush1.bf16.msra.mxu0 0
        %1156 = vmatprep.subr.bf16.mxu0 0
        %1157 = vmatpush1.bf16.msra.mxu0 0
        %1158 = vmatprep.subr.bf16.mxu0 0
        %1159 = vmatpush1.bf16.msra.mxu0 0
        %1160 = vmatprep.subr.bf16.mxu0 0
        %1161 = vmatpush1.bf16.msra.mxu0 0
        %1162 = vmatprep.subr.bf16.mxu0 0
        %1163 = vmatpush1.bf16.msra.mxu0 0
        %1164 = vmatprep.subr.bf16.mxu0 0
        %1165 = vmatpush1.bf16.msra.mxu0 0
        %1166 = vmatprep.subr.bf16.mxu0 0
        %1167 = vmatpush1.bf16.msra.mxu0 0
        %1168 = vmatprep.mubr.bf16.mxu0 0
        %1169 = vmatmul.mubr.bf16.gmra.mrb[0].mxu0 %v1131
        %v1170 = vpop.f32.mrb[0].mxu0
        %v1171 = vadd.f32 0.0, %v1170
        %v1172 = vpop.f32.mrb[0].mxu0
        %v1173 = vpop.f32.mrb[0].mxu0
        %v1174 = vpop.f32.mrb[0].mxu0
        %1175 = vdwg.mxu0
        %v1176 = vpack.c.bf16 %v1171, %v1171
        %v1178 = vunpack.c.l.b16 %v1176
        %v1179 = vpack.c.b16 %v1178, %v1178
        %1180 = vrot.lane.b32.xlu0 %v1179, 16
        %v1181 = vpop.permute.xlu0 %1180
        %vm1183 = vcmask 191616
        %1184 = vst.msk [vmem:[#allocation2] sm:$0xf] %vm1183, %v1181
        %1185 = vrot.lane.b32.xlu0 %v808, 104
        %v1186 = vpop.permute.xlu0 %1185
        %1187 = vrot.lane.b32.xlu0 %v809, 104
        %v1188 = vpop.permute.xlu0 %1187
        %v1190 = vsel %vm811, %v1186, 0
        %v1193 = vsel %vm811, %v1188, 0
        %1195 = vmatprep.subr.bf16.mxu0 0
        %1196 = vmatpush1.bf16.xpose.msra.mxu0 %v1193
        %1197 = vmatprep.subr.bf16.mxu0 0
        %1198 = vmatpush1.bf16.xpose.msra.mxu0 0
        %1199 = vmatprep.subr.bf16.mxu0 0
        %1200 = vmatpush1.bf16.xpose.msra.mxu0 0
        %1201 = vmatprep.subr.bf16.mxu0 0
        %1202 = vmatpush1.bf16.xpose.msra.mxu0 0
        %1203 = vmatprep.subr.bf16.mxu0 0
        %1204 = vmatpush1.bf16.xpose.msra.mxu0 0
        %1205 = vmatprep.subr.bf16.mxu0 0
        %1206 = vmatpush1.bf16.xpose.msra.mxu0 0
        %1207 = vmatprep.subr.bf16.mxu0 0
        %1208 = vmatpush1.bf16.xpose.msra.mxu0 0
        %1209 = vmatprep.subr.bf16.mxu0 0
        %1210 = vmatpush1.bf16.xpose.msra.mxu0 0
        %1211 = vmatprep.subr.bf16.mxu0 0
        %1212 = vmatpush1.bf16.xpose.msra.mxu0 0
        %1213 = vmatprep.subr.bf16.mxu0 0
        %1214 = vmatpush1.bf16.xpose.msra.mxu0 0
        %1215 = vmatprep.subr.bf16.mxu0 0
        %1216 = vmatpush1.bf16.xpose.msra.mxu0 0
        %1217 = vmatprep.subr.bf16.mxu0 0
        %1218 = vmatpush1.bf16.xpose.msra.mxu0 0
        %1219 = vmatprep.subr.bf16.mxu0 0
        %1220 = vmatpush1.bf16.xpose.msra.mxu0 0
        %1221 = vmatprep.subr.bf16.mxu0 0
        %1222 = vmatpush1.bf16.xpose.msra.mxu0 0
        %1223 = vmatprep.subr.bf16.mxu0 0
        %1224 = vmatpush1.bf16.xpose.msra.mxu0 0
        %1225 = vmatprep.subr.bf16.mxu0 0
        %1226 = vmatpush1.bf16.xpose.msra.mxu0 0
        %1227 = vmatprep.mubr.bf16.mxu0 0
        %1228 = vmatmul.mubr.bf16.gmra.mrb[0].mxu0 %v1190
        %v1229 = vpop.f32.mrb[0].mxu0
        %v1230 = vadd.f32 0.0, %v1229
        %v1231 = vpop.f32.mrb[0].mxu0
        %v1232 = vpop.f32.mrb[0].mxu0
        %v1233 = vpop.f32.mrb[0].mxu0
        %1234 = vdwg.mxu0
        %v1235 = vsel %vm811, %v1230, -inf
        %v1236 = vrot.slane %v1235, 4
        %v1237 = vmax.f32 %v1235, %v1236
        %v1238 = vrot.slane %v1237, 2
        %v1239 = vmax.f32 %v1237, %v1238
        %v1240 = vrot.slane %v1239, 1
        %v1241 = vmax.f32 %v1239, %v1240
        %v1242 = vsub.f32 %v1230, %v1241
        %v1243 = vmul.f32 %v1242, 1.442695
        %v1244 = vpow.pop %v1243
        %v1245 = vsel %vm811, %v1244, 0.0
        %v1246 = vrot.slane %v1245, 4
        %v1247 = vadd.f32 %v1245, %v1246
        %v1248 = vrot.slane %v1247, 2
        %v1249 = vadd.f32 %v1247, %v1248
        %v1250 = vrot.slane %v1249, 1
        %v1251 = vadd.f32 %v1249, %v1250
        %v1252 = vrcp.pop %v1251
        %v1253 = vmul.f32 %v1244, %v1252
        %v1254 = vpack.c.bf16 %v1253, %v1253
        %1255 = vrot.lane.b32.xlu0 %v810, 104
        %v1256 = vpop.permute.xlu0 %1255
        %v1258 = vsel %vm811, %v1254, 0
        %v1261 = vsel %vm881, %v1256, 0
        %1263 = vmatprep.subr.bf16.mxu0 0
        %1264 = vmatpush1.bf16.msra.mxu0 %v1261
        %1265 = vmatprep.subr.bf16.mxu0 0
        %1266 = vmatpush1.bf16.msra.mxu0 0
        %1267 = vmatprep.subr.bf16.mxu0 0
        %1268 = vmatpush1.bf16.msra.mxu0 0
        %1269 = vmatprep.subr.bf16.mxu0 0
        %1270 = vmatpush1.bf16.msra.mxu0 0
        %1271 = vmatprep.subr.bf16.mxu0 0
        %1272 = vmatpush1.bf16.msra.mxu0 0
        %1273 = vmatprep.subr.bf16.mxu0 0
        %1274 = vmatpush1.bf16.msra.mxu0 0
        %1275 = vmatprep.subr.bf16.mxu0 0
        %1276 = vmatpush1.bf16.msra.mxu0 0
        %1277 = vmatprep.subr.bf16.mxu0 0
        %1278 = vmatpush1.bf16.msra.mxu0 0
        %1279 = vmatprep.subr.bf16.mxu0 0
        %1280 = vmatpush1.bf16.msra.mxu0 0
        %1281 = vmatprep.subr.bf16.mxu0 0
        %1282 = vmatpush1.bf16.msra.mxu0 0
        %1283 = vmatprep.subr.bf16.mxu0 0
        %1284 = vmatpush1.bf16.msra.mxu0 0
        %1285 = vmatprep.subr.bf16.mxu0 0
        %1286 = vmatpush1.bf16.msra.mxu0 0
        %1287 = vmatprep.subr.bf16.mxu0 0
        %1288 = vmatpush1.bf16.msra.mxu0 0
        %1289 = vmatprep.subr.bf16.mxu0 0
        %1290 = vmatpush1.bf16.msra.mxu0 0
        %1291 = vmatprep.subr.bf16.mxu0 0
        %1292 = vmatpush1.bf16.msra.mxu0 0
        %1293 = vmatprep.subr.bf16.mxu0 0
        %1294 = vmatpush1.bf16.msra.mxu0 0
        %1295 = vmatprep.mubr.bf16.mxu0 0
        %1296 = vmatmul.mubr.bf16.gmra.mrb[0].mxu0 %v1258
        %v1297 = vpop.f32.mrb[0].mxu0
        %v1298 = vadd.f32 0.0, %v1297
        %v1299 = vpop.f32.mrb[0].mxu0
        %v1300 = vpop.f32.mrb[0].mxu0
        %v1301 = vpop.f32.mrb[0].mxu0
        %1302 = vdwg.mxu0
        %v1303 = vpack.c.bf16 %v1298, %v1298
        %v1305 = vunpack.c.l.b16 %v1303
        %v1306 = vpack.c.b16 %v1305, %v1305
        %1307 = vrot.lane.b32.xlu0 %v1306, 24
        %v1308 = vpop.permute.xlu0 %1307
        %vm1310 = vcmask 257216
        %1311 = vst.msk [vmem:[#allocation2] sm:$0xf] %vm1310, %v1308
        %v1312 = vld [vmem:[#allocation2] sm:$0xf]
        %v1313 = vld [vmem:[#allocation8] sm:$0xf]
        %v1314 = vld [vmem:[#allocation8 + $0x4] sm:$0xf]
        %v1315 = vld [vmem:[#allocation8 + $0x8] sm:$0xf]
        %v1316 = vld [vmem:[#allocation8 + $0xc] sm:$0xf]
        %v1317 = vld [vmem:[#allocation9] sm:$0x1]
        %v1319 = vlaneseq
        %v1320 = vshrl.u32 %v1319, 7
        %v1321 = vsub.s32 0, %v1320
        %v1322 = vrot.slane %v1317, %v1321
        %v1328 = vunpack.c.l.b16 %v1313
        %v1329 = vunpack.c.l.b16 %v1314
        %v1330 = vunpack.c.l.b16 %v1315
        %v1331 = vunpack.c.l.b16 %v1316
        %v1332 = vpack.c.b16 %v1329, %v1328
        %v1333 = vpack.c.b16 %v1331, %v1330
        %v1337 = vsel %vm637, %v1312, 0
        %1339 = vmatprep.subr.bf16.mxu0 0
        %1340 = vmatpush1.bf16.msra.mxu0 %v1332
        %1341 = vmatprep.subr.bf16.mxu0 0
        %1342 = vmatpush1.bf16.msra.mxu0 %v1333
        %1343 = vmatprep.subr.bf16.mxu0 0
        %1344 = vmatpush1.bf16.msra.mxu0 0
        %1345 = vmatprep.subr.bf16.mxu0 0
        %1346 = vmatpush1.bf16.msra.mxu0 0
        %1347 = vmatprep.subr.bf16.mxu0 0
        %1348 = vmatpush1.bf16.msra.mxu0 0
        %1349 = vmatprep.subr.bf16.mxu0 0
        %1350 = vmatpush1.bf16.msra.mxu0 0
        %1351 = vmatprep.subr.bf16.mxu0 0
        %1352 = vmatpush1.bf16.msra.mxu0 0
        %1353 = vmatprep.subr.bf16.mxu0 0
        %1354 = vmatpush1.bf16.msra.mxu0 0
        %1355 = vmatprep.subr.bf16.mxu0 0
        %1356 = vmatpush1.bf16.msra.mxu0 0
        %1357 = vmatprep.subr.bf16.mxu0 0
        %1358 = vmatpush1.bf16.msra.mxu0 0
        %1359 = vmatprep.subr.bf16.mxu0 0
        %1360 = vmatpush1.bf16.msra.mxu0 0
        %1361 = vmatprep.subr.bf16.mxu0 0
        %1362 = vmatpush1.bf16.msra.mxu0 0
        %1363 = vmatprep.subr.bf16.mxu0 0
        %1364 = vmatpush1.bf16.msra.mxu0 0
        %1365 = vmatprep.subr.bf16.mxu0 0
        %1366 = vmatpush1.bf16.msra.mxu0 0
        %1367 = vmatprep.subr.bf16.mxu0 0
        %1368 = vmatpush1.bf16.msra.mxu0 0
        %1369 = vmatprep.subr.bf16.mxu0 0
        %1370 = vmatpush1.bf16.msra.mxu0 0
        %1371 = vmatprep.mubr.bf16.mxu0 0
        %1372 = vmatmul.mubr.bf16.gmra.mrb[0].mxu0 %v1337
        %v1373 = vpop.f32.mrb[0].mxu0
        %v1374 = vadd.f32 %v1322, %v1373
        %v1375 = vpop.f32.mrb[0].mxu0
        %v1376 = vpop.f32.mrb[0].mxu0
        %v1377 = vpop.f32.mrb[0].mxu0
        %1378 = vdwg.mxu0
        %v1379 = vadd.f32 %v1374, %v612
        %v1380 = vsel %vm637, %v1379, 0.0
        %1381 = vadd.xlane.f32.xlu0 %v1380
        %v1382 = vpop.xlane.xlu0 %1381
        %v1383 = vrcp.pop 32.0
        %v1384 = vmul.f32 %v1382, %v1383
        %v1385 = vmul.f32 %v1379, %v1379
        %v1386 = vsel %vm637, %v1385, 0.0
        %1387 = vadd.xlane.f32.xlu0 %v1386
        %v1388 = vpop.xlane.xlu0 %1387
        %v1389 = vmul.f32 %v1388, %v1383
        %v1390 = vmul.f32 %v1384, %v1384
        %v1391 = vsub.f32 %v1389, %v1390
        %v1392 = vsub.f32 %v1379, %v1384
        %v1393 = vadd.f32 %v1391, 1e-05
        %v1394 = vrsqrt.pop %v1393
        %v1395 = vmul.f32 %v1392, %v1394
        %v1396 = vld [vmem:[#allocation11] sm:$0x1]
        %v1398 = vlaneseq
        %v1399 = vshrl.u32 %v1398, 7
        %v1400 = vsub.s32 0, %v1399
        %v1401 = vrot.slane %v1396, %v1400
        %v1403 = vmul.f32 %v1395, %v1401
        %v1404 = vld [vmem:[%s10] sm:$0x1]
        %v1406 = vlaneseq
        %v1407 = vshrl.u32 %v1406, 7
        %v1408 = vsub.s32 0, %v1407
        %v1409 = vrot.slane %v1404, %v1408
        %v1411 = vadd.f32 %v1403, %v1409
        %v1412 = vpack.c.bf16 %v1411, %v1411
        %v1413 = vld [vmem:[%s14] sm:$0x1]
        %v1415 = vlaneseq
        %v1416 = vshrl.u32 %v1415, 7
        %v1417 = vsub.s32 0, %v1416
        %v1418 = vrot.slane %v1413, %v1417
        %v1420 = vld [vmem:[%s11] sm:$0xf]
        %v1421 = vld [vmem:[%s11 + $0x4] sm:$0xf]
        %v1422 = vld [vmem:[%s11 + $0x8] sm:$0xf]
        %v1423 = vld [vmem:[%s11 + $0xc] sm:$0xf]
        %v1424 = vld [vmem:[%s12] sm:$0x1]
        %v1426 = vlaneseq
        %v1427 = vshrl.u32 %v1426, 7
        %v1428 = vsub.s32 0, %v1427
        %v1429 = vrot.slane %v1424, %v1428
        %v1435 = vunpack.c.l.b16 %v1420
        %v1436 = vunpack.c.l.b16 %v1421
        %v1437 = vunpack.c.l.b16 %v1422
        %v1438 = vunpack.c.l.b16 %v1423
        %v1439 = vpack.c.b16 %v1436, %v1435
        %v1440 = vpack.c.b16 %v1438, %v1437
        %v1444 = vsel %vm637, %v1412, 0
        %1446 = vmatprep.subr.bf16.mxu0 0
        %1447 = vmatpush1.bf16.msra.mxu0 %v1439
        %1448 = vmatprep.subr.bf16.mxu0 0
        %1449 = vmatpush1.bf16.msra.mxu0 %v1440
        %1450 = vmatprep.subr.bf16.mxu0 0
        %1451 = vmatpush1.bf16.msra.mxu0 0
        %1452 = vmatprep.subr.bf16.mxu0 0
        %1453 = vmatpush1.bf16.msra.mxu0 0
        %1454 = vmatprep.subr.bf16.mxu0 0
        %1455 = vmatpush1.bf16.msra.mxu0 0
        %1456 = vmatprep.subr.bf16.mxu0 0
        %1457 = vmatpush1.bf16.msra.mxu0 0
        %1458 = vmatprep.subr.bf16.mxu0 0
        %1459 = vmatpush1.bf16.msra.mxu0 0
        %1460 = vmatprep.subr.bf16.mxu0 0
        %1461 = vmatpush1.bf16.msra.mxu0 0
        %1462 = vmatprep.subr.bf16.mxu0 0
        %1463 = vmatpush1.bf16.msra.mxu0 0
        %1464 = vmatprep.subr.bf16.mxu0 0
        %1465 = vmatpush1.bf16.msra.mxu0 0
        %1466 = vmatprep.subr.bf16.mxu0 0
        %1467 = vmatpush1.bf16.msra.mxu0 0
        %1468 = vmatprep.subr.bf16.mxu0 0
        %1469 = vmatpush1.bf16.msra.mxu0 0
        %1470 = vmatprep.subr.bf16.mxu0 0
        %1471 = vmatpush1.bf16.msra.mxu0 0
        %1472 = vmatprep.subr.bf16.mxu0 0
        %1473 = vmatpush1.bf16.msra.mxu0 0
        %1474 = vmatprep.subr.bf16.mxu0 0
        %1475 = vmatpush1.bf16.msra.mxu0 0
        %1476 = vmatprep.subr.bf16.mxu0 0
        %1477 = vmatpush1.bf16.msra.mxu0 0
        %1478 = vmatprep.mubr.bf16.mxu0 0
        %1479 = vmatmul.mubr.bf16.gmra.mrb[0].mxu0 %v1444
        %v1480 = vpop.f32.mrb[0].mxu0
        %v1481 = vadd.f32 %v1429, %v1480
        %v1482 = vpop.f32.mrb[0].mxu0
        %v1483 = vpop.f32.mrb[0].mxu0
        %v1484 = vpop.f32.mrb[0].mxu0
        %1485 = vdwg.mxu0
        %v1486 = vmax.f32 %v1481, 0.0
        %v1487 = vpack.c.bf16 %v1486, %v1486
        %v1488 = vld [vmem:[%s13] sm:$0xf]
        %v1489 = vld [vmem:[%s13 + $0x4] sm:$0xf]
        %v1490 = vld [vmem:[%s13 + $0x8] sm:$0xf]
        %v1491 = vld [vmem:[%s13 + $0xc] sm:$0xf]
        %v1492 = vld [vmem:[%s13 + $0x10] sm:$0xf]
        %v1493 = vld [vmem:[%s13 + $0x14] sm:$0xf]
        %v1494 = vld [vmem:[%s13 + $0x18] sm:$0xf]
        %v1495 = vld [vmem:[%s13 + $0x1c] sm:$0xf]
        %v1504 = vunpack.c.l.b16 %v1488
        %v1505 = vunpack.c.l.b16 %v1489
        %v1506 = vunpack.c.l.b16 %v1490
        %v1507 = vunpack.c.l.b16 %v1491
        %v1508 = vunpack.c.l.b16 %v1492
        %v1509 = vunpack.c.l.b16 %v1493
        %v1510 = vunpack.c.l.b16 %v1494
        %v1511 = vunpack.c.l.b16 %v1495
        %v1512 = vpack.c.b16 %v1505, %v1504
        %v1513 = vpack.c.b16 %v1507, %v1506
        %v1514 = vpack.c.b16 %v1509, %v1508
        %v1515 = vpack.c.b16 %v1511, %v1510
        %vm1520 = vcmask 523264
        %v1522 = vsel %vm1520, %v1487, 0
        %1524 = vmatprep.subr.bf16.mxu0 0
        %1525 = vmatpush1.bf16.msra.mxu0 %v1512
        %1526 = vmatprep.subr.bf16.mxu0 0
        %1527 = vmatpush1.bf16.msra.mxu0 %v1513
        %1528 = vmatprep.subr.bf16.mxu0 0
        %1529 = vmatpush1.bf16.msra.mxu0 %v1514
        %1530 = vmatprep.subr.bf16.mxu0 0
        %1531 = vmatpush1.bf16.msra.mxu0 %v1515
        %1532 = vmatprep.subr.bf16.mxu0 0
        %1533 = vmatpush1.bf16.msra.mxu0 0
        %1534 = vmatprep.subr.bf16.mxu0 0
        %1535 = vmatpush1.bf16.msra.mxu0 0
        %1536 = vmatprep.subr.bf16.mxu0 0
        %1537 = vmatpush1.bf16.msra.mxu0 0
        %1538 = vmatprep.subr.bf16.mxu0 0
        %1539 = vmatpush1.bf16.msra.mxu0 0
        %1540 = vmatprep.subr.bf16.mxu0 0
        %1541 = vmatpush1.bf16.msra.mxu0 0
        %1542 = vmatprep.subr.bf16.mxu0 0
        %1543 = vmatpush1.bf16.msra.mxu0 0
        %1544 = vmatprep.subr.bf16.mxu0 0
        %1545 = vmatpush1.bf16.msra.mxu0 0
        %1546 = vmatprep.subr.bf16.mxu0 0
        %1547 = vmatpush1.bf16.msra.mxu0 0
        %1548 = vmatprep.subr.bf16.mxu0 0
        %1549 = vmatpush1.bf16.msra.mxu0 0
        %1550 = vmatprep.subr.bf16.mxu0 0
        %1551 = vmatpush1.bf16.msra.mxu0 0
        %1552 = vmatprep.subr.bf16.mxu0 0
        %1553 = vmatpush1.bf16.msra.mxu0 0
        %1554 = vmatprep.subr.bf16.mxu0 0
        %1555 = vmatpush1.bf16.msra.mxu0 0
        %1556 = vmatprep.mubr.bf16.mxu0 0
        %1557 = vmatmul.mubr.bf16.gmra.mrb[0].mxu0 %v1522
        %v1558 = vpop.f32.mrb[0].mxu0
        %v1559 = vadd.f32 0.0, %v1558
        %v1560 = vpop.f32.mrb[0].mxu0
        %v1561 = vpop.f32.mrb[0].mxu0
        %v1562 = vpop.f32.mrb[0].mxu0
        %1563 = vdwg.mxu0
        %v1564 = vadd.f32 %v1418, %v1559
        %v1565 = vadd.f32 %v1411, %v1564
        %v1566 = vsel %vm637, %v1565, 0.0
        %1567 = vadd.xlane.f32.xlu0 %v1566
        %v1568 = vpop.xlane.xlu0 %1567
        %v1569 = vmul.f32 %v1568, %v1383
        %v1570 = vmul.f32 %v1565, %v1565
        %v1571 = vsel %vm637, %v1570, 0.0
        %1572 = vadd.xlane.f32.xlu0 %v1571
        %v1573 = vpop.xlane.xlu0 %1572
        %v1574 = vmul.f32 %v1573, %v1383
        %v1575 = vmul.f32 %v1569, %v1569
        %v1576 = vsub.f32 %v1574, %v1575
        %v1577 = vsub.f32 %v1565, %v1569
        %v1578 = vadd.f32 %v1576, 1e-05
        %v1579 = vrsqrt.pop %v1578
        %v1580 = vmul.f32 %v1577, %v1579
        %v1581 = vld [vmem:[%s15] sm:$0x1]
        %v1583 = vlaneseq
        %v1584 = vshrl.u32 %v1583, 7
        %v1585 = vsub.s32 0, %v1584
        %v1586 = vrot.slane %v1581, %v1585
        %v1588 = vmul.f32 %v1580, %v1586
        %v1589 = vld [vmem:[%s16] sm:$0x1]
        %v1591 = vlaneseq
        %v1592 = vshrl.u32 %v1591, 7
        %v1593 = vsub.s32 0, %v1592
        %v1594 = vrot.slane %v1589, %v1593
        %v1596 = vadd.f32 %v1588, %v1594
        %1597 = vst.msk [vmem:[%s606] sm:$0xff] %vm637, %v1596
        %s1598 = sand.u32 %s404, 1
        %s1599 = scalar_lea.sflag [#allocation5], %s1598
        %s1600 = sand.u32 %s404, 1
        %s1601 = smul.addr %s1600, 8
        %s1602 = scalar_lea.vmem [#allocation12], %s1601
        // Predicated region
        $region109: #{tpu_custom_call.1} parent=87 // pred_check
          %p1603 = pneg %p414
        $region110: #{tpu_custom_call.1} parent=87 // pred_check_branch
          %1605 = sbr.rel (%p1603) target = $region112
        $region111: #{tpu_custom_call.1} parent=87 // pred_region
          %s1607 = ssub.s32 128, 128
          %1608 = vsyncadd %s1599, %s1607
          %s1609 = smul.addr %s34, 128
          %s1610 = scalar_lea.hbm %s17, %s1609
          %s1612 = sshll.u32 %s1602, 4
          %s1613 = int_to_ptr.vmem [resolvable:$true] %s1612
          %1615 = dma.vmem_to_hbm [thread:$0]  %s1613, 128, %s1610, %s1599
        $region112: #{tpu_custom_call.1} parent=87 // pred_fallthru
          _
      $region88: #{tpu_custom_call.1} parent=5 // pred_fallthru
        _
      %p1616 = scmp.le.s32.totalorder 2, %s29
      // Predicated region
      $region113: #{tpu_custom_call.1} parent=5 // pred_check
        %p1617 = pneg %p1616
      $region114: #{tpu_custom_call.1} parent=5 // pred_check_branch
        %1619 = sbr.rel (%p1617) target = $region116
      $region115: #{tpu_custom_call.1} parent=5 // pred_region
        %s1620 = ssub.s32 %s29, 2
        // Predicated region
        $region117: #{tpu_custom_call.1} parent=115 // pred_check
          %p1621 = pneg %p420
        $region118: #{tpu_custom_call.1} parent=115 // pred_check_branch
          %1623 = sbr.rel (%p1621) target = $region120
        $region119: #{tpu_custom_call.1} parent=115 // pred_region
          %s1624 = sand.u32 %s405, 1
          %s1625 = scalar_lea.sflag [#allocation5], %s1624
          %s1626 = sand.u32 %s405, 1
          %s1627 = smul.addr %s1626, 8
          %s1628 = scalar_lea.vmem [#allocation12], %s1627
          %1629 = dma.done %s1625, 128
        $region120: #{tpu_custom_call.1} parent=115 // pred_fallthru
          _
      $region116: #{tpu_custom_call.1} parent=5 // pred_fallthru
        _
    $region6: #{tpu_custom_call.1} parent=1 // loop_footer
      %s33 = sadd.s32 1, %s29
    $region7: #{tpu_custom_call.1} parent=1 // loop_footer_branch
      %28 = sbr.rel target = $region3
    $region8: #{tpu_custom_call.1} parent=1 // loop_exit
      _
    %1630 = vsyncpa [#allocation4], 1
    %s1631 = scalar_lea.sflag [#allocation4], 1
    %1632 = vsyncpa %s1631, 1
    %1633 = vsyncpa [#allocation7], 1
    %1634 = vsyncpa [#allocation10], 1
    %1635 = vsyncpa [#allocation5], 1
    %s1636 = scalar_lea.sflag [#allocation5], 1
    %1637 = vsyncpa %s1636, 1

</llo_original>
